<compile_context>
chip_gen: v7x
topology: tpu7x:2x2x1
jax: 0.10.0
libtpu: 0.0.40
codegen_flags: <defaults>
</compile_context>

<pallas_src>
import numpy as np

import jax
import jax.numpy as jnp
from jax.experimental import pallas as pl
from jax.experimental.pallas import tpu as pltpu

EPS = 1e-5


# ------------------------------ Pallas kernel ------------------------------ #
def decoder_kernel(x_ref, w1_ref, g3_ref, wr13_ref, wr11_ref, wr23_ref, wr21_ref,
                   gt1_ref, wt1_ref, gt2_ref, wt2_ref, wout_ref, bout_ref,
                   sc_ref, sh_ref, o_ref, patches_ref):
    f32, bf16 = jnp.float32, jnp.bfloat16

    def wmul(w_bf, a):
        # Weight matmul on the MXU: bf16 x bf16 inputs, f32 accumulation.
        return jnp.dot(w_bf, a.astype(bf16), preferred_element_type=f32)

    def bn(a, i):
        # Folded inference BatchNorm: per-channel scale/shift, [C,1] broadcast.
        return a * sc_ref[i] + sh_ref[i]

    def relu(a):
        return jnp.maximum(a, 0.0)

    def conv(a, g_ref, w_ref):
        # a:      [Cin, S_in]  activation (channels on sublanes, space on lanes)
        # g_ref:  [K*K, S_in, S_out] constant 0/1 bf16 gather matrices:
        #         per-image "im2col" done in VMEM with exact MXU matmuls.
        # w_ref:  [Cout, K*K*Cin] bf16 tap-stacked weights -> one MXU GEMM with
        #         a K*K*Cin contraction instead of K*K tiny Cin-wide ones.
        # Tap results stream through the VMEM `patches` scratch so live vregs
        # stay bounded (no list + concatenate -> no spill traffic).
        k2, _, s_out = g_ref.shape
        cin = a.shape[0]
        a_bf = a.astype(bf16)
        for t in range(k2):                                       # static unroll
            patches_ref[t * cin:(t + 1) * cin, :s_out] = jnp.dot(
                a_bf, g_ref[t], preferred_element_type=f32)
        return wmul(w_ref[...], patches_ref[:k2 * cin, :s_out])

    x = x_ref[0]                                     # [Cin, H*W]

    # Conv1x1 (no bias) + BN
    h = bn(wmul(w1_ref[...], x), 0)

    # Residual: x + BN2(Conv1x1(ReLU(BN1(Conv3x3(ReLU(x))))))
    def residual(a, w3_ref, w1x1_ref, i1, i2):
        t = relu(a)                                  # ReLU on compact activation
        t = relu(bn(conv(t, g3_ref, w3_ref), i1))    # Conv3x3(pad 1) + BN + ReLU
        t = bn(wmul(w1x1_ref[...], t), i2)           # Conv1x1 + BN
        return a + t

    h = residual(h, wr13_ref, wr11_ref, 1, 2)
    h = residual(h, wr23_ref, wr21_ref, 3, 4)

    # ConvTranspose(4, 2, 1) + BN + ReLU   (x2)
    h = relu(bn(conv(h, gt1_ref, wt1_ref), 5))       # [C, 2H*2W]
    h = relu(bn(conv(h, gt2_ref, wt2_ref), 6))       # [C, 4H*4W]

    # Final Conv1x1 padded to 8 output channels (rows 3..7 have zero weights)
    # -> unmasked full-sublane, lane-dense store; wrapper slices back to 3.
    o_ref[0] = (wmul(wout_ref[...], h) + bout_ref[...]).astype(o_ref.dtype)


# --------------------- constant geometry / weight prep --------------------- #
def _gather_mats(h_in, w_in, h_out, w_out, k, stride, pad, transposed):
    """Per-image 0/1 matrices G[t]: (X @ G[t])[c, s_out] = X[c, src(t, s_out)]."""
    s_in, s_out = h_in * w_in, h_out * w_out
    g = np.zeros((k * k, s_in, s_out), np.float32)
    for kh in range(k):
        for kw in range(k):
            gt = g[kh * k + kw]
            for oh in range(h_out):
                for ow in range(w_out):
                    if transposed:
                        th, tw = oh + pad - kh, ow + pad - kw
                        if th < 0 or tw < 0 or th % stride or tw % stride:
                            continue
                        ih, iw = th // stride, tw // stride
                    else:
                        ih = oh * stride - pad + kh
                        iw = ow * stride - pad + kw
                    if 0 <= ih < h_in and 0 <= iw < w_in:
                        gt[ih * w_in + iw, oh * w_out + ow] = 1.0
    return jnp.asarray(g, dtype=jnp.bfloat16)   # 0/1 is exact in bf16


def _stack_conv_w(w):
    # Conv2d weight [Cout, Cin, K, K] -> [Cout, K*K*Cin], tap-major (t = kh*K+kw).
    cout, cin, k, _ = w.shape
    t = jnp.transpose(w, (2, 3, 0, 1)).reshape(k * k, cout, cin)
    return jnp.transpose(t, (1, 0, 2)).reshape(cout, k * k * cin)


def _stack_convT_w(w):
    # ConvTranspose2d weight [Cin, Cout, K, K] -> [Cout, K*K*Cin], tap-major.
    cin, cout, k, _ = w.shape
    t = jnp.transpose(w, (2, 3, 1, 0)).reshape(k * k, cout, cin)
    return jnp.transpose(t, (1, 0, 2)).reshape(cout, k * k * cin)


def _bn_fold(bn):
    scale = bn['gamma'] / jnp.sqrt(bn['var'] + EPS)
    shift = bn['beta'] - bn['mean'] * scale
    return scale, shift


# --------------------------------- wrapper --------------------------------- #
def decoder_forward(x_nchw, params):
    N, in_c, H, W = x_nchw.shape
    C = params['conv1_w'].shape[0]
    H1, W1, H2, W2 = 2 * H, 2 * W, 4 * H, 4 * W
    S0, S2 = H * W, H2 * W2
    bf16 = jnp.bfloat16

    # Per-image constant gather matrices (bf16, built once, batch-independent).
    g3 = _gather_mats(H, W, H, W, 3, 1, 1, False)        # 3x3 same conv @ HxW
    gt1 = _gather_mats(H, W, H1, W1, 4, 2, 1, True)      # convT  HxW  -> 2Hx2W
    gt2 = _gather_mats(H1, W1, H2, W2, 4, 2, 1, True)    # convT 2Hx2W -> 4Hx4W

    # Weights in MXU-friendly stacked bf16 layouts (cast once, wrapper-side).
    w1 = params['conv1_w'][:, :, 0, 0].astype(bf16)
    wr13 = _stack_conv_w(params['res1']['w1']).astype(bf16)
    wr11 = params['res1']['w2'][:, :, 0, 0].astype(bf16)
    wr23 = _stack_conv_w(params['res2']['w1']).astype(bf16)
    wr21 = params['res2']['w2'][:, :, 0, 0].astype(bf16)
    wt1 = _stack_convT_w(params['convT1_w']).astype(bf16)
    wt2 = _stack_convT_w(params['convT2_w']).astype(bf16)

    # Final 1x1 conv padded from 3 -> 8 output channels (full-sublane store).
    wout = jnp.zeros((8, C), jnp.float32).at[:3].set(
        params['conv_out_w'][:, :, 0, 0]).astype(bf16)
    bout = jnp.zeros((8, 1), jnp.float32).at[:3, 0].set(params['conv_out_b'])

    # Folded BatchNorms packed as [7, C, 1] for in-kernel [C,1] broadcasts.
    bns = [params['bn1'], params['res1']['bn1'], params['res1']['bn2'],
           params['res2']['bn1'], params['res2']['bn2'],
           params['bnT1'], params['bnT2']]
    folded = [_bn_fold(b) for b in bns]
    scales = jnp.stack([s for s, _ in folded]).reshape(len(bns), C, 1)
    shifts = jnp.stack([s for _, s in folded]).reshape(len(bns), C, 1)

    # Per-image activation blocks: [N, Cin, H*W] (channels on sublanes).
    x_img = x_nchw.reshape(N, in_c, S0).astype(jnp.float32)

    consts = (w1, g3, wr13, wr11, wr23, wr21, gt1, wt1, gt2, wt2,
              wout, bout, scales, shifts)

    def const_spec(a):
        nd = a.ndim
        # Same block index for every grid step -> loaded once, stays resident.
        return pl.BlockSpec(a.shape, lambda b, nd=nd: (0,) * nd)

    out = pl.pallas_call(
        decoder_kernel,
        grid=(N,),
        in_specs=[pl.BlockSpec((1, in_c, S0), lambda b: (b, 0, 0))]
                 + [const_spec(a) for a in consts],
        out_specs=pl.BlockSpec((1, 8, S2), lambda b: (b, 0, 0)),
        out_shape=jax.ShapeDtypeStruct((N, 8, S2), jnp.float32),
        scratch_shapes=[pltpu.VMEM((16 * C, S2), jnp.float32)],   # patches
        compiler_params=pltpu.CompilerParams(
            dimension_semantics=("parallel",),        # shards across v7x's 2 TCs
            vmem_limit_bytes=32 * 1024 * 1024),
    )(x_img, *consts)

    # [N, 8, 4H*4W] -> NCHW, keep the 3 real output channels.
    return out.reshape(N, 8, H2, W2)[:, :3]


# ------------------------- deterministic parameters ------------------------ #
def init_params(key, channels, latent_dim, embedding_dim):
    in_c = latent_dim * embedding_dim
    keys = iter(jax.random.split(key, 40))

    def conv_w(cout, cin, k):
        return 0.1 * jax.random.normal(next(keys), (cout, cin, k, k), jnp.float32)

    def convT_w(cin, cout, k):
        return 0.1 * jax.random.normal(next(keys), (cin, cout, k, k), jnp.float32)

    def bn(c):
        return dict(
            gamma=1.0 + 0.1 * jax.random.normal(next(keys), (c,), jnp.float32),
            beta=0.1 * jax.random.normal(next(keys), (c,), jnp.float32),
            mean=0.1 * jax.random.normal(next(keys), (c,), jnp.float32),
            var=1.0 + 0.1 * jnp.abs(jax.random.normal(next(keys), (c,), jnp.float32)),
        )

    return dict(
        conv1_w=conv_w(channels, in_c, 1), bn1=bn(channels),
        res1=dict(w1=conv_w(channels, channels, 3), bn1=bn(channels),
                  w2=conv_w(channels, channels, 1), bn2=bn(channels)),
        res2=dict(w1=conv_w(channels, channels, 3), bn1=bn(channels),
                  w2=conv_w(channels, channels, 1), bn2=bn(channels)),
        convT1_w=convT_w(channels, channels, 4), bnT1=bn(channels),
        convT2_w=convT_w(channels, channels, 4), bnT2=bn(channels),
        conv_out_w=conv_w(3, channels, 1),
        conv_out_b=0.1 * jax.random.normal(next(keys), (3,), jnp.float32),
    )


# ----------------------------- pure-JAX reference -------------------------- #
def decoder_reference(x_nchw, params):
    P = jax.lax.Precision.HIGHEST

    def conv(x, w, stride, pad):
        return jax.lax.conv_general_dilated(
            x, w, (stride, stride), ((pad, pad), (pad, pad)),
            dimension_numbers=('NCHW', 'OIHW', 'NCHW'), precision=P)

    def convT(x, w, stride, pad):   # w: [Cin, Cout, K, K] (PyTorch layout)
        k = w.shape[2]
        w_conv = jnp.transpose(w[:, :, ::-1, ::-1], (1, 0, 2, 3))
        return jax.lax.conv_general_dilated(
            x, w_conv, (1, 1),
            ((k - 1 - pad, k - 1 - pad), (k - 1 - pad, k - 1 - pad)),
            lhs_dilation=(stride, stride),
            dimension_numbers=('NCHW', 'OIHW', 'NCHW'), precision=P)

    def bn(x, p):
        s = p['gamma'] / jnp.sqrt(p['var'] + EPS)
        sh = p['beta'] - p['mean'] * s
        return x * s[None, :, None, None] + sh[None, :, None, None]

    def res(x, rp):
        h = jax.nn.relu(x)
        h = bn(conv(h, rp['w1'], 1, 1), rp['bn1'])
        h = jax.nn.relu(h)
        h = bn(conv(h, rp['w2'], 1, 0), rp['bn2'])
        return x + h

    h = bn(conv(x_nchw, params['conv1_w'], 1, 0), params['bn1'])
    h = res(h, params['res1'])
    h = res(h, params['res2'])
    h = jax.nn.relu(bn(convT(h, params['convT1_w'], 2, 1), params['bnT1']))
    h = jax.nn.relu(bn(convT(h, params['convT2_w'], 2, 1), params['bnT2']))
    h = conv(h, params['conv_out_w'], 1, 0)
    h = h + params['conv_out_b'][None, :, None, None]
    return h


if __name__ == "__main__":
    key = jax.random.PRNGKey(0)
    kx, kp = jax.random.split(key)

    channels, latent_dim, embedding_dim = 8, 2, 4
    in_c = latent_dim * embedding_dim                         # 8
    x = jax.random.normal(kx, (2, in_c, 4, 4), jnp.float32)   # NCHW latent
    params = init_params(kp, channels, latent_dim, embedding_dim)

    out = jax.block_until_ready(decoder_forward(x, params))
    assert out.shape == (2, 3, 16, 16), out.shape

    ref = decoder_reference(x, params)
    # bf16 MXU inputs with f32 accumulation -> slightly looser tolerance than f32.
    if not jnp.allclose(out, ref, rtol=3e-2, atol=3e-2):
        raise SystemExit("mismatch vs reference: max abs err = %e"
                         % float(jnp.max(jnp.abs(out - ref))))
    print("KERNEL_OK")
</pallas_src>

<mosaic_0001>
module attributes {stable_mosaic.version = 11 : i64} {
  func.func @decoder_kernel(%arg0: i32, %arg1: memref<1x8x16xf32, #tpu.memory_space<vmem>>, %arg2: memref<8x8xbf16, #tpu.memory_space<vmem>>, %arg3: memref<9x16x16xbf16, #tpu.memory_space<vmem>>, %arg4: memref<8x72xbf16, #tpu.memory_space<vmem>>, %arg5: memref<8x8xbf16, #tpu.memory_space<vmem>>, %arg6: memref<8x72xbf16, #tpu.memory_space<vmem>>, %arg7: memref<8x8xbf16, #tpu.memory_space<vmem>>, %arg8: memref<16x16x64xbf16, #tpu.memory_space<vmem>>, %arg9: memref<8x128xbf16, #tpu.memory_space<vmem>>, %arg10: memref<16x64x256xbf16, #tpu.memory_space<vmem>>, %arg11: memref<8x128xbf16, #tpu.memory_space<vmem>>, %arg12: memref<8x8xbf16, #tpu.memory_space<vmem>>, %arg13: memref<8x1xf32, #tpu.memory_space<vmem>>, %arg14: memref<7x8x1xf32, #tpu.memory_space<vmem>>, %arg15: memref<7x8x1xf32, #tpu.memory_space<vmem>>, %arg16: memref<1x8x256xf32, #tpu.memory_space<vmem>>, %arg17: memref<128x256xf32, #tpu.memory_space<vmem>>) attributes {dimension_semantics = [#tpu.dimension_semantics<parallel>], iteration_bounds = array<i64: 2>, scalar_prefetch = 0 : i64, scratch_operands = 1 : i64, tpu.core_type = #tpu.core_type<tc>, window_params = [{transform_indices = @transform_0, window_bounds = array<i64: 1, 8, 16>}, {pipeline_mode = #tpu.pipeline_mode<synchronous>, transform_indices = @transform_1, window_bounds = array<i64: 8, 8>}, {pipeline_mode = #tpu.pipeline_mode<synchronous>, transform_indices = @transform_2, window_bounds = array<i64: 9, 16, 16>}, {pipeline_mode = #tpu.pipeline_mode<synchronous>, transform_indices = @transform_3, window_bounds = array<i64: 8, 72>}, {pipeline_mode = #tpu.pipeline_mode<synchronous>, transform_indices = @transform_4, window_bounds = array<i64: 8, 8>}, {pipeline_mode = #tpu.pipeline_mode<synchronous>, transform_indices = @transform_5, window_bounds = array<i64: 8, 72>}, {pipeline_mode = #tpu.pipeline_mode<synchronous>, transform_indices = @transform_6, window_bounds = array<i64: 8, 8>}, {pipeline_mode = #tpu.pipeline_mode<synchronous>, transform_indices = @transform_7, window_bounds = array<i64: 16, 16, 64>}, {pipeline_mode = #tpu.pipeline_mode<synchronous>, transform_indices = @transform_8, window_bounds = array<i64: 8, 128>}, {pipeline_mode = #tpu.pipeline_mode<synchronous>, transform_indices = @transform_9, window_bounds = array<i64: 16, 64, 256>}, {pipeline_mode = #tpu.pipeline_mode<synchronous>, transform_indices = @transform_10, window_bounds = array<i64: 8, 128>}, {pipeline_mode = #tpu.pipeline_mode<synchronous>, transform_indices = @transform_11, window_bounds = array<i64: 8, 8>}, {pipeline_mode = #tpu.pipeline_mode<synchronous>, transform_indices = @transform_12, window_bounds = array<i64: 8, 1>}, {pipeline_mode = #tpu.pipeline_mode<synchronous>, transform_indices = @transform_13, window_bounds = array<i64: 7, 8, 1>}, {pipeline_mode = #tpu.pipeline_mode<synchronous>, transform_indices = @transform_14, window_bounds = array<i64: 7, 8, 1>}, {transform_indices = @transform_15, window_bounds = array<i64: 1, 8, 256>}]} {
    %c0 = arith.constant 0 : index
    %c0_0 = arith.constant 0 : index
    %c0_1 = arith.constant 0 : index
    %0 = vector.load %arg1[%c0, %c0_0, %c0_1] : memref<1x8x16xf32, #tpu.memory_space<vmem>>, vector<1x8x16xf32>
    %1 = vector.shape_cast %0 : vector<1x8x16xf32> to vector<8x16xf32>
    %c0_2 = arith.constant 0 : index
    %c0_3 = arith.constant 0 : index
    %2 = vector.load %arg2[%c0_2, %c0_3] : memref<8x8xbf16, #tpu.memory_space<vmem>>, vector<8x8xbf16>
    %3 = arith.truncf %1 : vector<8x16xf32> to vector<8x16xbf16>
    %cst = arith.constant dense<0.000000e+00> : vector<8x16xf32>
    %4 = tpu.matmul %2, %3, %cst {dimension_numbers = #tpu.dot_dimension_numbers<[1], [0], [0], [1], [0, 0, 1, 1], [], []>} : vector<8x8xbf16>, vector<8x16xbf16>, vector<8x16xf32> -> vector<8x16xf32>
    %c0_4 = arith.constant 0 : index
    %c0_5 = arith.constant 0 : index
    %c0_6 = arith.constant 0 : index
    %5 = vector.load %arg14[%c0_4, %c0_5, %c0_6] : memref<7x8x1xf32, #tpu.memory_space<vmem>>, vector<1x8x1xf32>
    %6 = vector.shape_cast %5 : vector<1x8x1xf32> to vector<8x1xf32>
    %7 = vector.broadcast %6 : vector<8x1xf32> to vector<8x16xf32>
    %8 = arith.mulf %4, %7 : vector<8x16xf32>
    %c0_7 = arith.constant 0 : index
    %c0_8 = arith.constant 0 : index
    %c0_9 = arith.constant 0 : index
    %9 = vector.load %arg15[%c0_7, %c0_8, %c0_9] : memref<7x8x1xf32, #tpu.memory_space<vmem>>, vector<1x8x1xf32>
    %10 = vector.shape_cast %9 : vector<1x8x1xf32> to vector<8x1xf32>
    %11 = vector.broadcast %10 : vector<8x1xf32> to vector<8x16xf32>
    %12 = arith.addf %8, %11 : vector<8x16xf32>
    %cst_10 = arith.constant 0.000000e+00 : f32
    %13 = vector.broadcast %cst_10 : f32 to vector<8x16xf32>
    %14 = arith.maximumf %12, %13 : vector<8x16xf32>
    %15 = arith.truncf %14 : vector<8x16xf32> to vector<8x16xbf16>
    %c0_11 = arith.constant 0 : index
    %c0_12 = arith.constant 0 : index
    %c0_13 = arith.constant 0 : index
    %16 = vector.load %arg3[%c0_11, %c0_12, %c0_13] : memref<9x16x16xbf16, #tpu.memory_space<vmem>>, vector<1x16x16xbf16>
    %17 = vector.shape_cast %16 : vector<1x16x16xbf16> to vector<16x16xbf16>
    %cst_14 = arith.constant dense<0.000000e+00> : vector<8x16xf32>
    %18 = tpu.matmul %15, %17, %cst_14 {dimension_numbers = #tpu.dot_dimension_numbers<[1], [0], [0], [1], [0, 0, 1, 1], [], []>} : vector<8x16xbf16>, vector<16x16xbf16>, vector<8x16xf32> -> vector<8x16xf32>
    %c0_15 = arith.constant 0 : index
    %c0_16 = arith.constant 0 : index
    %19 = vector.load %arg17[%c0_15, %c0_16] : memref<128x256xf32, #tpu.memory_space<vmem>>, vector<8x16xf32>
    tpu.vector_store %arg17[%c0_15, %c0_16], %18 {strides = array<i32>} : memref<128x256xf32, #tpu.memory_space<vmem>>, vector<8x16xf32>,
    %c1 = arith.constant 1 : index
    %c0_17 = arith.constant 0 : index
    %c0_18 = arith.constant 0 : index
    %20 = vector.load %arg3[%c1, %c0_17, %c0_18] : memref<9x16x16xbf16, #tpu.memory_space<vmem>>, vector<1x16x16xbf16>
    %21 = vector.shape_cast %20 : vector<1x16x16xbf16> to vector<16x16xbf16>
    %cst_19 = arith.constant dense<0.000000e+00> : vector<8x16xf32>
    %22 = tpu.matmul %15, %21, %cst_19 {dimension_numbers = #tpu.dot_dimension_numbers<[1], [0], [0], [1], [0, 0, 1, 1], [], []>} : vector<8x16xbf16>, vector<16x16xbf16>, vector<8x16xf32> -> vector<8x16xf32>
    %c8 = arith.constant 8 : index
    %c0_20 = arith.constant 0 : index
    %23 = vector.load %arg17[%c8, %c0_20] : memref<128x256xf32, #tpu.memory_space<vmem>>, vector<8x16xf32>
    tpu.vector_store %arg17[%c8, %c0_20], %22 {strides = array<i32>} : memref<128x256xf32, #tpu.memory_space<vmem>>, vector<8x16xf32>,
    %c2 = arith.constant 2 : index
    %c0_21 = arith.constant 0 : index
    %c0_22 = arith.constant 0 : index
    %24 = vector.load %arg3[%c2, %c0_21, %c0_22] : memref<9x16x16xbf16, #tpu.memory_space<vmem>>, vector<1x16x16xbf16>
    %25 = vector.shape_cast %24 : vector<1x16x16xbf16> to vector<16x16xbf16>
    %cst_23 = arith.constant dense<0.000000e+00> : vector<8x16xf32>
    %26 = tpu.matmul %15, %25, %cst_23 {dimension_numbers = #tpu.dot_dimension_numbers<[1], [0], [0], [1], [0, 0, 1, 1], [], []>} : vector<8x16xbf16>, vector<16x16xbf16>, vector<8x16xf32> -> vector<8x16xf32>
    %c16 = arith.constant 16 : index
    %c0_24 = arith.constant 0 : index
    %27 = vector.load %arg17[%c16, %c0_24] : memref<128x256xf32, #tpu.memory_space<vmem>>, vector<8x16xf32>
    tpu.vector_store %arg17[%c16, %c0_24], %26 {strides = array<i32>} : memref<128x256xf32, #tpu.memory_space<vmem>>, vector<8x16xf32>,
    %c3 = arith.constant 3 : index
    %c0_25 = arith.constant 0 : index
    %c0_26 = arith.constant 0 : index
    %28 = vector.load %arg3[%c3, %c0_25, %c0_26] : memref<9x16x16xbf16, #tpu.memory_space<vmem>>, vector<1x16x16xbf16>
    %29 = vector.shape_cast %28 : vector<1x16x16xbf16> to vector<16x16xbf16>
    %cst_27 = arith.constant dense<0.000000e+00> : vector<8x16xf32>
    %30 = tpu.matmul %15, %29, %cst_27 {dimension_numbers = #tpu.dot_dimension_numbers<[1], [0], [0], [1], [0, 0, 1, 1], [], []>} : vector<8x16xbf16>, vector<16x16xbf16>, vector<8x16xf32> -> vector<8x16xf32>
    %c24 = arith.constant 24 : index
    %c0_28 = arith.constant 0 : index
    %31 = vector.load %arg17[%c24, %c0_28] : memref<128x256xf32, #tpu.memory_space<vmem>>, vector<8x16xf32>
    tpu.vector_store %arg17[%c24, %c0_28], %30 {strides = array<i32>} : memref<128x256xf32, #tpu.memory_space<vmem>>, vector<8x16xf32>,
    %c4 = arith.constant 4 : index
    %c0_29 = arith.constant 0 : index
    %c0_30 = arith.constant 0 : index
    %32 = vector.load %arg3[%c4, %c0_29, %c0_30] : memref<9x16x16xbf16, #tpu.memory_space<vmem>>, vector<1x16x16xbf16>
    %33 = vector.shape_cast %32 : vector<1x16x16xbf16> to vector<16x16xbf16>
    %cst_31 = arith.constant dense<0.000000e+00> : vector<8x16xf32>
    %34 = tpu.matmul %15, %33, %cst_31 {dimension_numbers = #tpu.dot_dimension_numbers<[1], [0], [0], [1], [0, 0, 1, 1], [], []>} : vector<8x16xbf16>, vector<16x16xbf16>, vector<8x16xf32> -> vector<8x16xf32>
    %c32 = arith.constant 32 : index
    %c0_32 = arith.constant 0 : index
    %35 = vector.load %arg17[%c32, %c0_32] : memref<128x256xf32, #tpu.memory_space<vmem>>, vector<8x16xf32>
    tpu.vector_store %arg17[%c32, %c0_32], %34 {strides = array<i32>} : memref<128x256xf32, #tpu.memory_space<vmem>>, vector<8x16xf32>,
    %c5 = arith.constant 5 : index
    %c0_33 = arith.constant 0 : index
    %c0_34 = arith.constant 0 : index
    %36 = vector.load %arg3[%c5, %c0_33, %c0_34] : memref<9x16x16xbf16, #tpu.memory_space<vmem>>, vector<1x16x16xbf16>
    %37 = vector.shape_cast %36 : vector<1x16x16xbf16> to vector<16x16xbf16>
    %cst_35 = arith.constant dense<0.000000e+00> : vector<8x16xf32>
    %38 = tpu.matmul %15, %37, %cst_35 {dimension_numbers = #tpu.dot_dimension_numbers<[1], [0], [0], [1], [0, 0, 1, 1], [], []>} : vector<8x16xbf16>, vector<16x16xbf16>, vector<8x16xf32> -> vector<8x16xf32>
    %c40 = arith.constant 40 : index
    %c0_36 = arith.constant 0 : index
    %39 = vector.load %arg17[%c40, %c0_36] : memref<128x256xf32, #tpu.memory_space<vmem>>, vector<8x16xf32>
    tpu.vector_store %arg17[%c40, %c0_36], %38 {strides = array<i32>} : memref<128x256xf32, #tpu.memory_space<vmem>>, vector<8x16xf32>,
    %c6 = arith.constant 6 : index
    %c0_37 = arith.constant 0 : index
    %c0_38 = arith.constant 0 : index
    %40 = vector.load %arg3[%c6, %c0_37, %c0_38] : memref<9x16x16xbf16, #tpu.memory_space<vmem>>, vector<1x16x16xbf16>
    %41 = vector.shape_cast %40 : vector<1x16x16xbf16> to vector<16x16xbf16>
    %cst_39 = arith.constant dense<0.000000e+00> : vector<8x16xf32>
    %42 = tpu.matmul %15, %41, %cst_39 {dimension_numbers = #tpu.dot_dimension_numbers<[1], [0], [0], [1], [0, 0, 1, 1], [], []>} : vector<8x16xbf16>, vector<16x16xbf16>, vector<8x16xf32> -> vector<8x16xf32>
    %c48 = arith.constant 48 : index
    %c0_40 = arith.constant 0 : index
    %43 = vector.load %arg17[%c48, %c0_40] : memref<128x256xf32, #tpu.memory_space<vmem>>, vector<8x16xf32>
    tpu.vector_store %arg17[%c48, %c0_40], %42 {strides = array<i32>} : memref<128x256xf32, #tpu.memory_space<vmem>>, vector<8x16xf32>,
    %c7 = arith.constant 7 : index
    %c0_41 = arith.constant 0 : index
    %c0_42 = arith.constant 0 : index
    %44 = vector.load %arg3[%c7, %c0_41, %c0_42] : memref<9x16x16xbf16, #tpu.memory_space<vmem>>, vector<1x16x16xbf16>
    %45 = vector.shape_cast %44 : vector<1x16x16xbf16> to vector<16x16xbf16>
    %cst_43 = arith.constant dense<0.000000e+00> : vector<8x16xf32>
    %46 = tpu.matmul %15, %45, %cst_43 {dimension_numbers = #tpu.dot_dimension_numbers<[1], [0], [0], [1], [0, 0, 1, 1], [], []>} : vector<8x16xbf16>, vector<16x16xbf16>, vector<8x16xf32> -> vector<8x16xf32>
    %c56 = arith.constant 56 : index
    %c0_44 = arith.constant 0 : index
    %47 = vector.load %arg17[%c56, %c0_44] : memref<128x256xf32, #tpu.memory_space<vmem>>, vector<8x16xf32>
    tpu.vector_store %arg17[%c56, %c0_44], %46 {strides = array<i32>} : memref<128x256xf32, #tpu.memory_space<vmem>>, vector<8x16xf32>,
    %c8_45 = arith.constant 8 : index
    %c0_46 = arith.constant 0 : index
    %c0_47 = arith.constant 0 : index
    %48 = vector.load %arg3[%c8_45, %c0_46, %c0_47] : memref<9x16x16xbf16, #tpu.memory_space<vmem>>, vector<1x16x16xbf16>
    %49 = vector.shape_cast %48 : vector<1x16x16xbf16> to vector<16x16xbf16>
    %cst_48 = arith.constant dense<0.000000e+00> : vector<8x16xf32>
    %50 = tpu.matmul %15, %49, %cst_48 {dimension_numbers = #tpu.dot_dimension_numbers<[1], [0], [0], [1], [0, 0, 1, 1], [], []>} : vector<8x16xbf16>, vector<16x16xbf16>, vector<8x16xf32> -> vector<8x16xf32>
    %c64 = arith.constant 64 : index
    %c0_49 = arith.constant 0 : index
    %51 = vector.load %arg17[%c64, %c0_49] : memref<128x256xf32, #tpu.memory_space<vmem>>, vector<8x16xf32>
    tpu.vector_store %arg17[%c64, %c0_49], %50 {strides = array<i32>} : memref<128x256xf32, #tpu.memory_space<vmem>>, vector<8x16xf32>,
    %c0_50 = arith.constant 0 : index
    %c0_51 = arith.constant 0 : index
    %52 = vector.load %arg4[%c0_50, %c0_51] : memref<8x72xbf16, #tpu.memory_space<vmem>>, vector<8x72xbf16>
    %c0_52 = arith.constant 0 : index
    %c0_53 = arith.constant 0 : index
    %53 = vector.load %arg17[%c0_52, %c0_53] : memref<128x256xf32, #tpu.memory_space<vmem>>, vector<72x16xf32>
    %54 = arith.truncf %53 : vector<72x16xf32> to vector<72x16xbf16>
    %cst_54 = arith.constant dense<0.000000e+00> : vector<8x16xf32>
    %55 = tpu.matmul %52, %54, %cst_54 {dimension_numbers = #tpu.dot_dimension_numbers<[1], [0], [0], [1], [0, 0, 1, 1], [], []>} : vector<8x72xbf16>, vector<72x16xbf16>, vector<8x16xf32> -> vector<8x16xf32>
    %c1_55 = arith.constant 1 : index
    %c0_56 = arith.constant 0 : index
    %c0_57 = arith.constant 0 : index
    %56 = vector.load %arg14[%c1_55, %c0_56, %c0_57] : memref<7x8x1xf32, #tpu.memory_space<vmem>>, vector<1x8x1xf32>
    %57 = vector.shape_cast %56 : vector<1x8x1xf32> to vector<8x1xf32>
    %58 = vector.broadcast %57 : vector<8x1xf32> to vector<8x16xf32>
    %59 = arith.mulf %55, %58 : vector<8x16xf32>
    %c1_58 = arith.constant 1 : index
    %c0_59 = arith.constant 0 : index
    %c0_60 = arith.constant 0 : index
    %60 = vector.load %arg15[%c1_58, %c0_59, %c0_60] : memref<7x8x1xf32, #tpu.memory_space<vmem>>, vector<1x8x1xf32>
    %61 = vector.shape_cast %60 : vector<1x8x1xf32> to vector<8x1xf32>
    %62 = vector.broadcast %61 : vector<8x1xf32> to vector<8x16xf32>
    %63 = arith.addf %59, %62 : vector<8x16xf32>
    %cst_61 = arith.constant 0.000000e+00 : f32
    %64 = vector.broadcast %cst_61 : f32 to vector<8x16xf32>
    %65 = arith.maximumf %63, %64 : vector<8x16xf32>
    %c0_62 = arith.constant 0 : index
    %c0_63 = arith.constant 0 : index
    %66 = vector.load %arg5[%c0_62, %c0_63] : memref<8x8xbf16, #tpu.memory_space<vmem>>, vector<8x8xbf16>
    %67 = arith.truncf %65 : vector<8x16xf32> to vector<8x16xbf16>
    %cst_64 = arith.constant dense<0.000000e+00> : vector<8x16xf32>
    %68 = tpu.matmul %66, %67, %cst_64 {dimension_numbers = #tpu.dot_dimension_numbers<[1], [0], [0], [1], [0, 0, 1, 1], [], []>} : vector<8x8xbf16>, vector<8x16xbf16>, vector<8x16xf32> -> vector<8x16xf32>
    %c2_65 = arith.constant 2 : index
    %c0_66 = arith.constant 0 : index
    %c0_67 = arith.constant 0 : index
    %69 = vector.load %arg14[%c2_65, %c0_66, %c0_67] : memref<7x8x1xf32, #tpu.memory_space<vmem>>, vector<1x8x1xf32>
    %70 = vector.shape_cast %69 : vector<1x8x1xf32> to vector<8x1xf32>
    %71 = vector.broadcast %70 : vector<8x1xf32> to vector<8x16xf32>
    %72 = arith.mulf %68, %71 : vector<8x16xf32>
    %c2_68 = arith.constant 2 : index
    %c0_69 = arith.constant 0 : index
    %c0_70 = arith.constant 0 : index
    %73 = vector.load %arg15[%c2_68, %c0_69, %c0_70] : memref<7x8x1xf32, #tpu.memory_space<vmem>>, vector<1x8x1xf32>
    %74 = vector.shape_cast %73 : vector<1x8x1xf32> to vector<8x1xf32>
    %75 = vector.broadcast %74 : vector<8x1xf32> to vector<8x16xf32>
    %76 = arith.addf %72, %75 : vector<8x16xf32>
    %77 = arith.addf %12, %76 : vector<8x16xf32>
    %cst_71 = arith.constant 0.000000e+00 : f32
    %78 = vector.broadcast %cst_71 : f32 to vector<8x16xf32>
    %79 = arith.maximumf %77, %78 : vector<8x16xf32>
    %80 = arith.truncf %79 : vector<8x16xf32> to vector<8x16xbf16>
    %c0_72 = arith.constant 0 : index
    %c0_73 = arith.constant 0 : index
    %c0_74 = arith.constant 0 : index
    %81 = vector.load %arg3[%c0_72, %c0_73, %c0_74] : memref<9x16x16xbf16, #tpu.memory_space<vmem>>, vector<1x16x16xbf16>
    %82 = vector.shape_cast %81 : vector<1x16x16xbf16> to vector<16x16xbf16>
    %cst_75 = arith.constant dense<0.000000e+00> : vector<8x16xf32>
    %83 = tpu.matmul %80, %82, %cst_75 {dimension_numbers = #tpu.dot_dimension_numbers<[1], [0], [0], [1], [0, 0, 1, 1], [], []>} : vector<8x16xbf16>, vector<16x16xbf16>, vector<8x16xf32> -> vector<8x16xf32>
    %c0_76 = arith.constant 0 : index
    %c0_77 = arith.constant 0 : index
    %84 = vector.load %arg17[%c0_76, %c0_77] : memref<128x256xf32, #tpu.memory_space<vmem>>, vector<8x16xf32>
    tpu.vector_store %arg17[%c0_76, %c0_77], %83 {strides = array<i32>} : memref<128x256xf32, #tpu.memory_space<vmem>>, vector<8x16xf32>,
    %c1_78 = arith.constant 1 : index
    %c0_79 = arith.constant 0 : index
    %c0_80 = arith.constant 0 : index
    %85 = vector.load %arg3[%c1_78, %c0_79, %c0_80] : memref<9x16x16xbf16, #tpu.memory_space<vmem>>, vector<1x16x16xbf16>
    %86 = vector.shape_cast %85 : vector<1x16x16xbf16> to vector<16x16xbf16>
    %cst_81 = arith.constant dense<0.000000e+00> : vector<8x16xf32>
    %87 = tpu.matmul %80, %86, %cst_81 {dimension_numbers = #tpu.dot_dimension_numbers<[1], [0], [0], [1], [0, 0, 1, 1], [], []>} : vector<8x16xbf16>, vector<16x16xbf16>, vector<8x16xf32> -> vector<8x16xf32>
    %c8_82 = arith.constant 8 : index
    %c0_83 = arith.constant 0 : index
    %88 = vector.load %arg17[%c8_82, %c0_83] : memref<128x256xf32, #tpu.memory_space<vmem>>, vector<8x16xf32>
    tpu.vector_store %arg17[%c8_82, %c0_83], %87 {strides = array<i32>} : memref<128x256xf32, #tpu.memory_space<vmem>>, vector<8x16xf32>,
    %c2_84 = arith.constant 2 : index
    %c0_85 = arith.constant 0 : index
    %c0_86 = arith.constant 0 : index
    %89 = vector.load %arg3[%c2_84, %c0_85, %c0_86] : memref<9x16x16xbf16, #tpu.memory_space<vmem>>, vector<1x16x16xbf16>
    %90 = vector.shape_cast %89 : vector<1x16x16xbf16> to vector<16x16xbf16>
    %cst_87 = arith.constant dense<0.000000e+00> : vector<8x16xf32>
    %91 = tpu.matmul %80, %90, %cst_87 {dimension_numbers = #tpu.dot_dimension_numbers<[1], [0], [0], [1], [0, 0, 1, 1], [], []>} : vector<8x16xbf16>, vector<16x16xbf16>, vector<8x16xf32> -> vector<8x16xf32>
    %c16_88 = arith.constant 16 : index
    %c0_89 = arith.constant 0 : index
    %92 = vector.load %arg17[%c16_88, %c0_89] : memref<128x256xf32, #tpu.memory_space<vmem>>, vector<8x16xf32>
    tpu.vector_store %arg17[%c16_88, %c0_89], %91 {strides = array<i32>} : memref<128x256xf32, #tpu.memory_space<vmem>>, vector<8x16xf32>,
    %c3_90 = arith.constant 3 : index
    %c0_91 = arith.constant 0 : index
    %c0_92 = arith.constant 0 : index
    %93 = vector.load %arg3[%c3_90, %c0_91, %c0_92] : memref<9x16x16xbf16, #tpu.memory_space<vmem>>, vector<1x16x16xbf16>
    %94 = vector.shape_cast %93 : vector<1x16x16xbf16> to vector<16x16xbf16>
    %cst_93 = arith.constant dense<0.000000e+00> : vector<8x16xf32>
    %95 = tpu.matmul %80, %94, %cst_93 {dimension_numbers = #tpu.dot_dimension_numbers<[1], [0], [0], [1], [0, 0, 1, 1], [], []>} : vector<8x16xbf16>, vector<16x16xbf16>, vector<8x16xf32> -> vector<8x16xf32>
    %c24_94 = arith.constant 24 : index
    %c0_95 = arith.constant 0 : index
    %96 = vector.load %arg17[%c24_94, %c0_95] : memref<128x256xf32, #tpu.memory_space<vmem>>, vector<8x16xf32>
    tpu.vector_store %arg17[%c24_94, %c0_95], %95 {strides = array<i32>} : memref<128x256xf32, #tpu.memory_space<vmem>>, vector<8x16xf32>,
    %c4_96 = arith.constant 4 : index
    %c0_97 = arith.constant 0 : index
    %c0_98 = arith.constant 0 : index
    %97 = vector.load %arg3[%c4_96, %c0_97, %c0_98] : memref<9x16x16xbf16, #tpu.memory_space<vmem>>, vector<1x16x16xbf16>
    %98 = vector.shape_cast %97 : vector<1x16x16xbf16> to vector<16x16xbf16>
    %cst_99 = arith.constant dense<0.000000e+00> : vector<8x16xf32>
    %99 = tpu.matmul %80, %98, %cst_99 {dimension_numbers = #tpu.dot_dimension_numbers<[1], [0], [0], [1], [0, 0, 1, 1], [], []>} : vector<8x16xbf16>, vector<16x16xbf16>, vector<8x16xf32> -> vector<8x16xf32>
    %c32_100 = arith.constant 32 : index
    %c0_101 = arith.constant 0 : index
    %100 = vector.load %arg17[%c32_100, %c0_101] : memref<128x256xf32, #tpu.memory_space<vmem>>, vector<8x16xf32>
    tpu.vector_store %arg17[%c32_100, %c0_101], %99 {strides = array<i32>} : memref<128x256xf32, #tpu.memory_space<vmem>>, vector<8x16xf32>,
    %c5_102 = arith.constant 5 : index
    %c0_103 = arith.constant 0 : index
    %c0_104 = arith.constant 0 : index
    %101 = vector.load %arg3[%c5_102, %c0_103, %c0_104] : memref<9x16x16xbf16, #tpu.memory_space<vmem>>, vector<1x16x16xbf16>
    %102 = vector.shape_cast %101 : vector<1x16x16xbf16> to vector<16x16xbf16>
    %cst_105 = arith.constant dense<0.000000e+00> : vector<8x16xf32>
    %103 = tpu.matmul %80, %102, %cst_105 {dimension_numbers = #tpu.dot_dimension_numbers<[1], [0], [0], [1], [0, 0, 1, 1], [], []>} : vector<8x16xbf16>, vector<16x16xbf16>, vector<8x16xf32> -> vector<8x16xf32>
    %c40_106 = arith.constant 40 : index
    %c0_107 = arith.constant 0 : index
    %104 = vector.load %arg17[%c40_106, %c0_107] : memref<128x256xf32, #tpu.memory_space<vmem>>, vector<8x16xf32>
    tpu.vector_store %arg17[%c40_106, %c0_107], %103 {strides = array<i32>} : memref<128x256xf32, #tpu.memory_space<vmem>>, vector<8x16xf32>,
    %c6_108 = arith.constant 6 : index
    %c0_109 = arith.constant 0 : index
    %c0_110 = arith.constant 0 : index
    %105 = vector.load %arg3[%c6_108, %c0_109, %c0_110] : memref<9x16x16xbf16, #tpu.memory_space<vmem>>, vector<1x16x16xbf16>
    %106 = vector.shape_cast %105 : vector<1x16x16xbf16> to vector<16x16xbf16>
    %cst_111 = arith.constant dense<0.000000e+00> : vector<8x16xf32>
    %107 = tpu.matmul %80, %106, %cst_111 {dimension_numbers = #tpu.dot_dimension_numbers<[1], [0], [0], [1], [0, 0, 1, 1], [], []>} : vector<8x16xbf16>, vector<16x16xbf16>, vector<8x16xf32> -> vector<8x16xf32>
    %c48_112 = arith.constant 48 : index
    %c0_113 = arith.constant 0 : index
    %108 = vector.load %arg17[%c48_112, %c0_113] : memref<128x256xf32, #tpu.memory_space<vmem>>, vector<8x16xf32>
    tpu.vector_store %arg17[%c48_112, %c0_113], %107 {strides = array<i32>} : memref<128x256xf32, #tpu.memory_space<vmem>>, vector<8x16xf32>,
    %c7_114 = arith.constant 7 : index
    %c0_115 = arith.constant 0 : index
    %c0_116 = arith.constant 0 : index
    %109 = vector.load %arg3[%c7_114, %c0_115, %c0_116] : memref<9x16x16xbf16, #tpu.memory_space<vmem>>, vector<1x16x16xbf16>
    %110 = vector.shape_cast %109 : vector<1x16x16xbf16> to vector<16x16xbf16>
    %cst_117 = arith.constant dense<0.000000e+00> : vector<8x16xf32>
    %111 = tpu.matmul %80, %110, %cst_117 {dimension_numbers = #tpu.dot_dimension_numbers<[1], [0], [0], [1], [0, 0, 1, 1], [], []>} : vector<8x16xbf16>, vector<16x16xbf16>, vector<8x16xf32> -> vector<8x16xf32>
    %c56_118 = arith.constant 56 : index
    %c0_119 = arith.constant 0 : index
    %112 = vector.load %arg17[%c56_118, %c0_119] : memref<128x256xf32, #tpu.memory_space<vmem>>, vector<8x16xf32>
    tpu.vector_store %arg17[%c56_118, %c0_119], %111 {strides = array<i32>} : memref<128x256xf32, #tpu.memory_space<vmem>>, vector<8x16xf32>,
    %c8_120 = arith.constant 8 : index
    %c0_121 = arith.constant 0 : index
    %c0_122 = arith.constant 0 : index
    %113 = vector.load %arg3[%c8_120, %c0_121, %c0_122] : memref<9x16x16xbf16, #tpu.memory_space<vmem>>, vector<1x16x16xbf16>
    %114 = vector.shape_cast %113 : vector<1x16x16xbf16> to vector<16x16xbf16>
    %cst_123 = arith.constant dense<0.000000e+00> : vector<8x16xf32>
    %115 = tpu.matmul %80, %114, %cst_123 {dimension_numbers = #tpu.dot_dimension_numbers<[1], [0], [0], [1], [0, 0, 1, 1], [], []>} : vector<8x16xbf16>, vector<16x16xbf16>, vector<8x16xf32> -> vector<8x16xf32>
    %c64_124 = arith.constant 64 : index
    %c0_125 = arith.constant 0 : index
    %116 = vector.load %arg17[%c64_124, %c0_125] : memref<128x256xf32, #tpu.memory_space<vmem>>, vector<8x16xf32>
    tpu.vector_store %arg17[%c64_124, %c0_125], %115 {strides = array<i32>} : memref<128x256xf32, #tpu.memory_space<vmem>>, vector<8x16xf32>,
    %c0_126 = arith.constant 0 : index
    %c0_127 = arith.constant 0 : index
    %117 = vector.load %arg6[%c0_126, %c0_127] : memref<8x72xbf16, #tpu.memory_space<vmem>>, vector<8x72xbf16>
    %c0_128 = arith.constant 0 : index
    %c0_129 = arith.constant 0 : index
    %118 = vector.load %arg17[%c0_128, %c0_129] : memref<128x256xf32, #tpu.memory_space<vmem>>, vector<72x16xf32>
    %119 = arith.truncf %118 : vector<72x16xf32> to vector<72x16xbf16>
    %cst_130 = arith.constant dense<0.000000e+00> : vector<8x16xf32>
    %120 = tpu.matmul %117, %119, %cst_130 {dimension_numbers = #tpu.dot_dimension_numbers<[1], [0], [0], [1], [0, 0, 1, 1], [], []>} : vector<8x72xbf16>, vector<72x16xbf16>, vector<8x16xf32> -> vector<8x16xf32>
    %c3_131 = arith.constant 3 : index
    %c0_132 = arith.constant 0 : index
    %c0_133 = arith.constant 0 : index
    %121 = vector.load %arg14[%c3_131, %c0_132, %c0_133] : memref<7x8x1xf32, #tpu.memory_space<vmem>>, vector<1x8x1xf32>
    %122 = vector.shape_cast %121 : vector<1x8x1xf32> to vector<8x1xf32>
    %123 = vector.broadcast %122 : vector<8x1xf32> to vector<8x16xf32>
    %124 = arith.mulf %120, %123 : vector<8x16xf32>
    %c3_134 = arith.constant 3 : index
    %c0_135 = arith.constant 0 : index
    %c0_136 = arith.constant 0 : index
    %125 = vector.load %arg15[%c3_134, %c0_135, %c0_136] : memref<7x8x1xf32, #tpu.memory_space<vmem>>, vector<1x8x1xf32>
    %126 = vector.shape_cast %125 : vector<1x8x1xf32> to vector<8x1xf32>
    %127 = vector.broadcast %126 : vector<8x1xf32> to vector<8x16xf32>
    %128 = arith.addf %124, %127 : vector<8x16xf32>
    %cst_137 = arith.constant 0.000000e+00 : f32
    %129 = vector.broadcast %cst_137 : f32 to vector<8x16xf32>
    %130 = arith.maximumf %128, %129 : vector<8x16xf32>
    %c0_138 = arith.constant 0 : index
    %c0_139 = arith.constant 0 : index
    %131 = vector.load %arg7[%c0_138, %c0_139] : memref<8x8xbf16, #tpu.memory_space<vmem>>, vector<8x8xbf16>
    %132 = arith.truncf %130 : vector<8x16xf32> to vector<8x16xbf16>
    %cst_140 = arith.constant dense<0.000000e+00> : vector<8x16xf32>
    %133 = tpu.matmul %131, %132, %cst_140 {dimension_numbers = #tpu.dot_dimension_numbers<[1], [0], [0], [1], [0, 0, 1, 1], [], []>} : vector<8x8xbf16>, vector<8x16xbf16>, vector<8x16xf32> -> vector<8x16xf32>
    %c4_141 = arith.constant 4 : index
    %c0_142 = arith.constant 0 : index
    %c0_143 = arith.constant 0 : index
    %134 = vector.load %arg14[%c4_141, %c0_142, %c0_143] : memref<7x8x1xf32, #tpu.memory_space<vmem>>, vector<1x8x1xf32>
    %135 = vector.shape_cast %134 : vector<1x8x1xf32> to vector<8x1xf32>
    %136 = vector.broadcast %135 : vector<8x1xf32> to vector<8x16xf32>
    %137 = arith.mulf %133, %136 : vector<8x16xf32>
    %c4_144 = arith.constant 4 : index
    %c0_145 = arith.constant 0 : index
    %c0_146 = arith.constant 0 : index
    %138 = vector.load %arg15[%c4_144, %c0_145, %c0_146] : memref<7x8x1xf32, #tpu.memory_space<vmem>>, vector<1x8x1xf32>
    %139 = vector.shape_cast %138 : vector<1x8x1xf32> to vector<8x1xf32>
    %140 = vector.broadcast %139 : vector<8x1xf32> to vector<8x16xf32>
    %141 = arith.addf %137, %140 : vector<8x16xf32>
    %142 = arith.addf %77, %141 : vector<8x16xf32>
    %143 = arith.truncf %142 : vector<8x16xf32> to vector<8x16xbf16>
    %c0_147 = arith.constant 0 : index
    %c0_148 = arith.constant 0 : index
    %c0_149 = arith.constant 0 : index
    %144 = vector.load %arg8[%c0_147, %c0_148, %c0_149] : memref<16x16x64xbf16, #tpu.memory_space<vmem>>, vector<1x16x64xbf16>
    %145 = vector.shape_cast %144 : vector<1x16x64xbf16> to vector<16x64xbf16>
    %cst_150 = arith.constant dense<0.000000e+00> : vector<8x64xf32>
    %146 = tpu.matmul %143, %145, %cst_150 {dimension_numbers = #tpu.dot_dimension_numbers<[1], [0], [0], [1], [0, 0, 1, 1], [], []>} : vector<8x16xbf16>, vector<16x64xbf16>, vector<8x64xf32> -> vector<8x64xf32>
    %c0_151 = arith.constant 0 : index
    %c0_152 = arith.constant 0 : index
    %147 = vector.load %arg17[%c0_151, %c0_152] : memref<128x256xf32, #tpu.memory_space<vmem>>, vector<8x64xf32>
    tpu.vector_store %arg17[%c0_151, %c0_152], %146 {strides = array<i32>} : memref<128x256xf32, #tpu.memory_space<vmem>>, vector<8x64xf32>,
    %c1_153 = arith.constant 1 : index
    %c0_154 = arith.constant 0 : index
    %c0_155 = arith.constant 0 : index
    %148 = vector.load %arg8[%c1_153, %c0_154, %c0_155] : memref<16x16x64xbf16, #tpu.memory_space<vmem>>, vector<1x16x64xbf16>
    %149 = vector.shape_cast %148 : vector<1x16x64xbf16> to vector<16x64xbf16>
    %cst_156 = arith.constant dense<0.000000e+00> : vector<8x64xf32>
    %150 = tpu.matmul %143, %149, %cst_156 {dimension_numbers = #tpu.dot_dimension_numbers<[1], [0], [0], [1], [0, 0, 1, 1], [], []>} : vector<8x16xbf16>, vector<16x64xbf16>, vector<8x64xf32> -> vector<8x64xf32>
    %c8_157 = arith.constant 8 : index
    %c0_158 = arith.constant 0 : index
    %151 = vector.load %arg17[%c8_157, %c0_158] : memref<128x256xf32, #tpu.memory_space<vmem>>, vector<8x64xf32>
    tpu.vector_store %arg17[%c8_157, %c0_158], %150 {strides = array<i32>} : memref<128x256xf32, #tpu.memory_space<vmem>>, vector<8x64xf32>,
    %c2_159 = arith.constant 2 : index
    %c0_160 = arith.constant 0 : index
    %c0_161 = arith.constant 0 : index
    %152 = vector.load %arg8[%c2_159, %c0_160, %c0_161] : memref<16x16x64xbf16, #tpu.memory_space<vmem>>, vector<1x16x64xbf16>
    %153 = vector.shape_cast %152 : vector<1x16x64xbf16> to vector<16x64xbf16>
    %cst_162 = arith.constant dense<0.000000e+00> : vector<8x64xf32>
    %154 = tpu.matmul %143, %153, %cst_162 {dimension_numbers = #tpu.dot_dimension_numbers<[1], [0], [0], [1], [0, 0, 1, 1], [], []>} : vector<8x16xbf16>, vector<16x64xbf16>, vector<8x64xf32> -> vector<8x64xf32>
    %c16_163 = arith.constant 16 : index
    %c0_164 = arith.constant 0 : index
    %155 = vector.load %arg17[%c16_163, %c0_164] : memref<128x256xf32, #tpu.memory_space<vmem>>, vector<8x64xf32>
    tpu.vector_store %arg17[%c16_163, %c0_164], %154 {strides = array<i32>} : memref<128x256xf32, #tpu.memory_space<vmem>>, vector<8x64xf32>,
    %c3_165 = arith.constant 3 : index
    %c0_166 = arith.constant 0 : index
    %c0_167 = arith.constant 0 : index
    %156 = vector.load %arg8[%c3_165, %c0_166, %c0_167] : memref<16x16x64xbf16, #tpu.memory_space<vmem>>, vector<1x16x64xbf16>
    %157 = vector.shape_cast %156 : vector<1x16x64xbf16> to vector<16x64xbf16>
    %cst_168 = arith.constant dense<0.000000e+00> : vector<8x64xf32>
    %158 = tpu.matmul %143, %157, %cst_168 {dimension_numbers = #tpu.dot_dimension_numbers<[1], [0], [0], [1], [0, 0, 1, 1], [], []>} : vector<8x16xbf16>, vector<16x64xbf16>, vector<8x64xf32> -> vector<8x64xf32>
    %c24_169 = arith.constant 24 : index
    %c0_170 = arith.constant 0 : index
    %159 = vector.load %arg17[%c24_169, %c0_170] : memref<128x256xf32, #tpu.memory_space<vmem>>, vector<8x64xf32>
    tpu.vector_store %arg17[%c24_169, %c0_170], %158 {strides = array<i32>} : memref<128x256xf32, #tpu.memory_space<vmem>>, vector<8x64xf32>,
    %c4_171 = arith.constant 4 : index
    %c0_172 = arith.constant 0 : index
    %c0_173 = arith.constant 0 : index
    %160 = vector.load %arg8[%c4_171, %c0_172, %c0_173] : memref<16x16x64xbf16, #tpu.memory_space<vmem>>, vector<1x16x64xbf16>
    %161 = vector.shape_cast %160 : vector<1x16x64xbf16> to vector<16x64xbf16>
    %cst_174 = arith.constant dense<0.000000e+00> : vector<8x64xf32>
    %162 = tpu.matmul %143, %161, %cst_174 {dimension_numbers = #tpu.dot_dimension_numbers<[1], [0], [0], [1], [0, 0, 1, 1], [], []>} : vector<8x16xbf16>, vector<16x64xbf16>, vector<8x64xf32> -> vector<8x64xf32>
    %c32_175 = arith.constant 32 : index
    %c0_176 = arith.constant 0 : index
    %163 = vector.load %arg17[%c32_175, %c0_176] : memref<128x256xf32, #tpu.memory_space<vmem>>, vector<8x64xf32>
    tpu.vector_store %arg17[%c32_175, %c0_176], %162 {strides = array<i32>} : memref<128x256xf32, #tpu.memory_space<vmem>>, vector<8x64xf32>,
    %c5_177 = arith.constant 5 : index
    %c0_178 = arith.constant 0 : index
    %c0_179 = arith.constant 0 : index
    %164 = vector.load %arg8[%c5_177, %c0_178, %c0_179] : memref<16x16x64xbf16, #tpu.memory_space<vmem>>, vector<1x16x64xbf16>
    %165 = vector.shape_cast %164 : vector<1x16x64xbf16> to vector<16x64xbf16>
    %cst_180 = arith.constant dense<0.000000e+00> : vector<8x64xf32>
    %166 = tpu.matmul %143, %165, %cst_180 {dimension_numbers = #tpu.dot_dimension_numbers<[1], [0], [0], [1], [0, 0, 1, 1], [], []>} : vector<8x16xbf16>, vector<16x64xbf16>, vector<8x64xf32> -> vector<8x64xf32>
    %c40_181 = arith.constant 40 : index
    %c0_182 = arith.constant 0 : index
    %167 = vector.load %arg17[%c40_181, %c0_182] : memref<128x256xf32, #tpu.memory_space<vmem>>, vector<8x64xf32>
    tpu.vector_store %arg17[%c40_181, %c0_182], %166 {strides = array<i32>} : memref<128x256xf32, #tpu.memory_space<vmem>>, vector<8x64xf32>,
    %c6_183 = arith.constant 6 : index
    %c0_184 = arith.constant 0 : index
    %c0_185 = arith.constant 0 : index
    %168 = vector.load %arg8[%c6_183, %c0_184, %c0_185] : memref<16x16x64xbf16, #tpu.memory_space<vmem>>, vector<1x16x64xbf16>
    %169 = vector.shape_cast %168 : vector<1x16x64xbf16> to vector<16x64xbf16>
    %cst_186 = arith.constant dense<0.000000e+00> : vector<8x64xf32>
    %170 = tpu.matmul %143, %169, %cst_186 {dimension_numbers = #tpu.dot_dimension_numbers<[1], [0], [0], [1], [0, 0, 1, 1], [], []>} : vector<8x16xbf16>, vector<16x64xbf16>, vector<8x64xf32> -> vector<8x64xf32>
    %c48_187 = arith.constant 48 : index
    %c0_188 = arith.constant 0 : index
    %171 = vector.load %arg17[%c48_187, %c0_188] : memref<128x256xf32, #tpu.memory_space<vmem>>, vector<8x64xf32>
    tpu.vector_store %arg17[%c48_187, %c0_188], %170 {strides = array<i32>} : memref<128x256xf32, #tpu.memory_space<vmem>>, vector<8x64xf32>,
    %c7_189 = arith.constant 7 : index
    %c0_190 = arith.constant 0 : index
    %c0_191 = arith.constant 0 : index
    %172 = vector.load %arg8[%c7_189, %c0_190, %c0_191] : memref<16x16x64xbf16, #tpu.memory_space<vmem>>, vector<1x16x64xbf16>
    %173 = vector.shape_cast %172 : vector<1x16x64xbf16> to vector<16x64xbf16>
    %cst_192 = arith.constant dense<0.000000e+00> : vector<8x64xf32>
    %174 = tpu.matmul %143, %173, %cst_192 {dimension_numbers = #tpu.dot_dimension_numbers<[1], [0], [0], [1], [0, 0, 1, 1], [], []>} : vector<8x16xbf16>, vector<16x64xbf16>, vector<8x64xf32> -> vector<8x64xf32>
    %c56_193 = arith.constant 56 : index
    %c0_194 = arith.constant 0 : index
    %175 = vector.load %arg17[%c56_193, %c0_194] : memref<128x256xf32, #tpu.memory_space<vmem>>, vector<8x64xf32>
    tpu.vector_store %arg17[%c56_193, %c0_194], %174 {strides = array<i32>} : memref<128x256xf32, #tpu.memory_space<vmem>>, vector<8x64xf32>,
    %c8_195 = arith.constant 8 : index
    %c0_196 = arith.constant 0 : index
    %c0_197 = arith.constant 0 : index
    %176 = vector.load %arg8[%c8_195, %c0_196, %c0_197] : memref<16x16x64xbf16, #tpu.memory_space<vmem>>, vector<1x16x64xbf16>
    %177 = vector.shape_cast %176 : vector<1x16x64xbf16> to vector<16x64xbf16>
    %cst_198 = arith.constant dense<0.000000e+00> : vector<8x64xf32>
    %178 = tpu.matmul %143, %177, %cst_198 {dimension_numbers = #tpu.dot_dimension_numbers<[1], [0], [0], [1], [0, 0, 1, 1], [], []>} : vector<8x16xbf16>, vector<16x64xbf16>, vector<8x64xf32> -> vector<8x64xf32>
    %c64_199 = arith.constant 64 : index
    %c0_200 = arith.constant 0 : index
    %179 = vector.load %arg17[%c64_199, %c0_200] : memref<128x256xf32, #tpu.memory_space<vmem>>, vector<8x64xf32>
    tpu.vector_store %arg17[%c64_199, %c0_200], %178 {strides = array<i32>} : memref<128x256xf32, #tpu.memory_space<vmem>>, vector<8x64xf32>,
    %c9 = arith.constant 9 : index
    %c0_201 = arith.constant 0 : index
    %c0_202 = arith.constant 0 : index
    %180 = vector.load %arg8[%c9, %c0_201, %c0_202] : memref<16x16x64xbf16, #tpu.memory_space<vmem>>, vector<1x16x64xbf16>
    %181 = vector.shape_cast %180 : vector<1x16x64xbf16> to vector<16x64xbf16>
    %cst_203 = arith.constant dense<0.000000e+00> : vector<8x64xf32>
    %182 = tpu.matmul %143, %181, %cst_203 {dimension_numbers = #tpu.dot_dimension_numbers<[1], [0], [0], [1], [0, 0, 1, 1], [], []>} : vector<8x16xbf16>, vector<16x64xbf16>, vector<8x64xf32> -> vector<8x64xf32>
    %c72 = arith.constant 72 : index
    %c0_204 = arith.constant 0 : index
    %183 = vector.load %arg17[%c72, %c0_204] : memref<128x256xf32, #tpu.memory_space<vmem>>, vector<8x64xf32>
    tpu.vector_store %arg17[%c72, %c0_204], %182 {strides = array<i32>} : memref<128x256xf32, #tpu.memory_space<vmem>>, vector<8x64xf32>,
    %c10 = arith.constant 10 : index
    %c0_205 = arith.constant 0 : index
    %c0_206 = arith.constant 0 : index
    %184 = vector.load %arg8[%c10, %c0_205, %c0_206] : memref<16x16x64xbf16, #tpu.memory_space<vmem>>, vector<1x16x64xbf16>
    %185 = vector.shape_cast %184 : vector<1x16x64xbf16> to vector<16x64xbf16>
    %cst_207 = arith.constant dense<0.000000e+00> : vector<8x64xf32>
    %186 = tpu.matmul %143, %185, %cst_207 {dimension_numbers = #tpu.dot_dimension_numbers<[1], [0], [0], [1], [0, 0, 1, 1], [], []>} : vector<8x16xbf16>, vector<16x64xbf16>, vector<8x64xf32> -> vector<8x64xf32>
    %c80 = arith.constant 80 : index
    %c0_208 = arith.constant 0 : index
    %187 = vector.load %arg17[%c80, %c0_208] : memref<128x256xf32, #tpu.memory_space<vmem>>, vector<8x64xf32>
    tpu.vector_store %arg17[%c80, %c0_208], %186 {strides = array<i32>} : memref<128x256xf32, #tpu.memory_space<vmem>>, vector<8x64xf32>,
    %c11 = arith.constant 11 : index
    %c0_209 = arith.constant 0 : index
    %c0_210 = arith.constant 0 : index
    %188 = vector.load %arg8[%c11, %c0_209, %c0_210] : memref<16x16x64xbf16, #tpu.memory_space<vmem>>, vector<1x16x64xbf16>
    %189 = vector.shape_cast %188 : vector<1x16x64xbf16> to vector<16x64xbf16>
    %cst_211 = arith.constant dense<0.000000e+00> : vector<8x64xf32>
    %190 = tpu.matmul %143, %189, %cst_211 {dimension_numbers = #tpu.dot_dimension_numbers<[1], [0], [0], [1], [0, 0, 1, 1], [], []>} : vector<8x16xbf16>, vector<16x64xbf16>, vector<8x64xf32> -> vector<8x64xf32>
    %c88 = arith.constant 88 : index
    %c0_212 = arith.constant 0 : index
    %191 = vector.load %arg17[%c88, %c0_212] : memref<128x256xf32, #tpu.memory_space<vmem>>, vector<8x64xf32>
    tpu.vector_store %arg17[%c88, %c0_212], %190 {strides = array<i32>} : memref<128x256xf32, #tpu.memory_space<vmem>>, vector<8x64xf32>,
    %c12 = arith.constant 12 : index
    %c0_213 = arith.constant 0 : index
    %c0_214 = arith.constant 0 : index
    %192 = vector.load %arg8[%c12, %c0_213, %c0_214] : memref<16x16x64xbf16, #tpu.memory_space<vmem>>, vector<1x16x64xbf16>
    %193 = vector.shape_cast %192 : vector<1x16x64xbf16> to vector<16x64xbf16>
    %cst_215 = arith.constant dense<0.000000e+00> : vector<8x64xf32>
    %194 = tpu.matmul %143, %193, %cst_215 {dimension_numbers = #tpu.dot_dimension_numbers<[1], [0], [0], [1], [0, 0, 1, 1], [], []>} : vector<8x16xbf16>, vector<16x64xbf16>, vector<8x64xf32> -> vector<8x64xf32>
    %c96 = arith.constant 96 : index
    %c0_216 = arith.constant 0 : index
    %195 = vector.load %arg17[%c96, %c0_216] : memref<128x256xf32, #tpu.memory_space<vmem>>, vector<8x64xf32>
    tpu.vector_store %arg17[%c96, %c0_216], %194 {strides = array<i32>} : memref<128x256xf32, #tpu.memory_space<vmem>>, vector<8x64xf32>,
    %c13 = arith.constant 13 : index
    %c0_217 = arith.constant 0 : index
    %c0_218 = arith.constant 0 : index
    %196 = vector.load %arg8[%c13, %c0_217, %c0_218] : memref<16x16x64xbf16, #tpu.memory_space<vmem>>, vector<1x16x64xbf16>
    %197 = vector.shape_cast %196 : vector<1x16x64xbf16> to vector<16x64xbf16>
    %cst_219 = arith.constant dense<0.000000e+00> : vector<8x64xf32>
    %198 = tpu.matmul %143, %197, %cst_219 {dimension_numbers = #tpu.dot_dimension_numbers<[1], [0], [0], [1], [0, 0, 1, 1], [], []>} : vector<8x16xbf16>, vector<16x64xbf16>, vector<8x64xf32> -> vector<8x64xf32>
    %c104 = arith.constant 104 : index
    %c0_220 = arith.constant 0 : index
    %199 = vector.load %arg17[%c104, %c0_220] : memref<128x256xf32, #tpu.memory_space<vmem>>, vector<8x64xf32>
    tpu.vector_store %arg17[%c104, %c0_220], %198 {strides = array<i32>} : memref<128x256xf32, #tpu.memory_space<vmem>>, vector<8x64xf32>,
    %c14 = arith.constant 14 : index
    %c0_221 = arith.constant 0 : index
    %c0_222 = arith.constant 0 : index
    %200 = vector.load %arg8[%c14, %c0_221, %c0_222] : memref<16x16x64xbf16, #tpu.memory_space<vmem>>, vector<1x16x64xbf16>
    %201 = vector.shape_cast %200 : vector<1x16x64xbf16> to vector<16x64xbf16>
    %cst_223 = arith.constant dense<0.000000e+00> : vector<8x64xf32>
    %202 = tpu.matmul %143, %201, %cst_223 {dimension_numbers = #tpu.dot_dimension_numbers<[1], [0], [0], [1], [0, 0, 1, 1], [], []>} : vector<8x16xbf16>, vector<16x64xbf16>, vector<8x64xf32> -> vector<8x64xf32>
    %c112 = arith.constant 112 : index
    %c0_224 = arith.constant 0 : index
    %203 = vector.load %arg17[%c112, %c0_224] : memref<128x256xf32, #tpu.memory_space<vmem>>, vector<8x64xf32>
    tpu.vector_store %arg17[%c112, %c0_224], %202 {strides = array<i32>} : memref<128x256xf32, #tpu.memory_space<vmem>>, vector<8x64xf32>,
    %c15 = arith.constant 15 : index
    %c0_225 = arith.constant 0 : index
    %c0_226 = arith.constant 0 : index
    %204 = vector.load %arg8[%c15, %c0_225, %c0_226] : memref<16x16x64xbf16, #tpu.memory_space<vmem>>, vector<1x16x64xbf16>
    %205 = vector.shape_cast %204 : vector<1x16x64xbf16> to vector<16x64xbf16>
    %cst_227 = arith.constant dense<0.000000e+00> : vector<8x64xf32>
    %206 = tpu.matmul %143, %205, %cst_227 {dimension_numbers = #tpu.dot_dimension_numbers<[1], [0], [0], [1], [0, 0, 1, 1], [], []>} : vector<8x16xbf16>, vector<16x64xbf16>, vector<8x64xf32> -> vector<8x64xf32>
    %c120 = arith.constant 120 : index
    %c0_228 = arith.constant 0 : index
    %207 = vector.load %arg17[%c120, %c0_228] : memref<128x256xf32, #tpu.memory_space<vmem>>, vector<8x64xf32>
    tpu.vector_store %arg17[%c120, %c0_228], %206 {strides = array<i32>} : memref<128x256xf32, #tpu.memory_space<vmem>>, vector<8x64xf32>,
    %c0_229 = arith.constant 0 : index
    %c0_230 = arith.constant 0 : index
    %208 = vector.load %arg9[%c0_229, %c0_230] : memref<8x128xbf16, #tpu.memory_space<vmem>>, vector<8x128xbf16>
    %c0_231 = arith.constant 0 : index
    %c0_232 = arith.constant 0 : index
    %209 = vector.load %arg17[%c0_231, %c0_232] : memref<128x256xf32, #tpu.memory_space<vmem>>, vector<128x64xf32>
    %210 = arith.truncf %209 : vector<128x64xf32> to vector<128x64xbf16>
    %cst_233 = arith.constant dense<0.000000e+00> : vector<8x64xf32>
    %211 = tpu.matmul %208, %210, %cst_233 {dimension_numbers = #tpu.dot_dimension_numbers<[1], [0], [0], [1], [0, 0, 1, 1], [], []>} : vector<8x128xbf16>, vector<128x64xbf16>, vector<8x64xf32> -> vector<8x64xf32>
    %c5_234 = arith.constant 5 : index
    %c0_235 = arith.constant 0 : index
    %c0_236 = arith.constant 0 : index
    %212 = vector.load %arg14[%c5_234, %c0_235, %c0_236] : memref<7x8x1xf32, #tpu.memory_space<vmem>>, vector<1x8x1xf32>
    %213 = vector.shape_cast %212 : vector<1x8x1xf32> to vector<8x1xf32>
    %214 = vector.broadcast %213 : vector<8x1xf32> to vector<8x64xf32>
    %215 = arith.mulf %211, %214 : vector<8x64xf32>
    %c5_237 = arith.constant 5 : index
    %c0_238 = arith.constant 0 : index
    %c0_239 = arith.constant 0 : index
    %216 = vector.load %arg15[%c5_237, %c0_238, %c0_239] : memref<7x8x1xf32, #tpu.memory_space<vmem>>, vector<1x8x1xf32>
    %217 = vector.shape_cast %216 : vector<1x8x1xf32> to vector<8x1xf32>
    %218 = vector.broadcast %217 : vector<8x1xf32> to vector<8x64xf32>
    %219 = arith.addf %215, %218 : vector<8x64xf32>
    %cst_240 = arith.constant 0.000000e+00 : f32
    %220 = vector.broadcast %cst_240 : f32 to vector<8x64xf32>
    %221 = arith.maximumf %219, %220 : vector<8x64xf32>
    %222 = arith.truncf %221 : vector<8x64xf32> to vector<8x64xbf16>
    %c0_241 = arith.constant 0 : index
    %c0_242 = arith.constant 0 : index
    %c0_243 = arith.constant 0 : index
    %223 = vector.load %arg10[%c0_241, %c0_242, %c0_243] : memref<16x64x256xbf16, #tpu.memory_space<vmem>>, vector<1x64x256xbf16>
    %224 = vector.shape_cast %223 : vector<1x64x256xbf16> to vector<64x256xbf16>
    %cst_244 = arith.constant dense<0.000000e+00> : vector<8x256xf32>
    %225 = tpu.matmul %222, %224, %cst_244 {dimension_numbers = #tpu.dot_dimension_numbers<[1], [0], [0], [1], [0, 0, 1, 1], [], []>} : vector<8x64xbf16>, vector<64x256xbf16>, vector<8x256xf32> -> vector<8x256xf32>
    %c0_245 = arith.constant 0 : index
    %c0_246 = arith.constant 0 : index
    %226 = vector.load %arg17[%c0_245, %c0_246] : memref<128x256xf32, #tpu.memory_space<vmem>>, vector<8x256xf32>
    tpu.vector_store %arg17[%c0_245, %c0_246], %225 {strides = array<i32>} : memref<128x256xf32, #tpu.memory_space<vmem>>, vector<8x256xf32>,
    %c1_247 = arith.constant 1 : index
    %c0_248 = arith.constant 0 : index
    %c0_249 = arith.constant 0 : index
    %227 = vector.load %arg10[%c1_247, %c0_248, %c0_249] : memref<16x64x256xbf16, #tpu.memory_space<vmem>>, vector<1x64x256xbf16>
    %228 = vector.shape_cast %227 : vector<1x64x256xbf16> to vector<64x256xbf16>
    %cst_250 = arith.constant dense<0.000000e+00> : vector<8x256xf32>
    %229 = tpu.matmul %222, %228, %cst_250 {dimension_numbers = #tpu.dot_dimension_numbers<[1], [0], [0], [1], [0, 0, 1, 1], [], []>} : vector<8x64xbf16>, vector<64x256xbf16>, vector<8x256xf32> -> vector<8x256xf32>
    %c8_251 = arith.constant 8 : index
    %c0_252 = arith.constant 0 : index
    %230 = vector.load %arg17[%c8_251, %c0_252] : memref<128x256xf32, #tpu.memory_space<vmem>>, vector<8x256xf32>
    tpu.vector_store %arg17[%c8_251, %c0_252], %229 {strides = array<i32>} : memref<128x256xf32, #tpu.memory_space<vmem>>, vector<8x256xf32>,
    %c2_253 = arith.constant 2 : index
    %c0_254 = arith.constant 0 : index
    %c0_255 = arith.constant 0 : index
    %231 = vector.load %arg10[%c2_253, %c0_254, %c0_255] : memref<16x64x256xbf16, #tpu.memory_space<vmem>>, vector<1x64x256xbf16>
    %232 = vector.shape_cast %231 : vector<1x64x256xbf16> to vector<64x256xbf16>
    %cst_256 = arith.constant dense<0.000000e+00> : vector<8x256xf32>
    %233 = tpu.matmul %222, %232, %cst_256 {dimension_numbers = #tpu.dot_dimension_numbers<[1], [0], [0], [1], [0, 0, 1, 1], [], []>} : vector<8x64xbf16>, vector<64x256xbf16>, vector<8x256xf32> -> vector<8x256xf32>
    %c16_257 = arith.constant 16 : index
    %c0_258 = arith.constant 0 : index
    %234 = vector.load %arg17[%c16_257, %c0_258] : memref<128x256xf32, #tpu.memory_space<vmem>>, vector<8x256xf32>
    tpu.vector_store %arg17[%c16_257, %c0_258], %233 {strides = array<i32>} : memref<128x256xf32, #tpu.memory_space<vmem>>, vector<8x256xf32>,
    %c3_259 = arith.constant 3 : index
    %c0_260 = arith.constant 0 : index
    %c0_261 = arith.constant 0 : index
    %235 = vector.load %arg10[%c3_259, %c0_260, %c0_261] : memref<16x64x256xbf16, #tpu.memory_space<vmem>>, vector<1x64x256xbf16>
    %236 = vector.shape_cast %235 : vector<1x64x256xbf16> to vector<64x256xbf16>
    %cst_262 = arith.constant dense<0.000000e+00> : vector<8x256xf32>
    %237 = tpu.matmul %222, %236, %cst_262 {dimension_numbers = #tpu.dot_dimension_numbers<[1], [0], [0], [1], [0, 0, 1, 1], [], []>} : vector<8x64xbf16>, vector<64x256xbf16>, vector<8x256xf32> -> vector<8x256xf32>
    %c24_263 = arith.constant 24 : index
    %c0_264 = arith.constant 0 : index
    %238 = vector.load %arg17[%c24_263, %c0_264] : memref<128x256xf32, #tpu.memory_space<vmem>>, vector<8x256xf32>
    tpu.vector_store %arg17[%c24_263, %c0_264], %237 {strides = array<i32>} : memref<128x256xf32, #tpu.memory_space<vmem>>, vector<8x256xf32>,
    %c4_265 = arith.constant 4 : index
    %c0_266 = arith.constant 0 : index
    %c0_267 = arith.constant 0 : index
    %239 = vector.load %arg10[%c4_265, %c0_266, %c0_267] : memref<16x64x256xbf16, #tpu.memory_space<vmem>>, vector<1x64x256xbf16>
    %240 = vector.shape_cast %239 : vector<1x64x256xbf16> to vector<64x256xbf16>
    %cst_268 = arith.constant dense<0.000000e+00> : vector<8x256xf32>
    %241 = tpu.matmul %222, %240, %cst_268 {dimension_numbers = #tpu.dot_dimension_numbers<[1], [0], [0], [1], [0, 0, 1, 1], [], []>} : vector<8x64xbf16>, vector<64x256xbf16>, vector<8x256xf32> -> vector<8x256xf32>
    %c32_269 = arith.constant 32 : index
    %c0_270 = arith.constant 0 : index
    %242 = vector.load %arg17[%c32_269, %c0_270] : memref<128x256xf32, #tpu.memory_space<vmem>>, vector<8x256xf32>
    tpu.vector_store %arg17[%c32_269, %c0_270], %241 {strides = array<i32>} : memref<128x256xf32, #tpu.memory_space<vmem>>, vector<8x256xf32>,
    %c5_271 = arith.constant 5 : index
    %c0_272 = arith.constant 0 : index
    %c0_273 = arith.constant 0 : index
    %243 = vector.load %arg10[%c5_271, %c0_272, %c0_273] : memref<16x64x256xbf16, #tpu.memory_space<vmem>>, vector<1x64x256xbf16>
    %244 = vector.shape_cast %243 : vector<1x64x256xbf16> to vector<64x256xbf16>
    %cst_274 = arith.constant dense<0.000000e+00> : vector<8x256xf32>
    %245 = tpu.matmul %222, %244, %cst_274 {dimension_numbers = #tpu.dot_dimension_numbers<[1], [0], [0], [1], [0, 0, 1, 1], [], []>} : vector<8x64xbf16>, vector<64x256xbf16>, vector<8x256xf32> -> vector<8x256xf32>
    %c40_275 = arith.constant 40 : index
    %c0_276 = arith.constant 0 : index
    %246 = vector.load %arg17[%c40_275, %c0_276] : memref<128x256xf32, #tpu.memory_space<vmem>>, vector<8x256xf32>
    tpu.vector_store %arg17[%c40_275, %c0_276], %245 {strides = array<i32>} : memref<128x256xf32, #tpu.memory_space<vmem>>, vector<8x256xf32>,
    %c6_277 = arith.constant 6 : index
    %c0_278 = arith.constant 0 : index
    %c0_279 = arith.constant 0 : index
    %247 = vector.load %arg10[%c6_277, %c0_278, %c0_279] : memref<16x64x256xbf16, #tpu.memory_space<vmem>>, vector<1x64x256xbf16>
    %248 = vector.shape_cast %247 : vector<1x64x256xbf16> to vector<64x256xbf16>
    %cst_280 = arith.constant dense<0.000000e+00> : vector<8x256xf32>
    %249 = tpu.matmul %222, %248, %cst_280 {dimension_numbers = #tpu.dot_dimension_numbers<[1], [0], [0], [1], [0, 0, 1, 1], [], []>} : vector<8x64xbf16>, vector<64x256xbf16>, vector<8x256xf32> -> vector<8x256xf32>
    %c48_281 = arith.constant 48 : index
    %c0_282 = arith.constant 0 : index
    %250 = vector.load %arg17[%c48_281, %c0_282] : memref<128x256xf32, #tpu.memory_space<vmem>>, vector<8x256xf32>
    tpu.vector_store %arg17[%c48_281, %c0_282], %249 {strides = array<i32>} : memref<128x256xf32, #tpu.memory_space<vmem>>, vector<8x256xf32>,
    %c7_283 = arith.constant 7 : index
    %c0_284 = arith.constant 0 : index
    %c0_285 = arith.constant 0 : index
    %251 = vector.load %arg10[%c7_283, %c0_284, %c0_285] : memref<16x64x256xbf16, #tpu.memory_space<vmem>>, vector<1x64x256xbf16>
    %252 = vector.shape_cast %251 : vector<1x64x256xbf16> to vector<64x256xbf16>
    %cst_286 = arith.constant dense<0.000000e+00> : vector<8x256xf32>
    %253 = tpu.matmul %222, %252, %cst_286 {dimension_numbers = #tpu.dot_dimension_numbers<[1], [0], [0], [1], [0, 0, 1, 1], [], []>} : vector<8x64xbf16>, vector<64x256xbf16>, vector<8x256xf32> -> vector<8x256xf32>
    %c56_287 = arith.constant 56 : index
    %c0_288 = arith.constant 0 : index
    %254 = vector.load %arg17[%c56_287, %c0_288] : memref<128x256xf32, #tpu.memory_space<vmem>>, vector<8x256xf32>
    tpu.vector_store %arg17[%c56_287, %c0_288], %253 {strides = array<i32>} : memref<128x256xf32, #tpu.memory_space<vmem>>, vector<8x256xf32>,
    %c8_289 = arith.constant 8 : index
    %c0_290 = arith.constant 0 : index
    %c0_291 = arith.constant 0 : index
    %255 = vector.load %arg10[%c8_289, %c0_290, %c0_291] : memref<16x64x256xbf16, #tpu.memory_space<vmem>>, vector<1x64x256xbf16>
    %256 = vector.shape_cast %255 : vector<1x64x256xbf16> to vector<64x256xbf16>
    %cst_292 = arith.constant dense<0.000000e+00> : vector<8x256xf32>
    %257 = tpu.matmul %222, %256, %cst_292 {dimension_numbers = #tpu.dot_dimension_numbers<[1], [0], [0], [1], [0, 0, 1, 1], [], []>} : vector<8x64xbf16>, vector<64x256xbf16>, vector<8x256xf32> -> vector<8x256xf32>
    %c64_293 = arith.constant 64 : index
    %c0_294 = arith.constant 0 : index
    %258 = vector.load %arg17[%c64_293, %c0_294] : memref<128x256xf32, #tpu.memory_space<vmem>>, vector<8x256xf32>
    tpu.vector_store %arg17[%c64_293, %c0_294], %257 {strides = array<i32>} : memref<128x256xf32, #tpu.memory_space<vmem>>, vector<8x256xf32>,
    %c9_295 = arith.constant 9 : index
    %c0_296 = arith.constant 0 : index
    %c0_297 = arith.constant 0 : index
    %259 = vector.load %arg10[%c9_295, %c0_296, %c0_297] : memref<16x64x256xbf16, #tpu.memory_space<vmem>>, vector<1x64x256xbf16>
    %260 = vector.shape_cast %259 : vector<1x64x256xbf16> to vector<64x256xbf16>
    %cst_298 = arith.constant dense<0.000000e+00> : vector<8x256xf32>
    %261 = tpu.matmul %222, %260, %cst_298 {dimension_numbers = #tpu.dot_dimension_numbers<[1], [0], [0], [1], [0, 0, 1, 1], [], []>} : vector<8x64xbf16>, vector<64x256xbf16>, vector<8x256xf32> -> vector<8x256xf32>
    %c72_299 = arith.constant 72 : index
    %c0_300 = arith.constant 0 : index
    %262 = vector.load %arg17[%c72_299, %c0_300] : memref<128x256xf32, #tpu.memory_space<vmem>>, vector<8x256xf32>
    tpu.vector_store %arg17[%c72_299, %c0_300], %261 {strides = array<i32>} : memref<128x256xf32, #tpu.memory_space<vmem>>, vector<8x256xf32>,
    %c10_301 = arith.constant 10 : index
    %c0_302 = arith.constant 0 : index
    %c0_303 = arith.constant 0 : index
    %263 = vector.load %arg10[%c10_301, %c0_302, %c0_303] : memref<16x64x256xbf16, #tpu.memory_space<vmem>>, vector<1x64x256xbf16>
    %264 = vector.shape_cast %263 : vector<1x64x256xbf16> to vector<64x256xbf16>
    %cst_304 = arith.constant dense<0.000000e+00> : vector<8x256xf32>
    %265 = tpu.matmul %222, %264, %cst_304 {dimension_numbers = #tpu.dot_dimension_numbers<[1], [0], [0], [1], [0, 0, 1, 1], [], []>} : vector<8x64xbf16>, vector<64x256xbf16>, vector<8x256xf32> -> vector<8x256xf32>
    %c80_305 = arith.constant 80 : index
    %c0_306 = arith.constant 0 : index
    %266 = vector.load %arg17[%c80_305, %c0_306] : memref<128x256xf32, #tpu.memory_space<vmem>>, vector<8x256xf32>
    tpu.vector_store %arg17[%c80_305, %c0_306], %265 {strides = array<i32>} : memref<128x256xf32, #tpu.memory_space<vmem>>, vector<8x256xf32>,
    %c11_307 = arith.constant 11 : index
    %c0_308 = arith.constant 0 : index
    %c0_309 = arith.constant 0 : index
    %267 = vector.load %arg10[%c11_307, %c0_308, %c0_309] : memref<16x64x256xbf16, #tpu.memory_space<vmem>>, vector<1x64x256xbf16>
    %268 = vector.shape_cast %267 : vector<1x64x256xbf16> to vector<64x256xbf16>
    %cst_310 = arith.constant dense<0.000000e+00> : vector<8x256xf32>
    %269 = tpu.matmul %222, %268, %cst_310 {dimension_numbers = #tpu.dot_dimension_numbers<[1], [0], [0], [1], [0, 0, 1, 1], [], []>} : vector<8x64xbf16>, vector<64x256xbf16>, vector<8x256xf32> -> vector<8x256xf32>
    %c88_311 = arith.constant 88 : index
    %c0_312 = arith.constant 0 : index
    %270 = vector.load %arg17[%c88_311, %c0_312] : memref<128x256xf32, #tpu.memory_space<vmem>>, vector<8x256xf32>
    tpu.vector_store %arg17[%c88_311, %c0_312], %269 {strides = array<i32>} : memref<128x256xf32, #tpu.memory_space<vmem>>, vector<8x256xf32>,
    %c12_313 = arith.constant 12 : index
    %c0_314 = arith.constant 0 : index
    %c0_315 = arith.constant 0 : index
    %271 = vector.load %arg10[%c12_313, %c0_314, %c0_315] : memref<16x64x256xbf16, #tpu.memory_space<vmem>>, vector<1x64x256xbf16>
    %272 = vector.shape_cast %271 : vector<1x64x256xbf16> to vector<64x256xbf16>
    %cst_316 = arith.constant dense<0.000000e+00> : vector<8x256xf32>
    %273 = tpu.matmul %222, %272, %cst_316 {dimension_numbers = #tpu.dot_dimension_numbers<[1], [0], [0], [1], [0, 0, 1, 1], [], []>} : vector<8x64xbf16>, vector<64x256xbf16>, vector<8x256xf32> -> vector<8x256xf32>
    %c96_317 = arith.constant 96 : index
    %c0_318 = arith.constant 0 : index
    %274 = vector.load %arg17[%c96_317, %c0_318] : memref<128x256xf32, #tpu.memory_space<vmem>>, vector<8x256xf32>
    tpu.vector_store %arg17[%c96_317, %c0_318], %273 {strides = array<i32>} : memref<128x256xf32, #tpu.memory_space<vmem>>, vector<8x256xf32>,
    %c13_319 = arith.constant 13 : index
    %c0_320 = arith.constant 0 : index
    %c0_321 = arith.constant 0 : index
    %275 = vector.load %arg10[%c13_319, %c0_320, %c0_321] : memref<16x64x256xbf16, #tpu.memory_space<vmem>>, vector<1x64x256xbf16>
    %276 = vector.shape_cast %275 : vector<1x64x256xbf16> to vector<64x256xbf16>
    %cst_322 = arith.constant dense<0.000000e+00> : vector<8x256xf32>
    %277 = tpu.matmul %222, %276, %cst_322 {dimension_numbers = #tpu.dot_dimension_numbers<[1], [0], [0], [1], [0, 0, 1, 1], [], []>} : vector<8x64xbf16>, vector<64x256xbf16>, vector<8x256xf32> -> vector<8x256xf32>
    %c104_323 = arith.constant 104 : index
    %c0_324 = arith.constant 0 : index
    %278 = vector.load %arg17[%c104_323, %c0_324] : memref<128x256xf32, #tpu.memory_space<vmem>>, vector<8x256xf32>
    tpu.vector_store %arg17[%c104_323, %c0_324], %277 {strides = array<i32>} : memref<128x256xf32, #tpu.memory_space<vmem>>, vector<8x256xf32>,
    %c14_325 = arith.constant 14 : index
    %c0_326 = arith.constant 0 : index
    %c0_327 = arith.constant 0 : index
    %279 = vector.load %arg10[%c14_325, %c0_326, %c0_327] : memref<16x64x256xbf16, #tpu.memory_space<vmem>>, vector<1x64x256xbf16>
    %280 = vector.shape_cast %279 : vector<1x64x256xbf16> to vector<64x256xbf16>
    %cst_328 = arith.constant dense<0.000000e+00> : vector<8x256xf32>
    %281 = tpu.matmul %222, %280, %cst_328 {dimension_numbers = #tpu.dot_dimension_numbers<[1], [0], [0], [1], [0, 0, 1, 1], [], []>} : vector<8x64xbf16>, vector<64x256xbf16>, vector<8x256xf32> -> vector<8x256xf32>
    %c112_329 = arith.constant 112 : index
    %c0_330 = arith.constant 0 : index
    %282 = vector.load %arg17[%c112_329, %c0_330] : memref<128x256xf32, #tpu.memory_space<vmem>>, vector<8x256xf32>
    tpu.vector_store %arg17[%c112_329, %c0_330], %281 {strides = array<i32>} : memref<128x256xf32, #tpu.memory_space<vmem>>, vector<8x256xf32>,
    %c15_331 = arith.constant 15 : index
    %c0_332 = arith.constant 0 : index
    %c0_333 = arith.constant 0 : index
    %283 = vector.load %arg10[%c15_331, %c0_332, %c0_333] : memref<16x64x256xbf16, #tpu.memory_space<vmem>>, vector<1x64x256xbf16>
    %284 = vector.shape_cast %283 : vector<1x64x256xbf16> to vector<64x256xbf16>
    %cst_334 = arith.constant dense<0.000000e+00> : vector<8x256xf32>
    %285 = tpu.matmul %222, %284, %cst_334 {dimension_numbers = #tpu.dot_dimension_numbers<[1], [0], [0], [1], [0, 0, 1, 1], [], []>} : vector<8x64xbf16>, vector<64x256xbf16>, vector<8x256xf32> -> vector<8x256xf32>
    %c120_335 = arith.constant 120 : index
    %c0_336 = arith.constant 0 : index
    %286 = vector.load %arg17[%c120_335, %c0_336] : memref<128x256xf32, #tpu.memory_space<vmem>>, vector<8x256xf32>
    tpu.vector_store %arg17[%c120_335, %c0_336], %285 {strides = array<i32>} : memref<128x256xf32, #tpu.memory_space<vmem>>, vector<8x256xf32>,
    %c0_337 = arith.constant 0 : index
    %c0_338 = arith.constant 0 : index
    %287 = vector.load %arg11[%c0_337, %c0_338] : memref<8x128xbf16, #tpu.memory_space<vmem>>, vector<8x128xbf16>
    %c0_339 = arith.constant 0 : index
    %c0_340 = arith.constant 0 : index
    %288 = vector.load %arg17[%c0_339, %c0_340] : memref<128x256xf32, #tpu.memory_space<vmem>>, vector<128x256xf32>
    %289 = arith.truncf %288 : vector<128x256xf32> to vector<128x256xbf16>
    %cst_341 = arith.constant dense<0.000000e+00> : vector<8x256xf32>
    %290 = tpu.matmul %287, %289, %cst_341 {dimension_numbers = #tpu.dot_dimension_numbers<[1], [0], [0], [1], [0, 0, 1, 1], [], []>} : vector<8x128xbf16>, vector<128x256xbf16>, vector<8x256xf32> -> vector<8x256xf32>
    %c6_342 = arith.constant 6 : index
    %c0_343 = arith.constant 0 : index
    %c0_344 = arith.constant 0 : index
    %291 = vector.load %arg14[%c6_342, %c0_343, %c0_344] : memref<7x8x1xf32, #tpu.memory_space<vmem>>, vector<1x8x1xf32>
    %292 = vector.shape_cast %291 : vector<1x8x1xf32> to vector<8x1xf32>
    %293 = vector.broadcast %292 : vector<8x1xf32> to vector<8x256xf32>
    %294 = arith.mulf %290, %293 : vector<8x256xf32>
    %c6_345 = arith.constant 6 : index
    %c0_346 = arith.constant 0 : index
    %c0_347 = arith.constant 0 : index
    %295 = vector.load %arg15[%c6_345, %c0_346, %c0_347] : memref<7x8x1xf32, #tpu.memory_space<vmem>>, vector<1x8x1xf32>
    %296 = vector.shape_cast %295 : vector<1x8x1xf32> to vector<8x1xf32>
    %297 = vector.broadcast %296 : vector<8x1xf32> to vector<8x256xf32>
    %298 = arith.addf %294, %297 : vector<8x256xf32>
    %cst_348 = arith.constant 0.000000e+00 : f32
    %299 = vector.broadcast %cst_348 : f32 to vector<8x256xf32>
    %300 = arith.maximumf %298, %299 : vector<8x256xf32>
    %c0_349 = arith.constant 0 : index
    %c0_350 = arith.constant 0 : index
    %301 = vector.load %arg12[%c0_349, %c0_350] : memref<8x8xbf16, #tpu.memory_space<vmem>>, vector<8x8xbf16>
    %302 = arith.truncf %300 : vector<8x256xf32> to vector<8x256xbf16>
    %cst_351 = arith.constant dense<0.000000e+00> : vector<8x256xf32>
    %303 = tpu.matmul %301, %302, %cst_351 {dimension_numbers = #tpu.dot_dimension_numbers<[1], [0], [0], [1], [0, 0, 1, 1], [], []>} : vector<8x8xbf16>, vector<8x256xbf16>, vector<8x256xf32> -> vector<8x256xf32>
    %c0_352 = arith.constant 0 : index
    %c0_353 = arith.constant 0 : index
    %304 = vector.load %arg13[%c0_352, %c0_353] : memref<8x1xf32, #tpu.memory_space<vmem>>, vector<8x1xf32>
    %305 = vector.broadcast %304 : vector<8x1xf32> to vector<8x256xf32>
    %306 = arith.addf %303, %305 : vector<8x256xf32>
    %c0_354 = arith.constant 0 : index
    %c0_355 = arith.constant 0 : index
    %c0_356 = arith.constant 0 : index
    %307 = vector.load %arg16[%c0_354, %c0_355, %c0_356] : memref<1x8x256xf32, #tpu.memory_space<vmem>>, vector<1x8x256xf32>
    %308 = vector.shape_cast %307 : vector<1x8x256xf32> to vector<8x256xf32>
    %309 = vector.shape_cast %306 : vector<8x256xf32> to vector<1x8x256xf32>
    tpu.vector_store %arg16[%c0_354, %c0_355, %c0_356], %309 {strides = array<i32>} : memref<1x8x256xf32, #tpu.memory_space<vmem>>, vector<1x8x256xf32>,
    return
  }
  func.func @transform_0(%arg0: i32) -> (i32, i32, i32) {
    %c0_i32 = arith.constant 0 : i32
    %c0_i32_0 = arith.constant 0 : i32
    %c0_i32_1 = arith.constant 0 : i32
    return %arg0, %c0_i32, %c0_i32_0 : i32, i32, i32
  }
  func.func @transform_1(%arg0: i32) -> (i32, i32) {
    %c0_i32 = arith.constant 0 : i32
    %c0_i32_0 = arith.constant 0 : i32
    %c0_i32_1 = arith.constant 0 : i32
    return %c0_i32, %c0_i32_0 : i32, i32
  }
  func.func @transform_2(%arg0: i32) -> (i32, i32, i32) {
    %c0_i32 = arith.constant 0 : i32
    %c0_i32_0 = arith.constant 0 : i32
    %c0_i32_1 = arith.constant 0 : i32
    %c0_i32_2 = arith.constant 0 : i32
    return %c0_i32, %c0_i32_0, %c0_i32_1 : i32, i32, i32
  }
  func.func @transform_3(%arg0: i32) -> (i32, i32) {
    %c0_i32 = arith.constant 0 : i32
    %c0_i32_0 = arith.constant 0 : i32
    %c0_i32_1 = arith.constant 0 : i32
    return %c0_i32, %c0_i32_0 : i32, i32
  }
  func.func @transform_4(%arg0: i32) -> (i32, i32) {
    %c0_i32 = arith.constant 0 : i32
    %c0_i32_0 = arith.constant 0 : i32
    %c0_i32_1 = arith.constant 0 : i32
    return %c0_i32, %c0_i32_0 : i32, i32
  }
  func.func @transform_5(%arg0: i32) -> (i32, i32) {
    %c0_i32 = arith.constant 0 : i32
    %c0_i32_0 = arith.constant 0 : i32
    %c0_i32_1 = arith.constant 0 : i32
    return %c0_i32, %c0_i32_0 : i32, i32
  }
  func.func @transform_6(%arg0: i32) -> (i32, i32) {
    %c0_i32 = arith.constant 0 : i32
    %c0_i32_0 = arith.constant 0 : i32
    %c0_i32_1 = arith.constant 0 : i32
    return %c0_i32, %c0_i32_0 : i32, i32
  }
  func.func @transform_7(%arg0: i32) -> (i32, i32, i32) {
    %c0_i32 = arith.constant 0 : i32
    %c0_i32_0 = arith.constant 0 : i32
    %c0_i32_1 = arith.constant 0 : i32
    %c0_i32_2 = arith.constant 0 : i32
    return %c0_i32, %c0_i32_0, %c0_i32_1 : i32, i32, i32
  }
  func.func @transform_8(%arg0: i32) -> (i32, i32) {
    %c0_i32 = arith.constant 0 : i32
    %c0_i32_0 = arith.constant 0 : i32
    %c0_i32_1 = arith.constant 0 : i32
    return %c0_i32, %c0_i32_0 : i32, i32
  }
  func.func @transform_9(%arg0: i32) -> (i32, i32, i32) {
    %c0_i32 = arith.constant 0 : i32
    %c0_i32_0 = arith.constant 0 : i32
    %c0_i32_1 = arith.constant 0 : i32
    %c0_i32_2 = arith.constant 0 : i32
    return %c0_i32, %c0_i32_0, %c0_i32_1 : i32, i32, i32
  }
  func.func @transform_10(%arg0: i32) -> (i32, i32) {
    %c0_i32 = arith.constant 0 : i32
    %c0_i32_0 = arith.constant 0 : i32
    %c0_i32_1 = arith.constant 0 : i32
    return %c0_i32, %c0_i32_0 : i32, i32
  }
  func.func @transform_11(%arg0: i32) -> (i32, i32) {
    %c0_i32 = arith.constant 0 : i32
    %c0_i32_0 = arith.constant 0 : i32
    %c0_i32_1 = arith.constant 0 : i32
    return %c0_i32, %c0_i32_0 : i32, i32
  }
  func.func @transform_12(%arg0: i32) -> (i32, i32) {
    %c0_i32 = arith.constant 0 : i32
    %c0_i32_0 = arith.constant 0 : i32
    %c0_i32_1 = arith.constant 0 : i32
    return %c0_i32, %c0_i32_0 : i32, i32
  }
  func.func @transform_13(%arg0: i32) -> (i32, i32, i32) {
    %c0_i32 = arith.constant 0 : i32
    %c0_i32_0 = arith.constant 0 : i32
    %c0_i32_1 = arith.constant 0 : i32
    %c0_i32_2 = arith.constant 0 : i32
    return %c0_i32, %c0_i32_0, %c0_i32_1 : i32, i32, i32
  }
  func.func @transform_14(%arg0: i32) -> (i32, i32, i32) {
    %c0_i32 = arith.constant 0 : i32
    %c0_i32_0 = arith.constant 0 : i32
    %c0_i32_1 = arith.constant 0 : i32
    %c0_i32_2 = arith.constant 0 : i32
    return %c0_i32, %c0_i32_0, %c0_i32_1 : i32, i32, i32
  }
  func.func @transform_15(%arg0: i32) -> (i32, i32, i32) {
    %c0_i32 = arith.constant 0 : i32
    %c0_i32_0 = arith.constant 0 : i32
    %c0_i32_1 = arith.constant 0 : i32
    return %arg0, %c0_i32, %c0_i32_0 : i32, i32, i32
  }
}

</mosaic_0001>

<llo_original>
// kernel: tpu_custom_call.1
$region0: #{tpu_custom_call.1}
  #allocation0 [shape = 'u32[]', space=smem, size = 0x4, offset = 0x4, fixed_abs, tag = 'smem constant byte address 0x4 - core index']
  #allocation1 [shape = 'u32[144,128]{1,0:T(1,128)}', space=vmem, size = 0x12000, scoped, tag = 'internal scratch']
  #allocation2 [shape = 'f32[128,256]{1,0:T(8,128)}', space=vmem, size = 0x20000, scoped, tag = 'scratch operand']
  %s0 = inlined_call_operand.vmem [shape: f32[2,8,16], index: 0, kind: input, shape index: {}]
  %s1 = inlined_call_operand.vmem [shape: bf16[8,8], index: 1, kind: input, shape index: {}]
  %s2 = inlined_call_operand.hbm [shape: bf16[9,16,16], index: 2, kind: input, shape index: {}]
  %s3 = inlined_call_operand.hbm [shape: bf16[8,72], index: 3, kind: input, shape index: {}]
  %s4 = inlined_call_operand.hbm [shape: bf16[8,8], index: 4, kind: input, shape index: {}]
  %s5 = inlined_call_operand.hbm [shape: bf16[8,72], index: 5, kind: input, shape index: {}]
  %s6 = inlined_call_operand.hbm [shape: bf16[8,8], index: 6, kind: input, shape index: {}]
  %s7 = inlined_call_operand.vmem [shape: bf16[16,16,64], index: 7, kind: input, shape index: {}]
  %s8 = inlined_call_operand.hbm [shape: bf16[8,128], index: 8, kind: input, shape index: {}]
  %s9 = inlined_call_operand.hbm [shape: bf16[16,64,256], index: 9, kind: input, shape index: {}]
  %s10 = inlined_call_operand.vmem [shape: bf16[8,128], index: 10, kind: input, shape index: {}]
  %s11 = inlined_call_operand.vmem [shape: bf16[8,8], index: 11, kind: input, shape index: {}]
  %s12 = inlined_call_operand.vmem [shape: f32[8,1], index: 12, kind: input, shape index: {}]
  %s13 = inlined_call_operand.vmem [shape: f32[7,8,1], index: 13, kind: input, shape index: {}]
  %s14 = inlined_call_operand.vmem [shape: f32[7,8,1], index: 14, kind: input, shape index: {}]
  %s15 = inlined_call_operand.hbm [shape: f32[2,8,256], index: 15, kind: output, shape index: {}]
  %s16 = sld [smem:[#allocation0]]
  $region121: #{tpu_custom_call.1} parent=0
    _
  %s18 = ssub.s32 1, %s16
  %s19 = scalar_select 0, %s18, %s16
  $region1: #{tpu_custom_call.1} parent=0
    #allocation3 [shape = 'u8[36864]{0}', space=vmem, size = 0x9000, scoped, tag = 'input window, operand 2, single buffered']
    #allocation4 [shape = 's32[2]{0}', space=sflag, size = 0x8, scoped, tag = 'scoped memory for tpu_custom_call.1']
    #allocation5 [shape = 's32[2]{0}', space=sflag, size = 0x8, scoped, tag = 'scoped memory for tpu_custom_call.1']
    #allocation6 [shape = 'u8[2048]{0}', space=vmem, size = 0x800, scoped, tag = 'input window, operand 3, single buffered']
    #allocation7 [shape = 's32[1]{0}', space=sflag, size = 0x4, scoped, tag = 'scoped memory for tpu_custom_call.1']
    #allocation8 [shape = 'u8[2048]{0}', space=vmem, size = 0x800, scoped, tag = 'input window, operand 4, single buffered']
    #allocation9 [shape = 'u8[2048]{0}', space=vmem, size = 0x800, scoped, tag = 'input window, operand 5, single buffered']
    #allocation10 [shape = 's32[1]{0}', space=sflag, size = 0x4, scoped, tag = 'scoped memory for tpu_custom_call.1']
    #allocation11 [shape = 'u8[2048]{0}', space=vmem, size = 0x800, scoped, tag = 'input window, operand 6, single buffered']
    #allocation12 [shape = 'u8[2048]{0}', space=vmem, size = 0x800, scoped, tag = 'input window, operand 8, single buffered']
    #allocation13 [shape = 's32[1]{0}', space=sflag, size = 0x4, scoped, tag = 'scoped memory for tpu_custom_call.1']
    #allocation14 [shape = 'u8[524288]{0}', space=vmem, size = 0x80000, scoped, tag = 'input window, operand 9, single buffered']
    #allocation15 [shape = 'u8[16384]{0}', space=vmem, size = 0x4000, scoped, tag = 'output window, operand 0']
    %20 = vsyncpa [#allocation4], 0
    %21 = vsyncpa [#allocation7], 0
    %22 = vsyncpa [#allocation10], 0
    %23 = vsyncpa [#allocation13], 0
    %24 = vsyncpa [#allocation5], 0
    %s25 = scalar_lea.sflag [#allocation5], 1
    %26 = vsyncpa %s25, 0
    loop: start=0, step=1, limit=4
    $region2: #{tpu_custom_call.1} parent=1 // loop_pre_header
      _
    $region3: #{tpu_custom_call.1} parent=1 // loop_header
      %s28 = sphi 0, %s32
      %p29 = scmp.ge.s32.totalorder %s28, 4
      %s38 = sphi 0, %s40
      %s41 = sphi 0, %s38
      %s42 = sphi 0, %s41
      %s58 = sphi 0, %s42
      %s62 = sphi 0, %s62
      %s64 = sphi 0, %s62
      %s65 = sphi 0, %s64
      %s79 = sphi 0, %s65
      %s83 = sphi 0, %s83
      %s85 = sphi 0, %s83
      %s86 = sphi 0, %s85
      %s100 = sphi 0, %s86
      %s104 = sphi 0, %s104
      %s106 = sphi 0, %s104
      %s107 = sphi 0, %s106
      %s121 = sphi 0, %s107
      %s125 = sphi 0, %s125
      %s127 = sphi 0, %s125
      %s128 = sphi 0, %s127
      %s142 = sphi 0, %s128
      %s146 = sphi 0, %s146
      %s148 = sphi 0, %s146
      %s149 = sphi 0, %s148
      %s163 = sphi 0, %s149
      %s167 = sphi 0, %s167
      %s169 = sphi 0, %s167
      %s170 = sphi 0, %s169
      %s184 = sphi 0, %s170
      %s188 = sphi 0, %s188
      %s190 = sphi 0, %s188
      %s191 = sphi 0, %s190
      %s205 = sphi 0, %s191
      %s209 = sphi 0, %s209
      %s211 = sphi 0, %s209
      %s212 = sphi 0, %s211
      %s226 = sphi 0, %s212
      %s230 = sphi 0, %s230
      %s232 = sphi 0, %s230
      %s233 = sphi 0, %s232
      %s247 = sphi 0, %s233
      %s251 = sphi 0, %s251
      %s253 = sphi 0, %s251
      %s254 = sphi 0, %s253
      %s268 = sphi 0, %s254
      %s272 = sphi 0, %s272
      %s274 = sphi 0, %s272
      %s275 = sphi 0, %s274
      %s289 = sphi 0, %s275
      %s293 = sphi 0, %s293
      %s295 = sphi 0, %s293
      %s296 = sphi 0, %s295
      %s310 = sphi 0, %s296
      %s314 = sphi 0, %s314
      %s316 = sphi 0, %s314
      %s317 = sphi 0, %s316
      %s331 = sphi 0, %s317
      %s335 = sphi 0, %s335
      %s337 = sphi 0, %s335
      %s338 = sphi 0, %s337
      %s352 = sphi 0, %s338
      %s358 = sphi 0, %s360
      %s361 = sphi 0, %s358
      %s362 = sphi 0, %s361
      %s378 = sphi 0, %s362
    $region4: #{tpu_custom_call.1} parent=1 // loop_header_branch
      %31 = sbr.rel (%p29) target = $region8
    $region5: #{tpu_custom_call.1} parent=1 // loop_body
      %s33 = ssub.s32 %s28, 1
      %s34 = ssub.s32 %s28, 2
      %s35 = sadd.s32 %s28, 1
      %s36 = ssub.s32 %s28, %s35
      %p37 = scmp.eq.s32.totalorder %s36, 0
      %s39 = sadd.s32 %s38, 1
      %s40 = scalar_select %p37, %s38, %s39
      %p43 = pneg %p37
      %p44 = scmp.eq.s32.totalorder %s28, 1
      %p45 = por %p43, %p44
      %p46 = scmp.ne.s32.totalorder %s38, %s41
      %p47 = scmp.eq.s32.totalorder %s28, 0
      %p48 = por %p46, %p47
      %p49 = scmp.ne.s32.totalorder %s38, %s41
      %p50 = scmp.eq.s32.totalorder %s33, 1
      %p51 = por %p49, %p50
      %p52 = scmp.ne.s32.totalorder %s41, %s42
      %p53 = scmp.eq.s32.totalorder %s33, 0
      %p54 = por %p52, %p53
      %p55 = scmp.ne.s32.totalorder %s41, %s42
      %p56 = scmp.eq.s32.totalorder %s34, 1
      %p57 = por %p55, %p56
      %p59 = scmp.ne.s32.totalorder %s42, %s58
      %p60 = scmp.eq.s32.totalorder %s34, 0
      %p61 = por %p59, %p60
      %s63 = sadd.s32 %s62, 1
      %p66 = scmp.eq.s32.totalorder %s28, 1
      %p67 = scmp.ne.s32.totalorder %s62, %s64
      %p68 = scmp.eq.s32.totalorder %s28, 0
      %p69 = por %p67, %p68
      %p70 = scmp.ne.s32.totalorder %s62, %s64
      %p71 = scmp.eq.s32.totalorder %s33, 1
      %p72 = por %p70, %p71
      %p73 = scmp.ne.s32.totalorder %s64, %s65
      %p74 = scmp.eq.s32.totalorder %s33, 0
      %p75 = por %p73, %p74
      %p76 = scmp.ne.s32.totalorder %s64, %s65
      %p77 = scmp.eq.s32.totalorder %s34, 1
      %p78 = por %p76, %p77
      %p80 = scmp.ne.s32.totalorder %s65, %s79
      %p81 = scmp.eq.s32.totalorder %s34, 0
      %p82 = por %p80, %p81
      %s84 = sadd.s32 %s83, 1
      %p87 = scmp.eq.s32.totalorder %s28, 1
      %p88 = scmp.ne.s32.totalorder %s83, %s85
      %p89 = scmp.eq.s32.totalorder %s28, 0
      %p90 = por %p88, %p89
      %p91 = scmp.ne.s32.totalorder %s83, %s85
      %p92 = scmp.eq.s32.totalorder %s33, 1
      %p93 = por %p91, %p92
      %p94 = scmp.ne.s32.totalorder %s85, %s86
      %p95 = scmp.eq.s32.totalorder %s33, 0
      %p96 = por %p94, %p95
      %p97 = scmp.ne.s32.totalorder %s85, %s86
      %p98 = scmp.eq.s32.totalorder %s34, 1
      %p99 = por %p97, %p98
      %p101 = scmp.ne.s32.totalorder %s86, %s100
      %p102 = scmp.eq.s32.totalorder %s34, 0
      %p103 = por %p101, %p102
      %s105 = sadd.s32 %s104, 1
      %p108 = scmp.eq.s32.totalorder %s28, 1
      %p109 = scmp.ne.s32.totalorder %s104, %s106
      %p110 = scmp.eq.s32.totalorder %s28, 0
      %p111 = por %p109, %p110
      %p112 = scmp.ne.s32.totalorder %s104, %s106
      %p113 = scmp.eq.s32.totalorder %s33, 1
      %p114 = por %p112, %p113
      %p115 = scmp.ne.s32.totalorder %s106, %s107
      %p116 = scmp.eq.s32.totalorder %s33, 0
      %p117 = por %p115, %p116
      %p118 = scmp.ne.s32.totalorder %s106, %s107
      %p119 = scmp.eq.s32.totalorder %s34, 1
      %p120 = por %p118, %p119
      %p122 = scmp.ne.s32.totalorder %s107, %s121
      %p123 = scmp.eq.s32.totalorder %s34, 0
      %p124 = por %p122, %p123
      %s126 = sadd.s32 %s125, 1
      %p129 = scmp.eq.s32.totalorder %s28, 1
      %p130 = scmp.ne.s32.totalorder %s125, %s127
      %p131 = scmp.eq.s32.totalorder %s28, 0
      %p132 = por %p130, %p131
      %p133 = scmp.ne.s32.totalorder %s125, %s127
      %p134 = scmp.eq.s32.totalorder %s33, 1
      %p135 = por %p133, %p134
      %p136 = scmp.ne.s32.totalorder %s127, %s128
      %p137 = scmp.eq.s32.totalorder %s33, 0
      %p138 = por %p136, %p137
      %p139 = scmp.ne.s32.totalorder %s127, %s128
      %p140 = scmp.eq.s32.totalorder %s34, 1
      %p141 = por %p139, %p140
      %p143 = scmp.ne.s32.totalorder %s128, %s142
      %p144 = scmp.eq.s32.totalorder %s34, 0
      %p145 = por %p143, %p144
      %s147 = sadd.s32 %s146, 1
      %p150 = scmp.eq.s32.totalorder %s28, 1
      %p151 = scmp.ne.s32.totalorder %s146, %s148
      %p152 = scmp.eq.s32.totalorder %s28, 0
      %p153 = por %p151, %p152
      %p154 = scmp.ne.s32.totalorder %s146, %s148
      %p155 = scmp.eq.s32.totalorder %s33, 1
      %p156 = por %p154, %p155
      %p157 = scmp.ne.s32.totalorder %s148, %s149
      %p158 = scmp.eq.s32.totalorder %s33, 0
      %p159 = por %p157, %p158
      %p160 = scmp.ne.s32.totalorder %s148, %s149
      %p161 = scmp.eq.s32.totalorder %s34, 1
      %p162 = por %p160, %p161
      %p164 = scmp.ne.s32.totalorder %s149, %s163
      %p165 = scmp.eq.s32.totalorder %s34, 0
      %p166 = por %p164, %p165
      %s168 = sadd.s32 %s167, 1
      %p171 = scmp.eq.s32.totalorder %s28, 1
      %p172 = scmp.ne.s32.totalorder %s167, %s169
      %p173 = scmp.eq.s32.totalorder %s28, 0
      %p174 = por %p172, %p173
      %p175 = scmp.ne.s32.totalorder %s167, %s169
      %p176 = scmp.eq.s32.totalorder %s33, 1
      %p177 = por %p175, %p176
      %p178 = scmp.ne.s32.totalorder %s169, %s170
      %p179 = scmp.eq.s32.totalorder %s33, 0
      %p180 = por %p178, %p179
      %p181 = scmp.ne.s32.totalorder %s169, %s170
      %p182 = scmp.eq.s32.totalorder %s34, 1
      %p183 = por %p181, %p182
      %p185 = scmp.ne.s32.totalorder %s170, %s184
      %p186 = scmp.eq.s32.totalorder %s34, 0
      %p187 = por %p185, %p186
      %s189 = sadd.s32 %s188, 1
      %p192 = scmp.eq.s32.totalorder %s28, 1
      %p193 = scmp.ne.s32.totalorder %s188, %s190
      %p194 = scmp.eq.s32.totalorder %s28, 0
      %p195 = por %p193, %p194
      %p196 = scmp.ne.s32.totalorder %s188, %s190
      %p197 = scmp.eq.s32.totalorder %s33, 1
      %p198 = por %p196, %p197
      %p199 = scmp.ne.s32.totalorder %s190, %s191
      %p200 = scmp.eq.s32.totalorder %s33, 0
      %p201 = por %p199, %p200
      %p202 = scmp.ne.s32.totalorder %s190, %s191
      %p203 = scmp.eq.s32.totalorder %s34, 1
      %p204 = por %p202, %p203
      %p206 = scmp.ne.s32.totalorder %s191, %s205
      %p207 = scmp.eq.s32.totalorder %s34, 0
      %p208 = por %p206, %p207
      %s210 = sadd.s32 %s209, 1
      %p213 = scmp.eq.s32.totalorder %s28, 1
      %p214 = scmp.ne.s32.totalorder %s209, %s211
      %p215 = scmp.eq.s32.totalorder %s28, 0
      %p216 = por %p214, %p215
      %p217 = scmp.ne.s32.totalorder %s209, %s211
      %p218 = scmp.eq.s32.totalorder %s33, 1
      %p219 = por %p217, %p218
      %p220 = scmp.ne.s32.totalorder %s211, %s212
      %p221 = scmp.eq.s32.totalorder %s33, 0
      %p222 = por %p220, %p221
      %p223 = scmp.ne.s32.totalorder %s211, %s212
      %p224 = scmp.eq.s32.totalorder %s34, 1
      %p225 = por %p223, %p224
      %p227 = scmp.ne.s32.totalorder %s212, %s226
      %p228 = scmp.eq.s32.totalorder %s34, 0
      %p229 = por %p227, %p228
      %s231 = sadd.s32 %s230, 1
      %p234 = scmp.eq.s32.totalorder %s28, 1
      %p235 = scmp.ne.s32.totalorder %s230, %s232
      %p236 = scmp.eq.s32.totalorder %s28, 0
      %p237 = por %p235, %p236
      %p238 = scmp.ne.s32.totalorder %s230, %s232
      %p239 = scmp.eq.s32.totalorder %s33, 1
      %p240 = por %p238, %p239
      %p241 = scmp.ne.s32.totalorder %s232, %s233
      %p242 = scmp.eq.s32.totalorder %s33, 0
      %p243 = por %p241, %p242
      %p244 = scmp.ne.s32.totalorder %s232, %s233
      %p245 = scmp.eq.s32.totalorder %s34, 1
      %p246 = por %p244, %p245
      %p248 = scmp.ne.s32.totalorder %s233, %s247
      %p249 = scmp.eq.s32.totalorder %s34, 0
      %p250 = por %p248, %p249
      %s252 = sadd.s32 %s251, 1
      %p255 = scmp.eq.s32.totalorder %s28, 1
      %p256 = scmp.ne.s32.totalorder %s251, %s253
      %p257 = scmp.eq.s32.totalorder %s28, 0
      %p258 = por %p256, %p257
      %p259 = scmp.ne.s32.totalorder %s251, %s253
      %p260 = scmp.eq.s32.totalorder %s33, 1
      %p261 = por %p259, %p260
      %p262 = scmp.ne.s32.totalorder %s253, %s254
      %p263 = scmp.eq.s32.totalorder %s33, 0
      %p264 = por %p262, %p263
      %p265 = scmp.ne.s32.totalorder %s253, %s254
      %p266 = scmp.eq.s32.totalorder %s34, 1
      %p267 = por %p265, %p266
      %p269 = scmp.ne.s32.totalorder %s254, %s268
      %p270 = scmp.eq.s32.totalorder %s34, 0
      %p271 = por %p269, %p270
      %s273 = sadd.s32 %s272, 1
      %p276 = scmp.eq.s32.totalorder %s28, 1
      %p277 = scmp.ne.s32.totalorder %s272, %s274
      %p278 = scmp.eq.s32.totalorder %s28, 0
      %p279 = por %p277, %p278
      %p280 = scmp.ne.s32.totalorder %s272, %s274
      %p281 = scmp.eq.s32.totalorder %s33, 1
      %p282 = por %p280, %p281
      %p283 = scmp.ne.s32.totalorder %s274, %s275
      %p284 = scmp.eq.s32.totalorder %s33, 0
      %p285 = por %p283, %p284
      %p286 = scmp.ne.s32.totalorder %s274, %s275
      %p287 = scmp.eq.s32.totalorder %s34, 1
      %p288 = por %p286, %p287
      %p290 = scmp.ne.s32.totalorder %s275, %s289
      %p291 = scmp.eq.s32.totalorder %s34, 0
      %p292 = por %p290, %p291
      %s294 = sadd.s32 %s293, 1
      %p297 = scmp.eq.s32.totalorder %s28, 1
      %p298 = scmp.ne.s32.totalorder %s293, %s295
      %p299 = scmp.eq.s32.totalorder %s28, 0
      %p300 = por %p298, %p299
      %p301 = scmp.ne.s32.totalorder %s293, %s295
      %p302 = scmp.eq.s32.totalorder %s33, 1
      %p303 = por %p301, %p302
      %p304 = scmp.ne.s32.totalorder %s295, %s296
      %p305 = scmp.eq.s32.totalorder %s33, 0
      %p306 = por %p304, %p305
      %p307 = scmp.ne.s32.totalorder %s295, %s296
      %p308 = scmp.eq.s32.totalorder %s34, 1
      %p309 = por %p307, %p308
      %p311 = scmp.ne.s32.totalorder %s296, %s310
      %p312 = scmp.eq.s32.totalorder %s34, 0
      %p313 = por %p311, %p312
      %s315 = sadd.s32 %s314, 1
      %p318 = scmp.eq.s32.totalorder %s28, 1
      %p319 = scmp.ne.s32.totalorder %s314, %s316
      %p320 = scmp.eq.s32.totalorder %s28, 0
      %p321 = por %p319, %p320
      %p322 = scmp.ne.s32.totalorder %s314, %s316
      %p323 = scmp.eq.s32.totalorder %s33, 1
      %p324 = por %p322, %p323
      %p325 = scmp.ne.s32.totalorder %s316, %s317
      %p326 = scmp.eq.s32.totalorder %s33, 0
      %p327 = por %p325, %p326
      %p328 = scmp.ne.s32.totalorder %s316, %s317
      %p329 = scmp.eq.s32.totalorder %s34, 1
      %p330 = por %p328, %p329
      %p332 = scmp.ne.s32.totalorder %s317, %s331
      %p333 = scmp.eq.s32.totalorder %s34, 0
      %p334 = por %p332, %p333
      %s336 = sadd.s32 %s335, 1
      %p339 = scmp.eq.s32.totalorder %s28, 1
      %p340 = scmp.ne.s32.totalorder %s335, %s337
      %p341 = scmp.eq.s32.totalorder %s28, 0
      %p342 = por %p340, %p341
      %p343 = scmp.ne.s32.totalorder %s335, %s337
      %p344 = scmp.eq.s32.totalorder %s33, 1
      %p345 = por %p343, %p344
      %p346 = scmp.ne.s32.totalorder %s337, %s338
      %p347 = scmp.eq.s32.totalorder %s33, 0
      %p348 = por %p346, %p347
      %p349 = scmp.ne.s32.totalorder %s337, %s338
      %p350 = scmp.eq.s32.totalorder %s34, 1
      %p351 = por %p349, %p350
      %p353 = scmp.ne.s32.totalorder %s338, %s352
      %p354 = scmp.eq.s32.totalorder %s34, 0
      %p355 = por %p353, %p354
      %s356 = ssub.s32 %s28, %s35
      %p357 = scmp.eq.s32.totalorder %s356, 0
      %s359 = sadd.s32 %s358, 1
      %s360 = scalar_select %p357, %s358, %s359
      %p363 = pneg %p357
      %p364 = scmp.eq.s32.totalorder %s28, 1
      %p365 = por %p363, %p364
      %p366 = scmp.ne.s32.totalorder %s358, %s361
      %p367 = scmp.eq.s32.totalorder %s28, 0
      %p368 = por %p366, %p367
      %p369 = scmp.ne.s32.totalorder %s358, %s361
      %p370 = scmp.eq.s32.totalorder %s33, 1
      %p371 = por %p369, %p370
      %p372 = scmp.ne.s32.totalorder %s361, %s362
      %p373 = scmp.eq.s32.totalorder %s33, 0
      %p374 = por %p372, %p373
      %p375 = scmp.ne.s32.totalorder %s361, %s362
      %p376 = scmp.eq.s32.totalorder %s34, 1
      %p377 = por %p375, %p376
      %p379 = scmp.ne.s32.totalorder %s362, %s378
      %p380 = scmp.eq.s32.totalorder %s34, 0
      %p381 = por %p379, %p380
      %p382 = scmp.le.s32.totalorder 1, %s28
      %p383 = scmp.lt.s32.totalorder %s28, 3
      %p384 = pnand %p382, %p383
      %p385 = pneg %p384
      // Predicated region
      $region9: #{tpu_custom_call.1} parent=5 // pred_check
        _
      $region10: #{tpu_custom_call.1} parent=5 // pred_check_branch
        %387 = sbr.rel (%p384) target = $region12
      $region11: #{tpu_custom_call.1} parent=5 // pred_region
        %s388 = ssub.s32 %s28, 1
        // Predicated region
        $region13: #{tpu_custom_call.1} parent=11 // pred_check
          %p389 = pneg %p75
        $region14: #{tpu_custom_call.1} parent=11 // pred_check_branch
          %391 = sbr.rel (%p389) target = $region16
        $region15: #{tpu_custom_call.1} parent=11 // pred_region
          _
        $region16: #{tpu_custom_call.1} parent=11 // pred_fallthru
          _
        // Predicated region
        $region17: #{tpu_custom_call.1} parent=11 // pred_check
          %p392 = pneg %p96
        $region18: #{tpu_custom_call.1} parent=11 // pred_check_branch
          %394 = sbr.rel (%p392) target = $region20
        $region19: #{tpu_custom_call.1} parent=11 // pred_region
          %s396 = ssub.s32 1152, 1152
          %397 = vsyncadd [#allocation4], %s396
          %s398 = sshll.u32 [#allocation3], 4
          %s399 = int_to_ptr.vmem [resolvable:$true] %s398
          %404 = dma.hbm_to_vmem [thread:$0]  %s2, 1152, %s399, [#allocation4], 64, 64, 4
        $region20: #{tpu_custom_call.1} parent=11 // pred_fallthru
          _
        // Predicated region
        $region21: #{tpu_custom_call.1} parent=11 // pred_check
          %p405 = pneg %p117
        $region22: #{tpu_custom_call.1} parent=11 // pred_check_branch
          %407 = sbr.rel (%p405) target = $region24
        $region23: #{tpu_custom_call.1} parent=11 // pred_region
          %s409 = ssub.s32 64, 64
          %410 = vsyncadd [#allocation7], %s409
          %s412 = sshll.u32 [#allocation6], 4
          %s413 = int_to_ptr.vmem [resolvable:$true] %s412
          %415 = dma.hbm_to_vmem [thread:$0]  %s3, 64, %s413, [#allocation7]
        $region24: #{tpu_custom_call.1} parent=11 // pred_fallthru
          _
        // Predicated region
        $region25: #{tpu_custom_call.1} parent=11 // pred_check
          %p416 = pneg %p138
        $region26: #{tpu_custom_call.1} parent=11 // pred_check_branch
          %418 = sbr.rel (%p416) target = $region28
        $region27: #{tpu_custom_call.1} parent=11 // pred_region
          %s420 = ssub.s32 64, 64
          %421 = vsyncadd [#allocation7], %s420
          %s423 = sshll.u32 [#allocation8], 4
          %s424 = int_to_ptr.vmem [resolvable:$true] %s423
          %426 = dma.hbm_to_vmem [thread:$0]  %s4, 64, %s424, [#allocation7]
        $region28: #{tpu_custom_call.1} parent=11 // pred_fallthru
          _
        // Predicated region
        $region29: #{tpu_custom_call.1} parent=11 // pred_check
          %p427 = pneg %p159
        $region30: #{tpu_custom_call.1} parent=11 // pred_check_branch
          %429 = sbr.rel (%p427) target = $region32
        $region31: #{tpu_custom_call.1} parent=11 // pred_region
          %s431 = ssub.s32 64, 64
          %432 = vsyncadd [#allocation10], %s431
          %s434 = sshll.u32 [#allocation9], 4
          %s435 = int_to_ptr.vmem [resolvable:$true] %s434
          %437 = dma.hbm_to_vmem [thread:$0]  %s5, 64, %s435, [#allocation10]
        $region32: #{tpu_custom_call.1} parent=11 // pred_fallthru
          _
        // Predicated region
        $region33: #{tpu_custom_call.1} parent=11 // pred_check
          %p438 = pneg %p180
        $region34: #{tpu_custom_call.1} parent=11 // pred_check_branch
          %440 = sbr.rel (%p438) target = $region36
        $region35: #{tpu_custom_call.1} parent=11 // pred_region
          %s442 = ssub.s32 64, 64
          %443 = vsyncadd [#allocation10], %s442
          %s445 = sshll.u32 [#allocation11], 4
          %s446 = int_to_ptr.vmem [resolvable:$true] %s445
          %448 = dma.hbm_to_vmem [thread:$0]  %s6, 64, %s446, [#allocation10]
        $region36: #{tpu_custom_call.1} parent=11 // pred_fallthru
          _
        // Predicated region
        $region37: #{tpu_custom_call.1} parent=11 // pred_check
          %p449 = pneg %p201
        $region38: #{tpu_custom_call.1} parent=11 // pred_check_branch
          %451 = sbr.rel (%p449) target = $region40
        $region39: #{tpu_custom_call.1} parent=11 // pred_region
          _
        $region40: #{tpu_custom_call.1} parent=11 // pred_fallthru
          _
        // Predicated region
        $region41: #{tpu_custom_call.1} parent=11 // pred_check
          %p452 = pneg %p222
        $region42: #{tpu_custom_call.1} parent=11 // pred_check_branch
          %454 = sbr.rel (%p452) target = $region44
        $region43: #{tpu_custom_call.1} parent=11 // pred_region
          %s456 = ssub.s32 64, 64
          %457 = vsyncadd [#allocation13], %s456
          %s459 = sshll.u32 [#allocation12], 4
          %s460 = int_to_ptr.vmem [resolvable:$true] %s459
          %462 = dma.hbm_to_vmem [thread:$0]  %s8, 64, %s460, [#allocation13]
        $region44: #{tpu_custom_call.1} parent=11 // pred_fallthru
          _
        // Predicated region
        $region45: #{tpu_custom_call.1} parent=11 // pred_check
          %p463 = pneg %p243
        $region46: #{tpu_custom_call.1} parent=11 // pred_check_branch
          %465 = sbr.rel (%p463) target = $region48
        $region47: #{tpu_custom_call.1} parent=11 // pred_region
          %s467 = ssub.s32 16384, 16384
          %468 = vsyncadd [#allocation13], %s467
          %s469 = sshll.u32 [#allocation14], 4
          %s470 = int_to_ptr.vmem [resolvable:$true] %s469
          %475 = dma.hbm_to_vmem [thread:$0]  %s9, 16384, %s470, [#allocation13], 128, 128, 8
        $region48: #{tpu_custom_call.1} parent=11 // pred_fallthru
          _
        // Predicated region
        $region49: #{tpu_custom_call.1} parent=11 // pred_check
          %p476 = pneg %p264
        $region50: #{tpu_custom_call.1} parent=11 // pred_check_branch
          %478 = sbr.rel (%p476) target = $region52
        $region51: #{tpu_custom_call.1} parent=11 // pred_region
          _
        $region52: #{tpu_custom_call.1} parent=11 // pred_fallthru
          _
        // Predicated region
        $region53: #{tpu_custom_call.1} parent=11 // pred_check
          %p479 = pneg %p285
        $region54: #{tpu_custom_call.1} parent=11 // pred_check_branch
          %481 = sbr.rel (%p479) target = $region56
        $region55: #{tpu_custom_call.1} parent=11 // pred_region
          _
        $region56: #{tpu_custom_call.1} parent=11 // pred_fallthru
          _
        // Predicated region
        $region57: #{tpu_custom_call.1} parent=11 // pred_check
          %p482 = pneg %p306
        $region58: #{tpu_custom_call.1} parent=11 // pred_check_branch
          %484 = sbr.rel (%p482) target = $region60
        $region59: #{tpu_custom_call.1} parent=11 // pred_region
          _
        $region60: #{tpu_custom_call.1} parent=11 // pred_fallthru
          _
        // Predicated region
        $region61: #{tpu_custom_call.1} parent=11 // pred_check
          %p485 = pneg %p327
        $region62: #{tpu_custom_call.1} parent=11 // pred_check_branch
          %487 = sbr.rel (%p485) target = $region64
        $region63: #{tpu_custom_call.1} parent=11 // pred_region
          _
        $region64: #{tpu_custom_call.1} parent=11 // pred_fallthru
          _
        // Predicated region
        $region65: #{tpu_custom_call.1} parent=11 // pred_check
          %p488 = pneg %p348
        $region66: #{tpu_custom_call.1} parent=11 // pred_check_branch
          %490 = sbr.rel (%p488) target = $region68
        $region67: #{tpu_custom_call.1} parent=11 // pred_region
          _
        $region68: #{tpu_custom_call.1} parent=11 // pred_fallthru
          _
      $region12: #{tpu_custom_call.1} parent=5 // pred_fallthru
        _
      %p491 = scmp.lt.s32.totalorder %s28, 2
      // Predicated region
      $region69: #{tpu_custom_call.1} parent=5 // pred_check
        %p492 = pneg %p491
      $region70: #{tpu_custom_call.1} parent=5 // pred_check_branch
        %494 = sbr.rel (%p492) target = $region72
      $region71: #{tpu_custom_call.1} parent=5 // pred_region
        // Predicated region
        $region73: #{tpu_custom_call.1} parent=71 // pred_check
          %p495 = pneg %p48
        $region74: #{tpu_custom_call.1} parent=71 // pred_check_branch
          %497 = sbr.rel (%p495) target = $region76
        $region75: #{tpu_custom_call.1} parent=71 // pred_region
          %p498 = scmp.lt.s32.totalorder %s28, 1
          %s499 = scalar_select %p498, %s28, 1
          %s500 = smul.addr %s499, 8
          %s501 = scalar_lea.vmem %s0, %s500
        $region76: #{tpu_custom_call.1} parent=71 // pred_fallthru
          _
      $region72: #{tpu_custom_call.1} parent=5 // pred_fallthru
        _
      %p502 = scmp.le.s32.totalorder 1, %s28
      %p503 = scmp.lt.s32.totalorder %s28, 3
      %p504 = pnand %p502, %p503
      %p505 = pneg %p504
      // Predicated region
      $region77: #{tpu_custom_call.1} parent=5 // pred_check
        _
      $region78: #{tpu_custom_call.1} parent=5 // pred_check_branch
        %507 = sbr.rel (%p504) target = $region80
      $region79: #{tpu_custom_call.1} parent=5 // pred_region
        %s508 = ssub.s32 %s28, 1
        // Predicated region
        $region81: #{tpu_custom_call.1} parent=79 // pred_check
          %p509 = pneg %p96
        $region82: #{tpu_custom_call.1} parent=79 // pred_check_branch
          %511 = sbr.rel (%p509) target = $region84
        $region83: #{tpu_custom_call.1} parent=79 // pred_region
          %512 = dma.done [#allocation4], 1152
        $region84: #{tpu_custom_call.1} parent=79 // pred_fallthru
          _
        // Predicated region
        $region85: #{tpu_custom_call.1} parent=79 // pred_check
          %p513 = pneg %p117
        $region86: #{tpu_custom_call.1} parent=79 // pred_check_branch
          %515 = sbr.rel (%p513) target = $region88
        $region87: #{tpu_custom_call.1} parent=79 // pred_region
          %516 = dma.done [#allocation7], 64
        $region88: #{tpu_custom_call.1} parent=79 // pred_fallthru
          _
        // Predicated region
        $region89: #{tpu_custom_call.1} parent=79 // pred_check
          %p517 = pneg %p138
        $region90: #{tpu_custom_call.1} parent=79 // pred_check_branch
          %519 = sbr.rel (%p517) target = $region92
        $region91: #{tpu_custom_call.1} parent=79 // pred_region
          %520 = dma.done [#allocation7], 64
        $region92: #{tpu_custom_call.1} parent=79 // pred_fallthru
          _
        // Predicated region
        $region93: #{tpu_custom_call.1} parent=79 // pred_check
          %p521 = pneg %p159
        $region94: #{tpu_custom_call.1} parent=79 // pred_check_branch
          %523 = sbr.rel (%p521) target = $region96
        $region95: #{tpu_custom_call.1} parent=79 // pred_region
          %524 = dma.done [#allocation10], 64
        $region96: #{tpu_custom_call.1} parent=79 // pred_fallthru
          _
        // Predicated region
        $region97: #{tpu_custom_call.1} parent=79 // pred_check
          %p525 = pneg %p180
        $region98: #{tpu_custom_call.1} parent=79 // pred_check_branch
          %527 = sbr.rel (%p525) target = $region100
        $region99: #{tpu_custom_call.1} parent=79 // pred_region
          %528 = dma.done [#allocation10], 64
        $region100: #{tpu_custom_call.1} parent=79 // pred_fallthru
          _
        // Predicated region
        $region101: #{tpu_custom_call.1} parent=79 // pred_check
          %p529 = pneg %p222
        $region102: #{tpu_custom_call.1} parent=79 // pred_check_branch
          %531 = sbr.rel (%p529) target = $region104
        $region103: #{tpu_custom_call.1} parent=79 // pred_region
          %532 = dma.done [#allocation13], 64
        $region104: #{tpu_custom_call.1} parent=79 // pred_fallthru
          _
        // Predicated region
        $region105: #{tpu_custom_call.1} parent=79 // pred_check
          %p533 = pneg %p243
        $region106: #{tpu_custom_call.1} parent=79 // pred_check_branch
          %535 = sbr.rel (%p533) target = $region108
        $region107: #{tpu_custom_call.1} parent=79 // pred_region
          %536 = dma.done [#allocation13], 16384
        $region108: #{tpu_custom_call.1} parent=79 // pred_fallthru
          _
        %p537 = scmp.lt.s32.totalorder %s33, 1
        %s538 = scalar_select %p537, %s33, 1
        %s539 = smul.addr %s538, 8
        %s540 = scalar_lea.vmem %s0, %s539
        %p541 = pneg %p54
        %p542 = pneg %p51
        %p543 = pneg %p75
        %p544 = pneg %p72
        %p545 = pneg %p96
        %p546 = pneg %p93
        %p547 = pneg %p117
        %p548 = pneg %p114
        %p549 = pneg %p138
        %p550 = pneg %p135
        %p551 = pneg %p159
        %p552 = pneg %p156
        %p553 = pneg %p180
        %p554 = pneg %p177
        %p555 = pneg %p201
        %p556 = pneg %p198
        %p557 = pneg %p222
        %p558 = pneg %p219
        %p559 = pneg %p243
        %p560 = pneg %p240
        %p561 = pneg %p264
        %p562 = pneg %p261
        %p563 = pneg %p285
        %p564 = pneg %p282
        %p565 = pneg %p306
        %p566 = pneg %p303
        %p567 = pneg %p327
        %p568 = pneg %p324
        %p569 = pneg %p348
        %p570 = pneg %p345
        %p571 = pneg %p374
        %p572 = pneg %p371
        %s573 = sand.u32 %s361, 1
        %s574 = scalar_lea.sflag [#allocation5], %s573
        %s575 = sand.u32 %s361, 1
        %s576 = smul.addr %s575, 16
        %s577 = scalar_lea.vmem [#allocation15], %s576
        %p578 = scmp.lt.s32.totalorder %s33, 1
        %s579 = scalar_select %p578, %s33, 1
        %s580 = smul.addr %s579, 8
        %s581 = scalar_lea.vmem %s0, %s580
        %v583 = vld [vmem:[%s581] sm:$0xff]
        %v584 = vld [vmem:[%s1] sm:$0xf]
        %v585 = vpack.c.bf16 %v583, %v583
        %vm586 = vcmask 64512
        %v588 = vsel %vm586, %v584, 0
        %vm590 = vcmask 1043456
        %v592 = vsel %vm590, %v585, 0
        %594 = vmatprep.subr.bf16.mxu0 0
        %595 = vmatpush1.bf16.msra.mxu0 %v592
        %596 = vmatprep.subr.bf16.mxu0 0
        %597 = vmatpush1.bf16.msra.mxu0 0
        %598 = vmatprep.subr.bf16.mxu0 0
        %599 = vmatpush1.bf16.msra.mxu0 0
        %600 = vmatprep.subr.bf16.mxu0 0
        %601 = vmatpush1.bf16.msra.mxu0 0
        %602 = vmatprep.subr.bf16.mxu0 0
        %603 = vmatpush1.bf16.msra.mxu0 0
        %604 = vmatprep.subr.bf16.mxu0 0
        %605 = vmatpush1.bf16.msra.mxu0 0
        %606 = vmatprep.subr.bf16.mxu0 0
        %607 = vmatpush1.bf16.msra.mxu0 0
        %608 = vmatprep.subr.bf16.mxu0 0
        %609 = vmatpush1.bf16.msra.mxu0 0
        %610 = vmatprep.subr.bf16.mxu0 0
        %611 = vmatpush1.bf16.msra.mxu0 0
        %612 = vmatprep.subr.bf16.mxu0 0
        %613 = vmatpush1.bf16.msra.mxu0 0
        %614 = vmatprep.subr.bf16.mxu0 0
        %615 = vmatpush1.bf16.msra.mxu0 0
        %616 = vmatprep.subr.bf16.mxu0 0
        %617 = vmatpush1.bf16.msra.mxu0 0
        %618 = vmatprep.subr.bf16.mxu0 0
        %619 = vmatpush1.bf16.msra.mxu0 0
        %620 = vmatprep.subr.bf16.mxu0 0
        %621 = vmatpush1.bf16.msra.mxu0 0
        %622 = vmatprep.subr.bf16.mxu0 0
        %623 = vmatpush1.bf16.msra.mxu0 0
        %624 = vmatprep.subr.bf16.mxu0 0
        %625 = vmatpush1.bf16.msra.mxu0 0
        %626 = vmatprep.mubr.bf16.mxu0 0
        %627 = vmatmul.mubr.bf16.gmra.mrb[0].mxu0 %v588
        %v628 = vpop.f32.mrb[0].mxu0
        %v629 = vadd.f32 0.0, %v628
        %v630 = vpop.f32.mrb[0].mxu0
        %v631 = vpop.f32.mrb[0].mxu0
        %v632 = vpop.f32.mrb[0].mxu0
        %633 = vdwg.mxu0
        %v634 = vld [vmem:[%s13] sm:$0xff]
        %636 = vset.pattern.permute.xlu0 0
        %637 = vperm.xlu0 %636, %v634
        %v638 = vpop.permute.xlu0 %637
        %v640 = vmul.f32 %v629, %v638
        %v641 = vld [vmem:[%s14] sm:$0xff]
        %643 = vset.pattern.permute.xlu0 0
        %644 = vperm.xlu0 %643, %v641
        %v645 = vpop.permute.xlu0 %644
        %v647 = vadd.f32 %v640, %v645
        %v648 = vmax.f32 %v647, 0.0
        %v649 = vpack.c.bf16 %v648, %v648
        %v650 = vld [vmem:[#allocation3] sm:$0xf]
        %v651 = vld [vmem:[#allocation3 + $0x4] sm:$0xf]
        %v654 = vunpack.c.l.b16 %v650
        %v655 = vunpack.c.l.b16 %v651
        %v656 = vpack.c.b16 %v655, %v654
        %vm658 = vcmask 130048
        %v660 = vsel %vm658, %v649, 0
        %662 = vmatprep.subr.bf16.mxu0 0
        %663 = vmatpush1.bf16.msra.mxu0 %v656
        %664 = vmatprep.subr.bf16.mxu0 0
        %665 = vmatpush1.bf16.msra.mxu0 0
        %666 = vmatprep.subr.bf16.mxu0 0
        %667 = vmatpush1.bf16.msra.mxu0 0
        %668 = vmatprep.subr.bf16.mxu0 0
        %669 = vmatpush1.bf16.msra.mxu0 0
        %670 = vmatprep.subr.bf16.mxu0 0
        %671 = vmatpush1.bf16.msra.mxu0 0
        %672 = vmatprep.subr.bf16.mxu0 0
        %673 = vmatpush1.bf16.msra.mxu0 0
        %674 = vmatprep.subr.bf16.mxu0 0
        %675 = vmatpush1.bf16.msra.mxu0 0
        %676 = vmatprep.subr.bf16.mxu0 0
        %677 = vmatpush1.bf16.msra.mxu0 0
        %678 = vmatprep.subr.bf16.mxu0 0
        %679 = vmatpush1.bf16.msra.mxu0 0
        %680 = vmatprep.subr.bf16.mxu0 0
        %681 = vmatpush1.bf16.msra.mxu0 0
        %682 = vmatprep.subr.bf16.mxu0 0
        %683 = vmatpush1.bf16.msra.mxu0 0
        %684 = vmatprep.subr.bf16.mxu0 0
        %685 = vmatpush1.bf16.msra.mxu0 0
        %686 = vmatprep.subr.bf16.mxu0 0
        %687 = vmatpush1.bf16.msra.mxu0 0
        %688 = vmatprep.subr.bf16.mxu0 0
        %689 = vmatpush1.bf16.msra.mxu0 0
        %690 = vmatprep.subr.bf16.mxu0 0
        %691 = vmatpush1.bf16.msra.mxu0 0
        %692 = vmatprep.subr.bf16.mxu0 0
        %693 = vmatpush1.bf16.msra.mxu0 0
        %694 = vmatprep.mubr.bf16.mxu0 0
        %695 = vmatmul.mubr.bf16.gmra.mrb[0].mxu0 %v660
        %v696 = vpop.f32.mrb[0].mxu0
        %v697 = vadd.f32 0.0, %v696
        %v698 = vpop.f32.mrb[0].mxu0
        %v699 = vpop.f32.mrb[0].mxu0
        %v700 = vpop.f32.mrb[0].mxu0
        %701 = vdwg.mxu0
        %702 = vst.msk [vmem:[#allocation2] sm:$0xff] %vm658, %v697
        %s703 = scalar_lea.vmem [#allocation3], 8
        %v704 = vld [vmem:[%s703] sm:$0xf]
        %v705 = vld [vmem:[%s703 + $0x4] sm:$0xf]
        %v708 = vunpack.c.l.b16 %v704
        %v709 = vunpack.c.l.b16 %v705
        %v710 = vpack.c.b16 %v709, %v708
        %712 = vmatprep.subr.bf16.mxu0 0
        %713 = vmatpush1.bf16.msra.mxu0 %v710
        %714 = vmatprep.subr.bf16.mxu0 0
        %715 = vmatpush1.bf16.msra.mxu0 0
        %716 = vmatprep.subr.bf16.mxu0 0
        %717 = vmatpush1.bf16.msra.mxu0 0
        %718 = vmatprep.subr.bf16.mxu0 0
        %719 = vmatpush1.bf16.msra.mxu0 0
        %720 = vmatprep.subr.bf16.mxu0 0
        %721 = vmatpush1.bf16.msra.mxu0 0
        %722 = vmatprep.subr.bf16.mxu0 0
        %723 = vmatpush1.bf16.msra.mxu0 0
        %724 = vmatprep.subr.bf16.mxu0 0
        %725 = vmatpush1.bf16.msra.mxu0 0
        %726 = vmatprep.subr.bf16.mxu0 0
        %727 = vmatpush1.bf16.msra.mxu0 0
        %728 = vmatprep.subr.bf16.mxu0 0
        %729 = vmatpush1.bf16.msra.mxu0 0
        %730 = vmatprep.subr.bf16.mxu0 0
        %731 = vmatpush1.bf16.msra.mxu0 0
        %732 = vmatprep.subr.bf16.mxu0 0
        %733 = vmatpush1.bf16.msra.mxu0 0
        %734 = vmatprep.subr.bf16.mxu0 0
        %735 = vmatpush1.bf16.msra.mxu0 0
        %736 = vmatprep.subr.bf16.mxu0 0
        %737 = vmatpush1.bf16.msra.mxu0 0
        %738 = vmatprep.subr.bf16.mxu0 0
        %739 = vmatpush1.bf16.msra.mxu0 0
        %740 = vmatprep.subr.bf16.mxu0 0
        %741 = vmatpush1.bf16.msra.mxu0 0
        %742 = vmatprep.subr.bf16.mxu0 0
        %743 = vmatpush1.bf16.msra.mxu0 0
        %744 = vmatprep.mubr.bf16.mxu0 0
        %745 = vmatmul.mubr.bf16.gmra.mrb[0].mxu0 %v660
        %v746 = vpop.f32.mrb[0].mxu0
        %v747 = vadd.f32 0.0, %v746
        %v748 = vpop.f32.mrb[0].mxu0
        %v749 = vpop.f32.mrb[0].mxu0
        %v750 = vpop.f32.mrb[0].mxu0
        %751 = vdwg.mxu0
        %752 = vst.msk [vmem:[#allocation2 + $0x10] sm:$0xff] %vm658, %v747
        %s753 = scalar_lea.vmem [#allocation3], 16
        %v754 = vld [vmem:[%s753] sm:$0xf]
        %v755 = vld [vmem:[%s753 + $0x4] sm:$0xf]
        %v758 = vunpack.c.l.b16 %v754
        %v759 = vunpack.c.l.b16 %v755
        %v760 = vpack.c.b16 %v759, %v758
        %762 = vmatprep.subr.bf16.mxu0 0
        %763 = vmatpush1.bf16.msra.mxu0 %v760
        %764 = vmatprep.subr.bf16.mxu0 0
        %765 = vmatpush1.bf16.msra.mxu0 0
        %766 = vmatprep.subr.bf16.mxu0 0
        %767 = vmatpush1.bf16.msra.mxu0 0
        %768 = vmatprep.subr.bf16.mxu0 0
        %769 = vmatpush1.bf16.msra.mxu0 0
        %770 = vmatprep.subr.bf16.mxu0 0
        %771 = vmatpush1.bf16.msra.mxu0 0
        %772 = vmatprep.subr.bf16.mxu0 0
        %773 = vmatpush1.bf16.msra.mxu0 0
        %774 = vmatprep.subr.bf16.mxu0 0
        %775 = vmatpush1.bf16.msra.mxu0 0
        %776 = vmatprep.subr.bf16.mxu0 0
        %777 = vmatpush1.bf16.msra.mxu0 0
        %778 = vmatprep.subr.bf16.mxu0 0
        %779 = vmatpush1.bf16.msra.mxu0 0
        %780 = vmatprep.subr.bf16.mxu0 0
        %781 = vmatpush1.bf16.msra.mxu0 0
        %782 = vmatprep.subr.bf16.mxu0 0
        %783 = vmatpush1.bf16.msra.mxu0 0
        %784 = vmatprep.subr.bf16.mxu0 0
        %785 = vmatpush1.bf16.msra.mxu0 0
        %786 = vmatprep.subr.bf16.mxu0 0
        %787 = vmatpush1.bf16.msra.mxu0 0
        %788 = vmatprep.subr.bf16.mxu0 0
        %789 = vmatpush1.bf16.msra.mxu0 0
        %790 = vmatprep.subr.bf16.mxu0 0
        %791 = vmatpush1.bf16.msra.mxu0 0
        %792 = vmatprep.subr.bf16.mxu0 0
        %793 = vmatpush1.bf16.msra.mxu0 0
        %794 = vmatprep.mubr.bf16.mxu0 0
        %795 = vmatmul.mubr.bf16.gmra.mrb[0].mxu0 %v660
        %v796 = vpop.f32.mrb[0].mxu0
        %v797 = vadd.f32 0.0, %v796
        %v798 = vpop.f32.mrb[0].mxu0
        %v799 = vpop.f32.mrb[0].mxu0
        %v800 = vpop.f32.mrb[0].mxu0
        %801 = vdwg.mxu0
        %802 = vst.msk [vmem:[#allocation2 + $0x20] sm:$0xff] %vm658, %v797
        %s803 = scalar_lea.vmem [#allocation3], 24
        %v804 = vld [vmem:[%s803] sm:$0xf]
        %v805 = vld [vmem:[%s803 + $0x4] sm:$0xf]
        %v808 = vunpack.c.l.b16 %v804
        %v809 = vunpack.c.l.b16 %v805
        %v810 = vpack.c.b16 %v809, %v808
        %812 = vmatprep.subr.bf16.mxu0 0
        %813 = vmatpush1.bf16.msra.mxu0 %v810
        %814 = vmatprep.subr.bf16.mxu0 0
        %815 = vmatpush1.bf16.msra.mxu0 0
        %816 = vmatprep.subr.bf16.mxu0 0
        %817 = vmatpush1.bf16.msra.mxu0 0
        %818 = vmatprep.subr.bf16.mxu0 0
        %819 = vmatpush1.bf16.msra.mxu0 0
        %820 = vmatprep.subr.bf16.mxu0 0
        %821 = vmatpush1.bf16.msra.mxu0 0
        %822 = vmatprep.subr.bf16.mxu0 0
        %823 = vmatpush1.bf16.msra.mxu0 0
        %824 = vmatprep.subr.bf16.mxu0 0
        %825 = vmatpush1.bf16.msra.mxu0 0
        %826 = vmatprep.subr.bf16.mxu0 0
        %827 = vmatpush1.bf16.msra.mxu0 0
        %828 = vmatprep.subr.bf16.mxu0 0
        %829 = vmatpush1.bf16.msra.mxu0 0
        %830 = vmatprep.subr.bf16.mxu0 0
        %831 = vmatpush1.bf16.msra.mxu0 0
        %832 = vmatprep.subr.bf16.mxu0 0
        %833 = vmatpush1.bf16.msra.mxu0 0
        %834 = vmatprep.subr.bf16.mxu0 0
        %835 = vmatpush1.bf16.msra.mxu0 0
        %836 = vmatprep.subr.bf16.mxu0 0
        %837 = vmatpush1.bf16.msra.mxu0 0
        %838 = vmatprep.subr.bf16.mxu0 0
        %839 = vmatpush1.bf16.msra.mxu0 0
        %840 = vmatprep.subr.bf16.mxu0 0
        %841 = vmatpush1.bf16.msra.mxu0 0
        %842 = vmatprep.subr.bf16.mxu0 0
        %843 = vmatpush1.bf16.msra.mxu0 0
        %844 = vmatprep.mubr.bf16.mxu0 0
        %845 = vmatmul.mubr.bf16.gmra.mrb[0].mxu0 %v660
        %v846 = vpop.f32.mrb[0].mxu0
        %v847 = vadd.f32 0.0, %v846
        %v848 = vpop.f32.mrb[0].mxu0
        %v849 = vpop.f32.mrb[0].mxu0
        %v850 = vpop.f32.mrb[0].mxu0
        %851 = vdwg.mxu0
        %852 = vst.msk [vmem:[#allocation2 + $0x30] sm:$0xff] %vm658, %v847
        %s853 = scalar_lea.vmem [#allocation3], 32
        %v854 = vld [vmem:[%s853] sm:$0xf]
        %v855 = vld [vmem:[%s853 + $0x4] sm:$0xf]
        %v858 = vunpack.c.l.b16 %v854
        %v859 = vunpack.c.l.b16 %v855
        %v860 = vpack.c.b16 %v859, %v858
        %862 = vmatprep.subr.bf16.mxu0 0
        %863 = vmatpush1.bf16.msra.mxu0 %v860
        %864 = vmatprep.subr.bf16.mxu0 0
        %865 = vmatpush1.bf16.msra.mxu0 0
        %866 = vmatprep.subr.bf16.mxu0 0
        %867 = vmatpush1.bf16.msra.mxu0 0
        %868 = vmatprep.subr.bf16.mxu0 0
        %869 = vmatpush1.bf16.msra.mxu0 0
        %870 = vmatprep.subr.bf16.mxu0 0
        %871 = vmatpush1.bf16.msra.mxu0 0
        %872 = vmatprep.subr.bf16.mxu0 0
        %873 = vmatpush1.bf16.msra.mxu0 0
        %874 = vmatprep.subr.bf16.mxu0 0
        %875 = vmatpush1.bf16.msra.mxu0 0
        %876 = vmatprep.subr.bf16.mxu0 0
        %877 = vmatpush1.bf16.msra.mxu0 0
        %878 = vmatprep.subr.bf16.mxu0 0
        %879 = vmatpush1.bf16.msra.mxu0 0
        %880 = vmatprep.subr.bf16.mxu0 0
        %881 = vmatpush1.bf16.msra.mxu0 0
        %882 = vmatprep.subr.bf16.mxu0 0
        %883 = vmatpush1.bf16.msra.mxu0 0
        %884 = vmatprep.subr.bf16.mxu0 0
        %885 = vmatpush1.bf16.msra.mxu0 0
        %886 = vmatprep.subr.bf16.mxu0 0
        %887 = vmatpush1.bf16.msra.mxu0 0
        %888 = vmatprep.subr.bf16.mxu0 0
        %889 = vmatpush1.bf16.msra.mxu0 0
        %890 = vmatprep.subr.bf16.mxu0 0
        %891 = vmatpush1.bf16.msra.mxu0 0
        %892 = vmatprep.subr.bf16.mxu0 0
        %893 = vmatpush1.bf16.msra.mxu0 0
        %894 = vmatprep.mubr.bf16.mxu0 0
        %895 = vmatmul.mubr.bf16.gmra.mrb[0].mxu0 %v660
        %v896 = vpop.f32.mrb[0].mxu0
        %v897 = vadd.f32 0.0, %v896
        %v898 = vpop.f32.mrb[0].mxu0
        %v899 = vpop.f32.mrb[0].mxu0
        %v900 = vpop.f32.mrb[0].mxu0
        %901 = vdwg.mxu0
        %902 = vst.msk [vmem:[#allocation2 + $0x40] sm:$0xff] %vm658, %v897
        %s903 = scalar_lea.vmem [#allocation3], 40
        %v904 = vld [vmem:[%s903] sm:$0xf]
        %v905 = vld [vmem:[%s903 + $0x4] sm:$0xf]
        %v908 = vunpack.c.l.b16 %v904
        %v909 = vunpack.c.l.b16 %v905
        %v910 = vpack.c.b16 %v909, %v908
        %912 = vmatprep.subr.bf16.mxu0 0
        %913 = vmatpush1.bf16.msra.mxu0 %v910
        %914 = vmatprep.subr.bf16.mxu0 0
        %915 = vmatpush1.bf16.msra.mxu0 0
        %916 = vmatprep.subr.bf16.mxu0 0
        %917 = vmatpush1.bf16.msra.mxu0 0
        %918 = vmatprep.subr.bf16.mxu0 0
        %919 = vmatpush1.bf16.msra.mxu0 0
        %920 = vmatprep.subr.bf16.mxu0 0
        %921 = vmatpush1.bf16.msra.mxu0 0
        %922 = vmatprep.subr.bf16.mxu0 0
        %923 = vmatpush1.bf16.msra.mxu0 0
        %924 = vmatprep.subr.bf16.mxu0 0
        %925 = vmatpush1.bf16.msra.mxu0 0
        %926 = vmatprep.subr.bf16.mxu0 0
        %927 = vmatpush1.bf16.msra.mxu0 0
        %928 = vmatprep.subr.bf16.mxu0 0
        %929 = vmatpush1.bf16.msra.mxu0 0
        %930 = vmatprep.subr.bf16.mxu0 0
        %931 = vmatpush1.bf16.msra.mxu0 0
        %932 = vmatprep.subr.bf16.mxu0 0
        %933 = vmatpush1.bf16.msra.mxu0 0
        %934 = vmatprep.subr.bf16.mxu0 0
        %935 = vmatpush1.bf16.msra.mxu0 0
        %936 = vmatprep.subr.bf16.mxu0 0
        %937 = vmatpush1.bf16.msra.mxu0 0
        %938 = vmatprep.subr.bf16.mxu0 0
        %939 = vmatpush1.bf16.msra.mxu0 0
        %940 = vmatprep.subr.bf16.mxu0 0
        %941 = vmatpush1.bf16.msra.mxu0 0
        %942 = vmatprep.subr.bf16.mxu0 0
        %943 = vmatpush1.bf16.msra.mxu0 0
        %944 = vmatprep.mubr.bf16.mxu0 0
        %945 = vmatmul.mubr.bf16.gmra.mrb[0].mxu0 %v660
        %v946 = vpop.f32.mrb[0].mxu0
        %v947 = vadd.f32 0.0, %v946
        %v948 = vpop.f32.mrb[0].mxu0
        %v949 = vpop.f32.mrb[0].mxu0
        %v950 = vpop.f32.mrb[0].mxu0
        %951 = vdwg.mxu0
        %952 = vst.msk [vmem:[#allocation2 + $0x50] sm:$0xff] %vm658, %v947
        %s953 = scalar_lea.vmem [#allocation3], 48
        %v954 = vld [vmem:[%s953] sm:$0xf]
        %v955 = vld [vmem:[%s953 + $0x4] sm:$0xf]
        %v958 = vunpack.c.l.b16 %v954
        %v959 = vunpack.c.l.b16 %v955
        %v960 = vpack.c.b16 %v959, %v958
        %962 = vmatprep.subr.bf16.mxu0 0
        %963 = vmatpush1.bf16.msra.mxu0 %v960
        %964 = vmatprep.subr.bf16.mxu0 0
        %965 = vmatpush1.bf16.msra.mxu0 0
        %966 = vmatprep.subr.bf16.mxu0 0
        %967 = vmatpush1.bf16.msra.mxu0 0
        %968 = vmatprep.subr.bf16.mxu0 0
        %969 = vmatpush1.bf16.msra.mxu0 0
        %970 = vmatprep.subr.bf16.mxu0 0
        %971 = vmatpush1.bf16.msra.mxu0 0
        %972 = vmatprep.subr.bf16.mxu0 0
        %973 = vmatpush1.bf16.msra.mxu0 0
        %974 = vmatprep.subr.bf16.mxu0 0
        %975 = vmatpush1.bf16.msra.mxu0 0
        %976 = vmatprep.subr.bf16.mxu0 0
        %977 = vmatpush1.bf16.msra.mxu0 0
        %978 = vmatprep.subr.bf16.mxu0 0
        %979 = vmatpush1.bf16.msra.mxu0 0
        %980 = vmatprep.subr.bf16.mxu0 0
        %981 = vmatpush1.bf16.msra.mxu0 0
        %982 = vmatprep.subr.bf16.mxu0 0
        %983 = vmatpush1.bf16.msra.mxu0 0
        %984 = vmatprep.subr.bf16.mxu0 0
        %985 = vmatpush1.bf16.msra.mxu0 0
        %986 = vmatprep.subr.bf16.mxu0 0
        %987 = vmatpush1.bf16.msra.mxu0 0
        %988 = vmatprep.subr.bf16.mxu0 0
        %989 = vmatpush1.bf16.msra.mxu0 0
        %990 = vmatprep.subr.bf16.mxu0 0
        %991 = vmatpush1.bf16.msra.mxu0 0
        %992 = vmatprep.subr.bf16.mxu0 0
        %993 = vmatpush1.bf16.msra.mxu0 0
        %994 = vmatprep.mubr.bf16.mxu0 0
        %995 = vmatmul.mubr.bf16.gmra.mrb[0].mxu0 %v660
        %v996 = vpop.f32.mrb[0].mxu0
        %v997 = vadd.f32 0.0, %v996
        %v998 = vpop.f32.mrb[0].mxu0
        %v999 = vpop.f32.mrb[0].mxu0
        %v1000 = vpop.f32.mrb[0].mxu0
        %1001 = vdwg.mxu0
        %1002 = vst.msk [vmem:[#allocation2 + $0x60] sm:$0xff] %vm658, %v997
        %s1003 = scalar_lea.vmem [#allocation3], 56
        %v1004 = vld [vmem:[%s1003] sm:$0xf]
        %v1005 = vld [vmem:[%s1003 + $0x4] sm:$0xf]
        %v1008 = vunpack.c.l.b16 %v1004
        %v1009 = vunpack.c.l.b16 %v1005
        %v1010 = vpack.c.b16 %v1009, %v1008
        %1012 = vmatprep.subr.bf16.mxu0 0
        %1013 = vmatpush1.bf16.msra.mxu0 %v1010
        %1014 = vmatprep.subr.bf16.mxu0 0
        %1015 = vmatpush1.bf16.msra.mxu0 0
        %1016 = vmatprep.subr.bf16.mxu0 0
        %1017 = vmatpush1.bf16.msra.mxu0 0
        %1018 = vmatprep.subr.bf16.mxu0 0
        %1019 = vmatpush1.bf16.msra.mxu0 0
        %1020 = vmatprep.subr.bf16.mxu0 0
        %1021 = vmatpush1.bf16.msra.mxu0 0
        %1022 = vmatprep.subr.bf16.mxu0 0
        %1023 = vmatpush1.bf16.msra.mxu0 0
        %1024 = vmatprep.subr.bf16.mxu0 0
        %1025 = vmatpush1.bf16.msra.mxu0 0
        %1026 = vmatprep.subr.bf16.mxu0 0
        %1027 = vmatpush1.bf16.msra.mxu0 0
        %1028 = vmatprep.subr.bf16.mxu0 0
        %1029 = vmatpush1.bf16.msra.mxu0 0
        %1030 = vmatprep.subr.bf16.mxu0 0
        %1031 = vmatpush1.bf16.msra.mxu0 0
        %1032 = vmatprep.subr.bf16.mxu0 0
        %1033 = vmatpush1.bf16.msra.mxu0 0
        %1034 = vmatprep.subr.bf16.mxu0 0
        %1035 = vmatpush1.bf16.msra.mxu0 0
        %1036 = vmatprep.subr.bf16.mxu0 0
        %1037 = vmatpush1.bf16.msra.mxu0 0
        %1038 = vmatprep.subr.bf16.mxu0 0
        %1039 = vmatpush1.bf16.msra.mxu0 0
        %1040 = vmatprep.subr.bf16.mxu0 0
        %1041 = vmatpush1.bf16.msra.mxu0 0
        %1042 = vmatprep.subr.bf16.mxu0 0
        %1043 = vmatpush1.bf16.msra.mxu0 0
        %1044 = vmatprep.mubr.bf16.mxu0 0
        %1045 = vmatmul.mubr.bf16.gmra.mrb[0].mxu0 %v660
        %v1046 = vpop.f32.mrb[0].mxu0
        %v1047 = vadd.f32 0.0, %v1046
        %v1048 = vpop.f32.mrb[0].mxu0
        %v1049 = vpop.f32.mrb[0].mxu0
        %v1050 = vpop.f32.mrb[0].mxu0
        %1051 = vdwg.mxu0
        %1052 = vst.msk [vmem:[#allocation2 + $0x70] sm:$0xff] %vm658, %v1047
        %s1053 = scalar_lea.vmem [#allocation3], 64
        %v1054 = vld [vmem:[%s1053] sm:$0xf]
        %v1055 = vld [vmem:[%s1053 + $0x4] sm:$0xf]
        %v1058 = vunpack.c.l.b16 %v1054
        %v1059 = vunpack.c.l.b16 %v1055
        %v1060 = vpack.c.b16 %v1059, %v1058
        %1062 = vmatprep.subr.bf16.mxu0 0
        %1063 = vmatpush1.bf16.msra.mxu0 %v1060
        %1064 = vmatprep.subr.bf16.mxu0 0
        %1065 = vmatpush1.bf16.msra.mxu0 0
        %1066 = vmatprep.subr.bf16.mxu0 0
        %1067 = vmatpush1.bf16.msra.mxu0 0
        %1068 = vmatprep.subr.bf16.mxu0 0
        %1069 = vmatpush1.bf16.msra.mxu0 0
        %1070 = vmatprep.subr.bf16.mxu0 0
        %1071 = vmatpush1.bf16.msra.mxu0 0
        %1072 = vmatprep.subr.bf16.mxu0 0
        %1073 = vmatpush1.bf16.msra.mxu0 0
        %1074 = vmatprep.subr.bf16.mxu0 0
        %1075 = vmatpush1.bf16.msra.mxu0 0
        %1076 = vmatprep.subr.bf16.mxu0 0
        %1077 = vmatpush1.bf16.msra.mxu0 0
        %1078 = vmatprep.subr.bf16.mxu0 0
        %1079 = vmatpush1.bf16.msra.mxu0 0
        %1080 = vmatprep.subr.bf16.mxu0 0
        %1081 = vmatpush1.bf16.msra.mxu0 0
        %1082 = vmatprep.subr.bf16.mxu0 0
        %1083 = vmatpush1.bf16.msra.mxu0 0
        %1084 = vmatprep.subr.bf16.mxu0 0
        %1085 = vmatpush1.bf16.msra.mxu0 0
        %1086 = vmatprep.subr.bf16.mxu0 0
        %1087 = vmatpush1.bf16.msra.mxu0 0
        %1088 = vmatprep.subr.bf16.mxu0 0
        %1089 = vmatpush1.bf16.msra.mxu0 0
        %1090 = vmatprep.subr.bf16.mxu0 0
        %1091 = vmatpush1.bf16.msra.mxu0 0
        %1092 = vmatprep.subr.bf16.mxu0 0
        %1093 = vmatpush1.bf16.msra.mxu0 0
        %1094 = vmatprep.mubr.bf16.mxu0 0
        %1095 = vmatmul.mubr.bf16.gmra.mrb[0].mxu0 %v660
        %v1096 = vpop.f32.mrb[0].mxu0
        %v1097 = vadd.f32 0.0, %v1096
        %v1098 = vpop.f32.mrb[0].mxu0
        %v1099 = vpop.f32.mrb[0].mxu0
        %v1100 = vpop.f32.mrb[0].mxu0
        %1101 = vdwg.mxu0
        %1102 = vst.msk [vmem:[#allocation2 + $0x80] sm:$0xff] %vm658, %v1097
        %v1103 = vld [vmem:[#allocation6] sm:$0xf]
        %v1104 = vld [vmem:[#allocation2] sm:$0xff]
        %v1105 = vld [vmem:[#allocation2 + $0x10] sm:$0xff]
        %v1106 = vld [vmem:[#allocation2 + $0x20] sm:$0xff]
        %v1107 = vld [vmem:[#allocation2 + $0x30] sm:$0xff]
        %v1108 = vld [vmem:[#allocation2 + $0x40] sm:$0xff]
        %v1109 = vld [vmem:[#allocation2 + $0x50] sm:$0xff]
        %v1110 = vld [vmem:[#allocation2 + $0x60] sm:$0xff]
        %v1111 = vld [vmem:[#allocation2 + $0x70] sm:$0xff]
        %v1112 = vld [vmem:[#allocation2 + $0x80] sm:$0xff]
        %v1113 = vpack.c.bf16 %v1105, %v1104
        %v1114 = vpack.c.bf16 %v1107, %v1106
        %v1115 = vpack.c.bf16 %v1109, %v1108
        %v1116 = vpack.c.bf16 %v1111, %v1110
        %v1117 = vpack.c.bf16 %v1112, %v1112
        %vm1118 = vcmask 588800
        %v1120 = vsel %vm1118, %v1103, 0
        %v1123 = vsel %vm590, %v1117, 0
        %1125 = vmatprep.subr.bf16.mxu0 0
        %1126 = vmatpush1.bf16.msra.mxu0 %v1113
        %1127 = vmatprep.subr.bf16.mxu0 0
        %1128 = vmatpush1.bf16.msra.mxu0 %v1114
        %1129 = vmatprep.subr.bf16.mxu0 0
        %1130 = vmatpush1.bf16.msra.mxu0 %v1115
        %1131 = vmatprep.subr.bf16.mxu0 0
        %1132 = vmatpush1.bf16.msra.mxu0 %v1116
        %1133 = vmatprep.subr.bf16.mxu0 0
        %1134 = vmatpush1.bf16.msra.mxu0 %v1123
        %1135 = vmatprep.subr.bf16.mxu0 0
        %1136 = vmatpush1.bf16.msra.mxu0 0
        %1137 = vmatprep.subr.bf16.mxu0 0
        %1138 = vmatpush1.bf16.msra.mxu0 0
        %1139 = vmatprep.subr.bf16.mxu0 0
        %1140 = vmatpush1.bf16.msra.mxu0 0
        %1141 = vmatprep.subr.bf16.mxu0 0
        %1142 = vmatpush1.bf16.msra.mxu0 0
        %1143 = vmatprep.subr.bf16.mxu0 0
        %1144 = vmatpush1.bf16.msra.mxu0 0
        %1145 = vmatprep.subr.bf16.mxu0 0
        %1146 = vmatpush1.bf16.msra.mxu0 0
        %1147 = vmatprep.subr.bf16.mxu0 0
        %1148 = vmatpush1.bf16.msra.mxu0 0
        %1149 = vmatprep.subr.bf16.mxu0 0
        %1150 = vmatpush1.bf16.msra.mxu0 0
        %1151 = vmatprep.subr.bf16.mxu0 0
        %1152 = vmatpush1.bf16.msra.mxu0 0
        %1153 = vmatprep.subr.bf16.mxu0 0
        %1154 = vmatpush1.bf16.msra.mxu0 0
        %1155 = vmatprep.subr.bf16.mxu0 0
        %1156 = vmatpush1.bf16.msra.mxu0 0
        %1157 = vmatprep.mubr.bf16.mxu0 0
        %1158 = vmatmul.mubr.bf16.gmra.mrb[0].mxu0 %v1120
        %v1159 = vpop.f32.mrb[0].mxu0
        %v1160 = vadd.f32 0.0, %v1159
        %v1161 = vpop.f32.mrb[0].mxu0
        %v1162 = vpop.f32.mrb[0].mxu0
        %v1163 = vpop.f32.mrb[0].mxu0
        %1164 = vdwg.mxu0
        %s1165 = scalar_lea.vmem %s13, 8
        %v1166 = vld [vmem:[%s1165] sm:$0xff]
        %1168 = vset.pattern.permute.xlu0 0
        %1169 = vperm.xlu0 %1168, %v1166
        %v1170 = vpop.permute.xlu0 %1169
        %v1172 = vmul.f32 %v1160, %v1170
        %s1173 = scalar_lea.vmem %s14, 8
        %v1174 = vld [vmem:[%s1173] sm:$0xff]
        %1176 = vset.pattern.permute.xlu0 0
        %1177 = vperm.xlu0 %1176, %v1174
        %v1178 = vpop.permute.xlu0 %1177
        %v1180 = vadd.f32 %v1172, %v1178
        %v1181 = vmax.f32 %v1180, 0.0
        %v1182 = vld [vmem:[#allocation8] sm:$0xf]
        %v1183 = vpack.c.bf16 %v1181, %v1181
        %v1185 = vsel %vm586, %v1182, 0
        %v1188 = vsel %vm590, %v1183, 0
        %1190 = vmatprep.subr.bf16.mxu0 0
        %1191 = vmatpush1.bf16.msra.mxu0 %v1188
        %1192 = vmatprep.subr.bf16.mxu0 0
        %1193 = vmatpush1.bf16.msra.mxu0 0
        %1194 = vmatprep.subr.bf16.mxu0 0
        %1195 = vmatpush1.bf16.msra.mxu0 0
        %1196 = vmatprep.subr.bf16.mxu0 0
        %1197 = vmatpush1.bf16.msra.mxu0 0
        %1198 = vmatprep.subr.bf16.mxu0 0
        %1199 = vmatpush1.bf16.msra.mxu0 0
        %1200 = vmatprep.subr.bf16.mxu0 0
        %1201 = vmatpush1.bf16.msra.mxu0 0
        %1202 = vmatprep.subr.bf16.mxu0 0
        %1203 = vmatpush1.bf16.msra.mxu0 0
        %1204 = vmatprep.subr.bf16.mxu0 0
        %1205 = vmatpush1.bf16.msra.mxu0 0
        %1206 = vmatprep.subr.bf16.mxu0 0
        %1207 = vmatpush1.bf16.msra.mxu0 0
        %1208 = vmatprep.subr.bf16.mxu0 0
        %1209 = vmatpush1.bf16.msra.mxu0 0
        %1210 = vmatprep.subr.bf16.mxu0 0
        %1211 = vmatpush1.bf16.msra.mxu0 0
        %1212 = vmatprep.subr.bf16.mxu0 0
        %1213 = vmatpush1.bf16.msra.mxu0 0
        %1214 = vmatprep.subr.bf16.mxu0 0
        %1215 = vmatpush1.bf16.msra.mxu0 0
        %1216 = vmatprep.subr.bf16.mxu0 0
        %1217 = vmatpush1.bf16.msra.mxu0 0
        %1218 = vmatprep.subr.bf16.mxu0 0
        %1219 = vmatpush1.bf16.msra.mxu0 0
        %1220 = vmatprep.subr.bf16.mxu0 0
        %1221 = vmatpush1.bf16.msra.mxu0 0
        %1222 = vmatprep.mubr.bf16.mxu0 0
        %1223 = vmatmul.mubr.bf16.gmra.mrb[0].mxu0 %v1185
        %v1224 = vpop.f32.mrb[0].mxu0
        %v1225 = vadd.f32 0.0, %v1224
        %v1226 = vpop.f32.mrb[0].mxu0
        %v1227 = vpop.f32.mrb[0].mxu0
        %v1228 = vpop.f32.mrb[0].mxu0
        %1229 = vdwg.mxu0
        %s1230 = scalar_lea.vmem %s13, 16
        %v1231 = vld [vmem:[%s1230] sm:$0xff]
        %1233 = vset.pattern.permute.xlu0 0
        %1234 = vperm.xlu0 %1233, %v1231
        %v1235 = vpop.permute.xlu0 %1234
        %v1237 = vmul.f32 %v1225, %v1235
        %s1238 = scalar_lea.vmem %s14, 16
        %v1239 = vld [vmem:[%s1238] sm:$0xff]
        %1241 = vset.pattern.permute.xlu0 0
        %1242 = vperm.xlu0 %1241, %v1239
        %v1243 = vpop.permute.xlu0 %1242
        %v1245 = vadd.f32 %v1237, %v1243
        %v1246 = vadd.f32 %v647, %v1245
        %v1247 = vmax.f32 %v1246, 0.0
        %v1248 = vpack.c.bf16 %v1247, %v1247
        %v1249 = vld [vmem:[#allocation3] sm:$0xf]
        %v1250 = vld [vmem:[#allocation3 + $0x4] sm:$0xf]
        %v1253 = vunpack.c.l.b16 %v1249
        %v1254 = vunpack.c.l.b16 %v1250
        %v1255 = vpack.c.b16 %v1254, %v1253
        %v1258 = vsel %vm658, %v1248, 0
        %1260 = vmatprep.subr.bf16.mxu0 0
        %1261 = vmatpush1.bf16.msra.mxu0 %v1255
        %1262 = vmatprep.subr.bf16.mxu0 0
        %1263 = vmatpush1.bf16.msra.mxu0 0
        %1264 = vmatprep.subr.bf16.mxu0 0
        %1265 = vmatpush1.bf16.msra.mxu0 0
        %1266 = vmatprep.subr.bf16.mxu0 0
        %1267 = vmatpush1.bf16.msra.mxu0 0
        %1268 = vmatprep.subr.bf16.mxu0 0
        %1269 = vmatpush1.bf16.msra.mxu0 0
        %1270 = vmatprep.subr.bf16.mxu0 0
        %1271 = vmatpush1.bf16.msra.mxu0 0
        %1272 = vmatprep.subr.bf16.mxu0 0
        %1273 = vmatpush1.bf16.msra.mxu0 0
        %1274 = vmatprep.subr.bf16.mxu0 0
        %1275 = vmatpush1.bf16.msra.mxu0 0
        %1276 = vmatprep.subr.bf16.mxu0 0
        %1277 = vmatpush1.bf16.msra.mxu0 0
        %1278 = vmatprep.subr.bf16.mxu0 0
        %1279 = vmatpush1.bf16.msra.mxu0 0
        %1280 = vmatprep.subr.bf16.mxu0 0
        %1281 = vmatpush1.bf16.msra.mxu0 0
        %1282 = vmatprep.subr.bf16.mxu0 0
        %1283 = vmatpush1.bf16.msra.mxu0 0
        %1284 = vmatprep.subr.bf16.mxu0 0
        %1285 = vmatpush1.bf16.msra.mxu0 0
        %1286 = vmatprep.subr.bf16.mxu0 0
        %1287 = vmatpush1.bf16.msra.mxu0 0
        %1288 = vmatprep.subr.bf16.mxu0 0
        %1289 = vmatpush1.bf16.msra.mxu0 0
        %1290 = vmatprep.subr.bf16.mxu0 0
        %1291 = vmatpush1.bf16.msra.mxu0 0
        %1292 = vmatprep.mubr.bf16.mxu0 0
        %1293 = vmatmul.mubr.bf16.gmra.mrb[0].mxu0 %v1258
        %v1294 = vpop.f32.mrb[0].mxu0
        %v1295 = vadd.f32 0.0, %v1294
        %v1296 = vpop.f32.mrb[0].mxu0
        %v1297 = vpop.f32.mrb[0].mxu0
        %v1298 = vpop.f32.mrb[0].mxu0
        %1299 = vdwg.mxu0
        %1300 = vst.msk [vmem:[#allocation2] sm:$0xff] %vm658, %v1295
        %v1301 = vld [vmem:[%s703] sm:$0xf]
        %v1302 = vld [vmem:[%s703 + $0x4] sm:$0xf]
        %v1305 = vunpack.c.l.b16 %v1301
        %v1306 = vunpack.c.l.b16 %v1302
        %v1307 = vpack.c.b16 %v1306, %v1305
        %1309 = vmatprep.subr.bf16.mxu0 0
        %1310 = vmatpush1.bf16.msra.mxu0 %v1307
        %1311 = vmatprep.subr.bf16.mxu0 0
        %1312 = vmatpush1.bf16.msra.mxu0 0
        %1313 = vmatprep.subr.bf16.mxu0 0
        %1314 = vmatpush1.bf16.msra.mxu0 0
        %1315 = vmatprep.subr.bf16.mxu0 0
        %1316 = vmatpush1.bf16.msra.mxu0 0
        %1317 = vmatprep.subr.bf16.mxu0 0
        %1318 = vmatpush1.bf16.msra.mxu0 0
        %1319 = vmatprep.subr.bf16.mxu0 0
        %1320 = vmatpush1.bf16.msra.mxu0 0
        %1321 = vmatprep.subr.bf16.mxu0 0
        %1322 = vmatpush1.bf16.msra.mxu0 0
        %1323 = vmatprep.subr.bf16.mxu0 0
        %1324 = vmatpush1.bf16.msra.mxu0 0
        %1325 = vmatprep.subr.bf16.mxu0 0
        %1326 = vmatpush1.bf16.msra.mxu0 0
        %1327 = vmatprep.subr.bf16.mxu0 0
        %1328 = vmatpush1.bf16.msra.mxu0 0
        %1329 = vmatprep.subr.bf16.mxu0 0
        %1330 = vmatpush1.bf16.msra.mxu0 0
        %1331 = vmatprep.subr.bf16.mxu0 0
        %1332 = vmatpush1.bf16.msra.mxu0 0
        %1333 = vmatprep.subr.bf16.mxu0 0
        %1334 = vmatpush1.bf16.msra.mxu0 0
        %1335 = vmatprep.subr.bf16.mxu0 0
        %1336 = vmatpush1.bf16.msra.mxu0 0
        %1337 = vmatprep.subr.bf16.mxu0 0
        %1338 = vmatpush1.bf16.msra.mxu0 0
        %1339 = vmatprep.subr.bf16.mxu0 0
        %1340 = vmatpush1.bf16.msra.mxu0 0
        %1341 = vmatprep.mubr.bf16.mxu0 0
        %1342 = vmatmul.mubr.bf16.gmra.mrb[0].mxu0 %v1258
        %v1343 = vpop.f32.mrb[0].mxu0
        %v1344 = vadd.f32 0.0, %v1343
        %v1345 = vpop.f32.mrb[0].mxu0
        %v1346 = vpop.f32.mrb[0].mxu0
        %v1347 = vpop.f32.mrb[0].mxu0
        %1348 = vdwg.mxu0
        %1349 = vst.msk [vmem:[#allocation2 + $0x10] sm:$0xff] %vm658, %v1344
        %v1350 = vld [vmem:[%s753] sm:$0xf]
        %v1351 = vld [vmem:[%s753 + $0x4] sm:$0xf]
        %v1354 = vunpack.c.l.b16 %v1350
        %v1355 = vunpack.c.l.b16 %v1351
        %v1356 = vpack.c.b16 %v1355, %v1354
        %1358 = vmatprep.subr.bf16.mxu0 0
        %1359 = vmatpush1.bf16.msra.mxu0 %v1356
        %1360 = vmatprep.subr.bf16.mxu0 0
        %1361 = vmatpush1.bf16.msra.mxu0 0
        %1362 = vmatprep.subr.bf16.mxu0 0
        %1363 = vmatpush1.bf16.msra.mxu0 0
        %1364 = vmatprep.subr.bf16.mxu0 0
        %1365 = vmatpush1.bf16.msra.mxu0 0
        %1366 = vmatprep.subr.bf16.mxu0 0
        %1367 = vmatpush1.bf16.msra.mxu0 0
        %1368 = vmatprep.subr.bf16.mxu0 0
        %1369 = vmatpush1.bf16.msra.mxu0 0
        %1370 = vmatprep.subr.bf16.mxu0 0
        %1371 = vmatpush1.bf16.msra.mxu0 0
        %1372 = vmatprep.subr.bf16.mxu0 0
        %1373 = vmatpush1.bf16.msra.mxu0 0
        %1374 = vmatprep.subr.bf16.mxu0 0
        %1375 = vmatpush1.bf16.msra.mxu0 0
        %1376 = vmatprep.subr.bf16.mxu0 0
        %1377 = vmatpush1.bf16.msra.mxu0 0
        %1378 = vmatprep.subr.bf16.mxu0 0
        %1379 = vmatpush1.bf16.msra.mxu0 0
        %1380 = vmatprep.subr.bf16.mxu0 0
        %1381 = vmatpush1.bf16.msra.mxu0 0
        %1382 = vmatprep.subr.bf16.mxu0 0
        %1383 = vmatpush1.bf16.msra.mxu0 0
        %1384 = vmatprep.subr.bf16.mxu0 0
        %1385 = vmatpush1.bf16.msra.mxu0 0
        %1386 = vmatprep.subr.bf16.mxu0 0
        %1387 = vmatpush1.bf16.msra.mxu0 0
        %1388 = vmatprep.subr.bf16.mxu0 0
        %1389 = vmatpush1.bf16.msra.mxu0 0
        %1390 = vmatprep.mubr.bf16.mxu0 0
        %1391 = vmatmul.mubr.bf16.gmra.mrb[0].mxu0 %v1258
        %v1392 = vpop.f32.mrb[0].mxu0
        %v1393 = vadd.f32 0.0, %v1392
        %v1394 = vpop.f32.mrb[0].mxu0
        %v1395 = vpop.f32.mrb[0].mxu0
        %v1396 = vpop.f32.mrb[0].mxu0
        %1397 = vdwg.mxu0
        %1398 = vst.msk [vmem:[#allocation2 + $0x20] sm:$0xff] %vm658, %v1393
        %v1399 = vld [vmem:[%s803] sm:$0xf]
        %v1400 = vld [vmem:[%s803 + $0x4] sm:$0xf]
        %v1403 = vunpack.c.l.b16 %v1399
        %v1404 = vunpack.c.l.b16 %v1400
        %v1405 = vpack.c.b16 %v1404, %v1403
        %1407 = vmatprep.subr.bf16.mxu0 0
        %1408 = vmatpush1.bf16.msra.mxu0 %v1405
        %1409 = vmatprep.subr.bf16.mxu0 0
        %1410 = vmatpush1.bf16.msra.mxu0 0
        %1411 = vmatprep.subr.bf16.mxu0 0
        %1412 = vmatpush1.bf16.msra.mxu0 0
        %1413 = vmatprep.subr.bf16.mxu0 0
        %1414 = vmatpush1.bf16.msra.mxu0 0
        %1415 = vmatprep.subr.bf16.mxu0 0
        %1416 = vmatpush1.bf16.msra.mxu0 0
        %1417 = vmatprep.subr.bf16.mxu0 0
        %1418 = vmatpush1.bf16.msra.mxu0 0
        %1419 = vmatprep.subr.bf16.mxu0 0
        %1420 = vmatpush1.bf16.msra.mxu0 0
        %1421 = vmatprep.subr.bf16.mxu0 0
        %1422 = vmatpush1.bf16.msra.mxu0 0
        %1423 = vmatprep.subr.bf16.mxu0 0
        %1424 = vmatpush1.bf16.msra.mxu0 0
        %1425 = vmatprep.subr.bf16.mxu0 0
        %1426 = vmatpush1.bf16.msra.mxu0 0
        %1427 = vmatprep.subr.bf16.mxu0 0
        %1428 = vmatpush1.bf16.msra.mxu0 0
        %1429 = vmatprep.subr.bf16.mxu0 0
        %1430 = vmatpush1.bf16.msra.mxu0 0
        %1431 = vmatprep.subr.bf16.mxu0 0
        %1432 = vmatpush1.bf16.msra.mxu0 0
        %1433 = vmatprep.subr.bf16.mxu0 0
        %1434 = vmatpush1.bf16.msra.mxu0 0
        %1435 = vmatprep.subr.bf16.mxu0 0
        %1436 = vmatpush1.bf16.msra.mxu0 0
        %1437 = vmatprep.subr.bf16.mxu0 0
        %1438 = vmatpush1.bf16.msra.mxu0 0
        %1439 = vmatprep.mubr.bf16.mxu0 0
        %1440 = vmatmul.mubr.bf16.gmra.mrb[0].mxu0 %v1258
        %v1441 = vpop.f32.mrb[0].mxu0
        %v1442 = vadd.f32 0.0, %v1441
        %v1443 = vpop.f32.mrb[0].mxu0
        %v1444 = vpop.f32.mrb[0].mxu0
        %v1445 = vpop.f32.mrb[0].mxu0
        %1446 = vdwg.mxu0
        %1447 = vst.msk [vmem:[#allocation2 + $0x30] sm:$0xff] %vm658, %v1442
        %v1448 = vld [vmem:[%s853] sm:$0xf]
        %v1449 = vld [vmem:[%s853 + $0x4] sm:$0xf]
        %v1452 = vunpack.c.l.b16 %v1448
        %v1453 = vunpack.c.l.b16 %v1449
        %v1454 = vpack.c.b16 %v1453, %v1452
        %1456 = vmatprep.subr.bf16.mxu0 0
        %1457 = vmatpush1.bf16.msra.mxu0 %v1454
        %1458 = vmatprep.subr.bf16.mxu0 0
        %1459 = vmatpush1.bf16.msra.mxu0 0
        %1460 = vmatprep.subr.bf16.mxu0 0
        %1461 = vmatpush1.bf16.msra.mxu0 0
        %1462 = vmatprep.subr.bf16.mxu0 0
        %1463 = vmatpush1.bf16.msra.mxu0 0
        %1464 = vmatprep.subr.bf16.mxu0 0
        %1465 = vmatpush1.bf16.msra.mxu0 0
        %1466 = vmatprep.subr.bf16.mxu0 0
        %1467 = vmatpush1.bf16.msra.mxu0 0
        %1468 = vmatprep.subr.bf16.mxu0 0
        %1469 = vmatpush1.bf16.msra.mxu0 0
        %1470 = vmatprep.subr.bf16.mxu0 0
        %1471 = vmatpush1.bf16.msra.mxu0 0
        %1472 = vmatprep.subr.bf16.mxu0 0
        %1473 = vmatpush1.bf16.msra.mxu0 0
        %1474 = vmatprep.subr.bf16.mxu0 0
        %1475 = vmatpush1.bf16.msra.mxu0 0
        %1476 = vmatprep.subr.bf16.mxu0 0
        %1477 = vmatpush1.bf16.msra.mxu0 0
        %1478 = vmatprep.subr.bf16.mxu0 0
        %1479 = vmatpush1.bf16.msra.mxu0 0
        %1480 = vmatprep.subr.bf16.mxu0 0
        %1481 = vmatpush1.bf16.msra.mxu0 0
        %1482 = vmatprep.subr.bf16.mxu0 0
        %1483 = vmatpush1.bf16.msra.mxu0 0
        %1484 = vmatprep.subr.bf16.mxu0 0
        %1485 = vmatpush1.bf16.msra.mxu0 0
        %1486 = vmatprep.subr.bf16.mxu0 0
        %1487 = vmatpush1.bf16.msra.mxu0 0
        %1488 = vmatprep.mubr.bf16.mxu0 0
        %1489 = vmatmul.mubr.bf16.gmra.mrb[0].mxu0 %v1258
        %v1490 = vpop.f32.mrb[0].mxu0
        %v1491 = vadd.f32 0.0, %v1490
        %v1492 = vpop.f32.mrb[0].mxu0
        %v1493 = vpop.f32.mrb[0].mxu0
        %v1494 = vpop.f32.mrb[0].mxu0
        %1495 = vdwg.mxu0
        %1496 = vst.msk [vmem:[#allocation2 + $0x40] sm:$0xff] %vm658, %v1491
        %v1497 = vld [vmem:[%s903] sm:$0xf]
        %v1498 = vld [vmem:[%s903 + $0x4] sm:$0xf]
        %v1501 = vunpack.c.l.b16 %v1497
        %v1502 = vunpack.c.l.b16 %v1498
        %v1503 = vpack.c.b16 %v1502, %v1501
        %1505 = vmatprep.subr.bf16.mxu0 0
        %1506 = vmatpush1.bf16.msra.mxu0 %v1503
        %1507 = vmatprep.subr.bf16.mxu0 0
        %1508 = vmatpush1.bf16.msra.mxu0 0
        %1509 = vmatprep.subr.bf16.mxu0 0
        %1510 = vmatpush1.bf16.msra.mxu0 0
        %1511 = vmatprep.subr.bf16.mxu0 0
        %1512 = vmatpush1.bf16.msra.mxu0 0
        %1513 = vmatprep.subr.bf16.mxu0 0
        %1514 = vmatpush1.bf16.msra.mxu0 0
        %1515 = vmatprep.subr.bf16.mxu0 0
        %1516 = vmatpush1.bf16.msra.mxu0 0
        %1517 = vmatprep.subr.bf16.mxu0 0
        %1518 = vmatpush1.bf16.msra.mxu0 0
        %1519 = vmatprep.subr.bf16.mxu0 0
        %1520 = vmatpush1.bf16.msra.mxu0 0
        %1521 = vmatprep.subr.bf16.mxu0 0
        %1522 = vmatpush1.bf16.msra.mxu0 0
        %1523 = vmatprep.subr.bf16.mxu0 0
        %1524 = vmatpush1.bf16.msra.mxu0 0
        %1525 = vmatprep.subr.bf16.mxu0 0
        %1526 = vmatpush1.bf16.msra.mxu0 0
        %1527 = vmatprep.subr.bf16.mxu0 0
        %1528 = vmatpush1.bf16.msra.mxu0 0
        %1529 = vmatprep.subr.bf16.mxu0 0
        %1530 = vmatpush1.bf16.msra.mxu0 0
        %1531 = vmatprep.subr.bf16.mxu0 0
        %1532 = vmatpush1.bf16.msra.mxu0 0
        %1533 = vmatprep.subr.bf16.mxu0 0
        %1534 = vmatpush1.bf16.msra.mxu0 0
        %1535 = vmatprep.subr.bf16.mxu0 0
        %1536 = vmatpush1.bf16.msra.mxu0 0
        %1537 = vmatprep.mubr.bf16.mxu0 0
        %1538 = vmatmul.mubr.bf16.gmra.mrb[0].mxu0 %v1258
        %v1539 = vpop.f32.mrb[0].mxu0
        %v1540 = vadd.f32 0.0, %v1539
        %v1541 = vpop.f32.mrb[0].mxu0
        %v1542 = vpop.f32.mrb[0].mxu0
        %v1543 = vpop.f32.mrb[0].mxu0
        %1544 = vdwg.mxu0
        %1545 = vst.msk [vmem:[#allocation2 + $0x50] sm:$0xff] %vm658, %v1540
        %v1546 = vld [vmem:[%s953] sm:$0xf]
        %v1547 = vld [vmem:[%s953 + $0x4] sm:$0xf]
        %v1550 = vunpack.c.l.b16 %v1546
        %v1551 = vunpack.c.l.b16 %v1547
        %v1552 = vpack.c.b16 %v1551, %v1550
        %1554 = vmatprep.subr.bf16.mxu0 0
        %1555 = vmatpush1.bf16.msra.mxu0 %v1552
        %1556 = vmatprep.subr.bf16.mxu0 0
        %1557 = vmatpush1.bf16.msra.mxu0 0
        %1558 = vmatprep.subr.bf16.mxu0 0
        %1559 = vmatpush1.bf16.msra.mxu0 0
        %1560 = vmatprep.subr.bf16.mxu0 0
        %1561 = vmatpush1.bf16.msra.mxu0 0
        %1562 = vmatprep.subr.bf16.mxu0 0
        %1563 = vmatpush1.bf16.msra.mxu0 0
        %1564 = vmatprep.subr.bf16.mxu0 0
        %1565 = vmatpush1.bf16.msra.mxu0 0
        %1566 = vmatprep.subr.bf16.mxu0 0
        %1567 = vmatpush1.bf16.msra.mxu0 0
        %1568 = vmatprep.subr.bf16.mxu0 0
        %1569 = vmatpush1.bf16.msra.mxu0 0
        %1570 = vmatprep.subr.bf16.mxu0 0
        %1571 = vmatpush1.bf16.msra.mxu0 0
        %1572 = vmatprep.subr.bf16.mxu0 0
        %1573 = vmatpush1.bf16.msra.mxu0 0
        %1574 = vmatprep.subr.bf16.mxu0 0
        %1575 = vmatpush1.bf16.msra.mxu0 0
        %1576 = vmatprep.subr.bf16.mxu0 0
        %1577 = vmatpush1.bf16.msra.mxu0 0
        %1578 = vmatprep.subr.bf16.mxu0 0
        %1579 = vmatpush1.bf16.msra.mxu0 0
        %1580 = vmatprep.subr.bf16.mxu0 0
        %1581 = vmatpush1.bf16.msra.mxu0 0
        %1582 = vmatprep.subr.bf16.mxu0 0
        %1583 = vmatpush1.bf16.msra.mxu0 0
        %1584 = vmatprep.subr.bf16.mxu0 0
        %1585 = vmatpush1.bf16.msra.mxu0 0
        %1586 = vmatprep.mubr.bf16.mxu0 0
        %1587 = vmatmul.mubr.bf16.gmra.mrb[0].mxu0 %v1258
        %v1588 = vpop.f32.mrb[0].mxu0
        %v1589 = vadd.f32 0.0, %v1588
        %v1590 = vpop.f32.mrb[0].mxu0
        %v1591 = vpop.f32.mrb[0].mxu0
        %v1592 = vpop.f32.mrb[0].mxu0
        %1593 = vdwg.mxu0
        %1594 = vst.msk [vmem:[#allocation2 + $0x60] sm:$0xff] %vm658, %v1589
        %v1595 = vld [vmem:[%s1003] sm:$0xf]
        %v1596 = vld [vmem:[%s1003 + $0x4] sm:$0xf]
        %v1599 = vunpack.c.l.b16 %v1595
        %v1600 = vunpack.c.l.b16 %v1596
        %v1601 = vpack.c.b16 %v1600, %v1599
        %1603 = vmatprep.subr.bf16.mxu0 0
        %1604 = vmatpush1.bf16.msra.mxu0 %v1601
        %1605 = vmatprep.subr.bf16.mxu0 0
        %1606 = vmatpush1.bf16.msra.mxu0 0
        %1607 = vmatprep.subr.bf16.mxu0 0
        %1608 = vmatpush1.bf16.msra.mxu0 0
        %1609 = vmatprep.subr.bf16.mxu0 0
        %1610 = vmatpush1.bf16.msra.mxu0 0
        %1611 = vmatprep.subr.bf16.mxu0 0
        %1612 = vmatpush1.bf16.msra.mxu0 0
        %1613 = vmatprep.subr.bf16.mxu0 0
        %1614 = vmatpush1.bf16.msra.mxu0 0
        %1615 = vmatprep.subr.bf16.mxu0 0
        %1616 = vmatpush1.bf16.msra.mxu0 0
        %1617 = vmatprep.subr.bf16.mxu0 0
        %1618 = vmatpush1.bf16.msra.mxu0 0
        %1619 = vmatprep.subr.bf16.mxu0 0
        %1620 = vmatpush1.bf16.msra.mxu0 0
        %1621 = vmatprep.subr.bf16.mxu0 0
        %1622 = vmatpush1.bf16.msra.mxu0 0
        %1623 = vmatprep.subr.bf16.mxu0 0
        %1624 = vmatpush1.bf16.msra.mxu0 0
        %1625 = vmatprep.subr.bf16.mxu0 0
        %1626 = vmatpush1.bf16.msra.mxu0 0
        %1627 = vmatprep.subr.bf16.mxu0 0
        %1628 = vmatpush1.bf16.msra.mxu0 0
        %1629 = vmatprep.subr.bf16.mxu0 0
        %1630 = vmatpush1.bf16.msra.mxu0 0
        %1631 = vmatprep.subr.bf16.mxu0 0
        %1632 = vmatpush1.bf16.msra.mxu0 0
        %1633 = vmatprep.subr.bf16.mxu0 0
        %1634 = vmatpush1.bf16.msra.mxu0 0
        %1635 = vmatprep.mubr.bf16.mxu0 0
        %1636 = vmatmul.mubr.bf16.gmra.mrb[0].mxu0 %v1258
        %v1637 = vpop.f32.mrb[0].mxu0
        %v1638 = vadd.f32 0.0, %v1637
        %v1639 = vpop.f32.mrb[0].mxu0
        %v1640 = vpop.f32.mrb[0].mxu0
        %v1641 = vpop.f32.mrb[0].mxu0
        %1642 = vdwg.mxu0
        %1643 = vst.msk [vmem:[#allocation2 + $0x70] sm:$0xff] %vm658, %v1638
        %v1644 = vld [vmem:[%s1053] sm:$0xf]
        %v1645 = vld [vmem:[%s1053 + $0x4] sm:$0xf]
        %v1648 = vunpack.c.l.b16 %v1644
        %v1649 = vunpack.c.l.b16 %v1645
        %v1650 = vpack.c.b16 %v1649, %v1648
        %1652 = vmatprep.subr.bf16.mxu0 0
        %1653 = vmatpush1.bf16.msra.mxu0 %v1650
        %1654 = vmatprep.subr.bf16.mxu0 0
        %1655 = vmatpush1.bf16.msra.mxu0 0
        %1656 = vmatprep.subr.bf16.mxu0 0
        %1657 = vmatpush1.bf16.msra.mxu0 0
        %1658 = vmatprep.subr.bf16.mxu0 0
        %1659 = vmatpush1.bf16.msra.mxu0 0
        %1660 = vmatprep.subr.bf16.mxu0 0
        %1661 = vmatpush1.bf16.msra.mxu0 0
        %1662 = vmatprep.subr.bf16.mxu0 0
        %1663 = vmatpush1.bf16.msra.mxu0 0
        %1664 = vmatprep.subr.bf16.mxu0 0
        %1665 = vmatpush1.bf16.msra.mxu0 0
        %1666 = vmatprep.subr.bf16.mxu0 0
        %1667 = vmatpush1.bf16.msra.mxu0 0
        %1668 = vmatprep.subr.bf16.mxu0 0
        %1669 = vmatpush1.bf16.msra.mxu0 0
        %1670 = vmatprep.subr.bf16.mxu0 0
        %1671 = vmatpush1.bf16.msra.mxu0 0
        %1672 = vmatprep.subr.bf16.mxu0 0
        %1673 = vmatpush1.bf16.msra.mxu0 0
        %1674 = vmatprep.subr.bf16.mxu0 0
        %1675 = vmatpush1.bf16.msra.mxu0 0
        %1676 = vmatprep.subr.bf16.mxu0 0
        %1677 = vmatpush1.bf16.msra.mxu0 0
        %1678 = vmatprep.subr.bf16.mxu0 0
        %1679 = vmatpush1.bf16.msra.mxu0 0
        %1680 = vmatprep.subr.bf16.mxu0 0
        %1681 = vmatpush1.bf16.msra.mxu0 0
        %1682 = vmatprep.subr.bf16.mxu0 0
        %1683 = vmatpush1.bf16.msra.mxu0 0
        %1684 = vmatprep.mubr.bf16.mxu0 0
        %1685 = vmatmul.mubr.bf16.gmra.mrb[0].mxu0 %v1258
        %v1686 = vpop.f32.mrb[0].mxu0
        %v1687 = vadd.f32 0.0, %v1686
        %v1688 = vpop.f32.mrb[0].mxu0
        %v1689 = vpop.f32.mrb[0].mxu0
        %v1690 = vpop.f32.mrb[0].mxu0
        %1691 = vdwg.mxu0
        %1692 = vst.msk [vmem:[#allocation2 + $0x80] sm:$0xff] %vm658, %v1687
        %v1693 = vld [vmem:[#allocation9] sm:$0xf]
        %v1694 = vld [vmem:[#allocation2] sm:$0xff]
        %v1695 = vld [vmem:[#allocation2 + $0x10] sm:$0xff]
        %v1696 = vld [vmem:[#allocation2 + $0x20] sm:$0xff]
        %v1697 = vld [vmem:[#allocation2 + $0x30] sm:$0xff]
        %v1698 = vld [vmem:[#allocation2 + $0x40] sm:$0xff]
        %v1699 = vld [vmem:[#allocation2 + $0x50] sm:$0xff]
        %v1700 = vld [vmem:[#allocation2 + $0x60] sm:$0xff]
        %v1701 = vld [vmem:[#allocation2 + $0x70] sm:$0xff]
        %v1702 = vld [vmem:[#allocation2 + $0x80] sm:$0xff]
        %v1703 = vpack.c.bf16 %v1695, %v1694
        %v1704 = vpack.c.bf16 %v1697, %v1696
        %v1705 = vpack.c.bf16 %v1699, %v1698
        %v1706 = vpack.c.bf16 %v1701, %v1700
        %v1707 = vpack.c.bf16 %v1702, %v1702
        %v1709 = vsel %vm1118, %v1693, 0
        %v1712 = vsel %vm590, %v1707, 0
        %1714 = vmatprep.subr.bf16.mxu0 0
        %1715 = vmatpush1.bf16.msra.mxu0 %v1703
        %1716 = vmatprep.subr.bf16.mxu0 0
        %1717 = vmatpush1.bf16.msra.mxu0 %v1704
        %1718 = vmatprep.subr.bf16.mxu0 0
        %1719 = vmatpush1.bf16.msra.mxu0 %v1705
        %1720 = vmatprep.subr.bf16.mxu0 0
        %1721 = vmatpush1.bf16.msra.mxu0 %v1706
        %1722 = vmatprep.subr.bf16.mxu0 0
        %1723 = vmatpush1.bf16.msra.mxu0 %v1712
        %1724 = vmatprep.subr.bf16.mxu0 0
        %1725 = vmatpush1.bf16.msra.mxu0 0
        %1726 = vmatprep.subr.bf16.mxu0 0
        %1727 = vmatpush1.bf16.msra.mxu0 0
        %1728 = vmatprep.subr.bf16.mxu0 0
        %1729 = vmatpush1.bf16.msra.mxu0 0
        %1730 = vmatprep.subr.bf16.mxu0 0
        %1731 = vmatpush1.bf16.msra.mxu0 0
        %1732 = vmatprep.subr.bf16.mxu0 0
        %1733 = vmatpush1.bf16.msra.mxu0 0
        %1734 = vmatprep.subr.bf16.mxu0 0
        %1735 = vmatpush1.bf16.msra.mxu0 0
        %1736 = vmatprep.subr.bf16.mxu0 0
        %1737 = vmatpush1.bf16.msra.mxu0 0
        %1738 = vmatprep.subr.bf16.mxu0 0
        %1739 = vmatpush1.bf16.msra.mxu0 0
        %1740 = vmatprep.subr.bf16.mxu0 0
        %1741 = vmatpush1.bf16.msra.mxu0 0
        %1742 = vmatprep.subr.bf16.mxu0 0
        %1743 = vmatpush1.bf16.msra.mxu0 0
        %1744 = vmatprep.subr.bf16.mxu0 0
        %1745 = vmatpush1.bf16.msra.mxu0 0
        %1746 = vmatprep.mubr.bf16.mxu0 0
        %1747 = vmatmul.mubr.bf16.gmra.mrb[0].mxu0 %v1709
        %v1748 = vpop.f32.mrb[0].mxu0
        %v1749 = vadd.f32 0.0, %v1748
        %v1750 = vpop.f32.mrb[0].mxu0
        %v1751 = vpop.f32.mrb[0].mxu0
        %v1752 = vpop.f32.mrb[0].mxu0
        %1753 = vdwg.mxu0
        %s1754 = scalar_lea.vmem %s13, 24
        %v1755 = vld [vmem:[%s1754] sm:$0xff]
        %1757 = vset.pattern.permute.xlu0 0
        %1758 = vperm.xlu0 %1757, %v1755
        %v1759 = vpop.permute.xlu0 %1758
        %v1761 = vmul.f32 %v1749, %v1759
        %s1762 = scalar_lea.vmem %s14, 24
        %v1763 = vld [vmem:[%s1762] sm:$0xff]
        %1765 = vset.pattern.permute.xlu0 0
        %1766 = vperm.xlu0 %1765, %v1763
        %v1767 = vpop.permute.xlu0 %1766
        %v1769 = vadd.f32 %v1761, %v1767
        %v1770 = vmax.f32 %v1769, 0.0
        %v1771 = vld [vmem:[#allocation11] sm:$0xf]
        %v1772 = vpack.c.bf16 %v1770, %v1770
        %v1774 = vsel %vm586, %v1771, 0
        %v1777 = vsel %vm590, %v1772, 0
        %1779 = vmatprep.subr.bf16.mxu0 0
        %1780 = vmatpush1.bf16.msra.mxu0 %v1777
        %1781 = vmatprep.subr.bf16.mxu0 0
        %1782 = vmatpush1.bf16.msra.mxu0 0
        %1783 = vmatprep.subr.bf16.mxu0 0
        %1784 = vmatpush1.bf16.msra.mxu0 0
        %1785 = vmatprep.subr.bf16.mxu0 0
        %1786 = vmatpush1.bf16.msra.mxu0 0
        %1787 = vmatprep.subr.bf16.mxu0 0
        %1788 = vmatpush1.bf16.msra.mxu0 0
        %1789 = vmatprep.subr.bf16.mxu0 0
        %1790 = vmatpush1.bf16.msra.mxu0 0
        %1791 = vmatprep.subr.bf16.mxu0 0
        %1792 = vmatpush1.bf16.msra.mxu0 0
        %1793 = vmatprep.subr.bf16.mxu0 0
        %1794 = vmatpush1.bf16.msra.mxu0 0
        %1795 = vmatprep.subr.bf16.mxu0 0
        %1796 = vmatpush1.bf16.msra.mxu0 0
        %1797 = vmatprep.subr.bf16.mxu0 0
        %1798 = vmatpush1.bf16.msra.mxu0 0
        %1799 = vmatprep.subr.bf16.mxu0 0
        %1800 = vmatpush1.bf16.msra.mxu0 0
        %1801 = vmatprep.subr.bf16.mxu0 0
        %1802 = vmatpush1.bf16.msra.mxu0 0
        %1803 = vmatprep.subr.bf16.mxu0 0
        %1804 = vmatpush1.bf16.msra.mxu0 0
        %1805 = vmatprep.subr.bf16.mxu0 0
        %1806 = vmatpush1.bf16.msra.mxu0 0
        %1807 = vmatprep.subr.bf16.mxu0 0
        %1808 = vmatpush1.bf16.msra.mxu0 0
        %1809 = vmatprep.subr.bf16.mxu0 0
        %1810 = vmatpush1.bf16.msra.mxu0 0
        %1811 = vmatprep.mubr.bf16.mxu0 0
        %1812 = vmatmul.mubr.bf16.gmra.mrb[0].mxu0 %v1774
        %v1813 = vpop.f32.mrb[0].mxu0
        %v1814 = vadd.f32 0.0, %v1813
        %v1815 = vpop.f32.mrb[0].mxu0
        %v1816 = vpop.f32.mrb[0].mxu0
        %v1817 = vpop.f32.mrb[0].mxu0
        %1818 = vdwg.mxu0
        %s1819 = scalar_lea.vmem %s13, 32
        %v1820 = vld [vmem:[%s1819] sm:$0xff]
        %1822 = vset.pattern.permute.xlu0 0
        %1823 = vperm.xlu0 %1822, %v1820
        %v1824 = vpop.permute.xlu0 %1823
        %v1826 = vmul.f32 %v1814, %v1824
        %s1827 = scalar_lea.vmem %s14, 32
        %v1828 = vld [vmem:[%s1827] sm:$0xff]
        %1830 = vset.pattern.permute.xlu0 0
        %1831 = vperm.xlu0 %1830, %v1828
        %v1832 = vpop.permute.xlu0 %1831
        %v1834 = vadd.f32 %v1826, %v1832
        %v1835 = vadd.f32 %v1246, %v1834
        %v1836 = vpack.c.bf16 %v1835, %v1835
        %v1837 = vld [vmem:[%s7] sm:$0xf]
        %v1838 = vld [vmem:[%s7 + $0x4] sm:$0xf]
        %v1841 = vunpack.c.l.b16 %v1837
        %v1842 = vunpack.c.l.b16 %v1838
        %v1843 = vpack.c.b16 %v1842, %v1841
        %v1846 = vsel %vm658, %v1836, 0
        %1848 = vmatprep.subr.bf16.mxu0 0
        %1849 = vmatpush1.bf16.msra.mxu0 %v1843
        %1850 = vmatprep.subr.bf16.mxu0 0
        %1851 = vmatpush1.bf16.msra.mxu0 0
        %1852 = vmatprep.subr.bf16.mxu0 0
        %1853 = vmatpush1.bf16.msra.mxu0 0
        %1854 = vmatprep.subr.bf16.mxu0 0
        %1855 = vmatpush1.bf16.msra.mxu0 0
        %1856 = vmatprep.subr.bf16.mxu0 0
        %1857 = vmatpush1.bf16.msra.mxu0 0
        %1858 = vmatprep.subr.bf16.mxu0 0
        %1859 = vmatpush1.bf16.msra.mxu0 0
        %1860 = vmatprep.subr.bf16.mxu0 0
        %1861 = vmatpush1.bf16.msra.mxu0 0
        %1862 = vmatprep.subr.bf16.mxu0 0
        %1863 = vmatpush1.bf16.msra.mxu0 0
        %1864 = vmatprep.subr.bf16.mxu0 0
        %1865 = vmatpush1.bf16.msra.mxu0 0
        %1866 = vmatprep.subr.bf16.mxu0 0
        %1867 = vmatpush1.bf16.msra.mxu0 0
        %1868 = vmatprep.subr.bf16.mxu0 0
        %1869 = vmatpush1.bf16.msra.mxu0 0
        %1870 = vmatprep.subr.bf16.mxu0 0
        %1871 = vmatpush1.bf16.msra.mxu0 0
        %1872 = vmatprep.subr.bf16.mxu0 0
        %1873 = vmatpush1.bf16.msra.mxu0 0
        %1874 = vmatprep.subr.bf16.mxu0 0
        %1875 = vmatpush1.bf16.msra.mxu0 0
        %1876 = vmatprep.subr.bf16.mxu0 0
        %1877 = vmatpush1.bf16.msra.mxu0 0
        %1878 = vmatprep.subr.bf16.mxu0 0
        %1879 = vmatpush1.bf16.msra.mxu0 0
        %1880 = vmatprep.mubr.bf16.mxu0 0
        %1881 = vmatmul.mubr.bf16.gmra.mrb[0].mxu0 %v1846
        %v1882 = vpop.f32.mrb[0].mxu0
        %v1883 = vadd.f32 0.0, %v1882
        %v1884 = vpop.f32.mrb[0].mxu0
        %v1885 = vpop.f32.mrb[0].mxu0
        %v1886 = vpop.f32.mrb[0].mxu0
        %1887 = vdwg.mxu0
        %vm1888 = vcmask 523264
        %1889 = vst.msk [vmem:[#allocation2] sm:$0xff] %vm1888, %v1883
        %s1890 = scalar_lea.vmem %s7, 8
        %v1891 = vld [vmem:[%s1890] sm:$0xf]
        %v1892 = vld [vmem:[%s1890 + $0x4] sm:$0xf]
        %v1895 = vunpack.c.l.b16 %v1891
        %v1896 = vunpack.c.l.b16 %v1892
        %v1897 = vpack.c.b16 %v1896, %v1895
        %1899 = vmatprep.subr.bf16.mxu0 0
        %1900 = vmatpush1.bf16.msra.mxu0 %v1897
        %1901 = vmatprep.subr.bf16.mxu0 0
        %1902 = vmatpush1.bf16.msra.mxu0 0
        %1903 = vmatprep.subr.bf16.mxu0 0
        %1904 = vmatpush1.bf16.msra.mxu0 0
        %1905 = vmatprep.subr.bf16.mxu0 0
        %1906 = vmatpush1.bf16.msra.mxu0 0
        %1907 = vmatprep.subr.bf16.mxu0 0
        %1908 = vmatpush1.bf16.msra.mxu0 0
        %1909 = vmatprep.subr.bf16.mxu0 0
        %1910 = vmatpush1.bf16.msra.mxu0 0
        %1911 = vmatprep.subr.bf16.mxu0 0
        %1912 = vmatpush1.bf16.msra.mxu0 0
        %1913 = vmatprep.subr.bf16.mxu0 0
        %1914 = vmatpush1.bf16.msra.mxu0 0
        %1915 = vmatprep.subr.bf16.mxu0 0
        %1916 = vmatpush1.bf16.msra.mxu0 0
        %1917 = vmatprep.subr.bf16.mxu0 0
        %1918 = vmatpush1.bf16.msra.mxu0 0
        %1919 = vmatprep.subr.bf16.mxu0 0
        %1920 = vmatpush1.bf16.msra.mxu0 0
        %1921 = vmatprep.subr.bf16.mxu0 0
        %1922 = vmatpush1.bf16.msra.mxu0 0
        %1923 = vmatprep.subr.bf16.mxu0 0
        %1924 = vmatpush1.bf16.msra.mxu0 0
        %1925 = vmatprep.subr.bf16.mxu0 0
        %1926 = vmatpush1.bf16.msra.mxu0 0
        %1927 = vmatprep.subr.bf16.mxu0 0
        %1928 = vmatpush1.bf16.msra.mxu0 0
        %1929 = vmatprep.subr.bf16.mxu0 0
        %1930 = vmatpush1.bf16.msra.mxu0 0
        %1931 = vmatprep.mubr.bf16.mxu0 0
        %1932 = vmatmul.mubr.bf16.gmra.mrb[0].mxu0 %v1846
        %v1933 = vpop.f32.mrb[0].mxu0
        %v1934 = vadd.f32 0.0, %v1933
        %v1935 = vpop.f32.mrb[0].mxu0
        %v1936 = vpop.f32.mrb[0].mxu0
        %v1937 = vpop.f32.mrb[0].mxu0
        %1938 = vdwg.mxu0
        %1939 = vst.msk [vmem:[#allocation2 + $0x10] sm:$0xff] %vm1888, %v1934
        %s1940 = scalar_lea.vmem %s7, 16
        %v1941 = vld [vmem:[%s1940] sm:$0xf]
        %v1942 = vld [vmem:[%s1940 + $0x4] sm:$0xf]
        %v1945 = vunpack.c.l.b16 %v1941
        %v1946 = vunpack.c.l.b16 %v1942
        %v1947 = vpack.c.b16 %v1946, %v1945
        %1949 = vmatprep.subr.bf16.mxu0 0
        %1950 = vmatpush1.bf16.msra.mxu0 %v1947
        %1951 = vmatprep.subr.bf16.mxu0 0
        %1952 = vmatpush1.bf16.msra.mxu0 0
        %1953 = vmatprep.subr.bf16.mxu0 0
        %1954 = vmatpush1.bf16.msra.mxu0 0
        %1955 = vmatprep.subr.bf16.mxu0 0
        %1956 = vmatpush1.bf16.msra.mxu0 0
        %1957 = vmatprep.subr.bf16.mxu0 0
        %1958 = vmatpush1.bf16.msra.mxu0 0
        %1959 = vmatprep.subr.bf16.mxu0 0
        %1960 = vmatpush1.bf16.msra.mxu0 0
        %1961 = vmatprep.subr.bf16.mxu0 0
        %1962 = vmatpush1.bf16.msra.mxu0 0
        %1963 = vmatprep.subr.bf16.mxu0 0
        %1964 = vmatpush1.bf16.msra.mxu0 0
        %1965 = vmatprep.subr.bf16.mxu0 0
        %1966 = vmatpush1.bf16.msra.mxu0 0
        %1967 = vmatprep.subr.bf16.mxu0 0
        %1968 = vmatpush1.bf16.msra.mxu0 0
        %1969 = vmatprep.subr.bf16.mxu0 0
        %1970 = vmatpush1.bf16.msra.mxu0 0
        %1971 = vmatprep.subr.bf16.mxu0 0
        %1972 = vmatpush1.bf16.msra.mxu0 0
        %1973 = vmatprep.subr.bf16.mxu0 0
        %1974 = vmatpush1.bf16.msra.mxu0 0
        %1975 = vmatprep.subr.bf16.mxu0 0
        %1976 = vmatpush1.bf16.msra.mxu0 0
        %1977 = vmatprep.subr.bf16.mxu0 0
        %1978 = vmatpush1.bf16.msra.mxu0 0
        %1979 = vmatprep.subr.bf16.mxu0 0
        %1980 = vmatpush1.bf16.msra.mxu0 0
        %1981 = vmatprep.mubr.bf16.mxu0 0
        %1982 = vmatmul.mubr.bf16.gmra.mrb[0].mxu0 %v1846
        %v1983 = vpop.f32.mrb[0].mxu0
        %v1984 = vadd.f32 0.0, %v1983
        %v1985 = vpop.f32.mrb[0].mxu0
        %v1986 = vpop.f32.mrb[0].mxu0
        %v1987 = vpop.f32.mrb[0].mxu0
        %1988 = vdwg.mxu0
        %1989 = vst.msk [vmem:[#allocation2 + $0x20] sm:$0xff] %vm1888, %v1984
        %s1990 = scalar_lea.vmem %s7, 24
        %v1991 = vld [vmem:[%s1990] sm:$0xf]
        %v1992 = vld [vmem:[%s1990 + $0x4] sm:$0xf]
        %v1995 = vunpack.c.l.b16 %v1991
        %v1996 = vunpack.c.l.b16 %v1992
        %v1997 = vpack.c.b16 %v1996, %v1995
        %1999 = vmatprep.subr.bf16.mxu0 0
        %2000 = vmatpush1.bf16.msra.mxu0 %v1997
        %2001 = vmatprep.subr.bf16.mxu0 0
        %2002 = vmatpush1.bf16.msra.mxu0 0
        %2003 = vmatprep.subr.bf16.mxu0 0
        %2004 = vmatpush1.bf16.msra.mxu0 0
        %2005 = vmatprep.subr.bf16.mxu0 0
        %2006 = vmatpush1.bf16.msra.mxu0 0
        %2007 = vmatprep.subr.bf16.mxu0 0
        %2008 = vmatpush1.bf16.msra.mxu0 0
        %2009 = vmatprep.subr.bf16.mxu0 0
        %2010 = vmatpush1.bf16.msra.mxu0 0
        %2011 = vmatprep.subr.bf16.mxu0 0
        %2012 = vmatpush1.bf16.msra.mxu0 0
        %2013 = vmatprep.subr.bf16.mxu0 0
        %2014 = vmatpush1.bf16.msra.mxu0 0
        %2015 = vmatprep.subr.bf16.mxu0 0
        %2016 = vmatpush1.bf16.msra.mxu0 0
        %2017 = vmatprep.subr.bf16.mxu0 0
        %2018 = vmatpush1.bf16.msra.mxu0 0
        %2019 = vmatprep.subr.bf16.mxu0 0
        %2020 = vmatpush1.bf16.msra.mxu0 0
        %2021 = vmatprep.subr.bf16.mxu0 0
        %2022 = vmatpush1.bf16.msra.mxu0 0
        %2023 = vmatprep.subr.bf16.mxu0 0
        %2024 = vmatpush1.bf16.msra.mxu0 0
        %2025 = vmatprep.subr.bf16.mxu0 0
        %2026 = vmatpush1.bf16.msra.mxu0 0
        %2027 = vmatprep.subr.bf16.mxu0 0
        %2028 = vmatpush1.bf16.msra.mxu0 0
        %2029 = vmatprep.subr.bf16.mxu0 0
        %2030 = vmatpush1.bf16.msra.mxu0 0
        %2031 = vmatprep.mubr.bf16.mxu0 0
        %2032 = vmatmul.mubr.bf16.gmra.mrb[0].mxu0 %v1846
        %v2033 = vpop.f32.mrb[0].mxu0
        %v2034 = vadd.f32 0.0, %v2033
        %v2035 = vpop.f32.mrb[0].mxu0
        %v2036 = vpop.f32.mrb[0].mxu0
        %v2037 = vpop.f32.mrb[0].mxu0
        %2038 = vdwg.mxu0
        %2039 = vst.msk [vmem:[#allocation2 + $0x30] sm:$0xff] %vm1888, %v2034
        %s2040 = scalar_lea.vmem %s7, 32
        %v2041 = vld [vmem:[%s2040] sm:$0xf]
        %v2042 = vld [vmem:[%s2040 + $0x4] sm:$0xf]
        %v2045 = vunpack.c.l.b16 %v2041
        %v2046 = vunpack.c.l.b16 %v2042
        %v2047 = vpack.c.b16 %v2046, %v2045
        %2049 = vmatprep.subr.bf16.mxu0 0
        %2050 = vmatpush1.bf16.msra.mxu0 %v2047
        %2051 = vmatprep.subr.bf16.mxu0 0
        %2052 = vmatpush1.bf16.msra.mxu0 0
        %2053 = vmatprep.subr.bf16.mxu0 0
        %2054 = vmatpush1.bf16.msra.mxu0 0
        %2055 = vmatprep.subr.bf16.mxu0 0
        %2056 = vmatpush1.bf16.msra.mxu0 0
        %2057 = vmatprep.subr.bf16.mxu0 0
        %2058 = vmatpush1.bf16.msra.mxu0 0
        %2059 = vmatprep.subr.bf16.mxu0 0
        %2060 = vmatpush1.bf16.msra.mxu0 0
        %2061 = vmatprep.subr.bf16.mxu0 0
        %2062 = vmatpush1.bf16.msra.mxu0 0
        %2063 = vmatprep.subr.bf16.mxu0 0
        %2064 = vmatpush1.bf16.msra.mxu0 0
        %2065 = vmatprep.subr.bf16.mxu0 0
        %2066 = vmatpush1.bf16.msra.mxu0 0
        %2067 = vmatprep.subr.bf16.mxu0 0
        %2068 = vmatpush1.bf16.msra.mxu0 0
        %2069 = vmatprep.subr.bf16.mxu0 0
        %2070 = vmatpush1.bf16.msra.mxu0 0
        %2071 = vmatprep.subr.bf16.mxu0 0
        %2072 = vmatpush1.bf16.msra.mxu0 0
        %2073 = vmatprep.subr.bf16.mxu0 0
        %2074 = vmatpush1.bf16.msra.mxu0 0
        %2075 = vmatprep.subr.bf16.mxu0 0
        %2076 = vmatpush1.bf16.msra.mxu0 0
        %2077 = vmatprep.subr.bf16.mxu0 0
        %2078 = vmatpush1.bf16.msra.mxu0 0
        %2079 = vmatprep.subr.bf16.mxu0 0
        %2080 = vmatpush1.bf16.msra.mxu0 0
        %2081 = vmatprep.mubr.bf16.mxu0 0
        %2082 = vmatmul.mubr.bf16.gmra.mrb[0].mxu0 %v1846
        %v2083 = vpop.f32.mrb[0].mxu0
        %v2084 = vadd.f32 0.0, %v2083
        %v2085 = vpop.f32.mrb[0].mxu0
        %v2086 = vpop.f32.mrb[0].mxu0
        %v2087 = vpop.f32.mrb[0].mxu0
        %2088 = vdwg.mxu0
        %2089 = vst.msk [vmem:[#allocation2 + $0x40] sm:$0xff] %vm1888, %v2084
        %s2090 = scalar_lea.vmem %s7, 40
        %v2091 = vld [vmem:[%s2090] sm:$0xf]
        %v2092 = vld [vmem:[%s2090 + $0x4] sm:$0xf]
        %v2095 = vunpack.c.l.b16 %v2091
        %v2096 = vunpack.c.l.b16 %v2092
        %v2097 = vpack.c.b16 %v2096, %v2095
        %2099 = vmatprep.subr.bf16.mxu0 0
        %2100 = vmatpush1.bf16.msra.mxu0 %v2097
        %2101 = vmatprep.subr.bf16.mxu0 0
        %2102 = vmatpush1.bf16.msra.mxu0 0
        %2103 = vmatprep.subr.bf16.mxu0 0
        %2104 = vmatpush1.bf16.msra.mxu0 0
        %2105 = vmatprep.subr.bf16.mxu0 0
        %2106 = vmatpush1.bf16.msra.mxu0 0
        %2107 = vmatprep.subr.bf16.mxu0 0
        %2108 = vmatpush1.bf16.msra.mxu0 0
        %2109 = vmatprep.subr.bf16.mxu0 0
        %2110 = vmatpush1.bf16.msra.mxu0 0
        %2111 = vmatprep.subr.bf16.mxu0 0
        %2112 = vmatpush1.bf16.msra.mxu0 0
        %2113 = vmatprep.subr.bf16.mxu0 0
        %2114 = vmatpush1.bf16.msra.mxu0 0
        %2115 = vmatprep.subr.bf16.mxu0 0
        %2116 = vmatpush1.bf16.msra.mxu0 0
        %2117 = vmatprep.subr.bf16.mxu0 0
        %2118 = vmatpush1.bf16.msra.mxu0 0
        %2119 = vmatprep.subr.bf16.mxu0 0
        %2120 = vmatpush1.bf16.msra.mxu0 0
        %2121 = vmatprep.subr.bf16.mxu0 0
        %2122 = vmatpush1.bf16.msra.mxu0 0
        %2123 = vmatprep.subr.bf16.mxu0 0
        %2124 = vmatpush1.bf16.msra.mxu0 0
        %2125 = vmatprep.subr.bf16.mxu0 0
        %2126 = vmatpush1.bf16.msra.mxu0 0
        %2127 = vmatprep.subr.bf16.mxu0 0
        %2128 = vmatpush1.bf16.msra.mxu0 0
        %2129 = vmatprep.subr.bf16.mxu0 0
        %2130 = vmatpush1.bf16.msra.mxu0 0
        %2131 = vmatprep.mubr.bf16.mxu0 0
        %2132 = vmatmul.mubr.bf16.gmra.mrb[0].mxu0 %v1846
        %v2133 = vpop.f32.mrb[0].mxu0
        %v2134 = vadd.f32 0.0, %v2133
        %v2135 = vpop.f32.mrb[0].mxu0
        %v2136 = vpop.f32.mrb[0].mxu0
        %v2137 = vpop.f32.mrb[0].mxu0
        %2138 = vdwg.mxu0
        %2139 = vst.msk [vmem:[#allocation2 + $0x50] sm:$0xff] %vm1888, %v2134
        %s2140 = scalar_lea.vmem %s7, 48
        %v2141 = vld [vmem:[%s2140] sm:$0xf]
        %v2142 = vld [vmem:[%s2140 + $0x4] sm:$0xf]
        %v2145 = vunpack.c.l.b16 %v2141
        %v2146 = vunpack.c.l.b16 %v2142
        %v2147 = vpack.c.b16 %v2146, %v2145
        %2149 = vmatprep.subr.bf16.mxu0 0
        %2150 = vmatpush1.bf16.msra.mxu0 %v2147
        %2151 = vmatprep.subr.bf16.mxu0 0
        %2152 = vmatpush1.bf16.msra.mxu0 0
        %2153 = vmatprep.subr.bf16.mxu0 0
        %2154 = vmatpush1.bf16.msra.mxu0 0
        %2155 = vmatprep.subr.bf16.mxu0 0
        %2156 = vmatpush1.bf16.msra.mxu0 0
        %2157 = vmatprep.subr.bf16.mxu0 0
        %2158 = vmatpush1.bf16.msra.mxu0 0
        %2159 = vmatprep.subr.bf16.mxu0 0
        %2160 = vmatpush1.bf16.msra.mxu0 0
        %2161 = vmatprep.subr.bf16.mxu0 0
        %2162 = vmatpush1.bf16.msra.mxu0 0
        %2163 = vmatprep.subr.bf16.mxu0 0
        %2164 = vmatpush1.bf16.msra.mxu0 0
        %2165 = vmatprep.subr.bf16.mxu0 0
        %2166 = vmatpush1.bf16.msra.mxu0 0
        %2167 = vmatprep.subr.bf16.mxu0 0
        %2168 = vmatpush1.bf16.msra.mxu0 0
        %2169 = vmatprep.subr.bf16.mxu0 0
        %2170 = vmatpush1.bf16.msra.mxu0 0
        %2171 = vmatprep.subr.bf16.mxu0 0
        %2172 = vmatpush1.bf16.msra.mxu0 0
        %2173 = vmatprep.subr.bf16.mxu0 0
        %2174 = vmatpush1.bf16.msra.mxu0 0
        %2175 = vmatprep.subr.bf16.mxu0 0
        %2176 = vmatpush1.bf16.msra.mxu0 0
        %2177 = vmatprep.subr.bf16.mxu0 0
        %2178 = vmatpush1.bf16.msra.mxu0 0
        %2179 = vmatprep.subr.bf16.mxu0 0
        %2180 = vmatpush1.bf16.msra.mxu0 0
        %2181 = vmatprep.mubr.bf16.mxu0 0
        %2182 = vmatmul.mubr.bf16.gmra.mrb[0].mxu0 %v1846
        %v2183 = vpop.f32.mrb[0].mxu0
        %v2184 = vadd.f32 0.0, %v2183
        %v2185 = vpop.f32.mrb[0].mxu0
        %v2186 = vpop.f32.mrb[0].mxu0
        %v2187 = vpop.f32.mrb[0].mxu0
        %2188 = vdwg.mxu0
        %2189 = vst.msk [vmem:[#allocation2 + $0x60] sm:$0xff] %vm1888, %v2184
        %s2190 = scalar_lea.vmem %s7, 56
        %v2191 = vld [vmem:[%s2190] sm:$0xf]
        %v2192 = vld [vmem:[%s2190 + $0x4] sm:$0xf]
        %v2195 = vunpack.c.l.b16 %v2191
        %v2196 = vunpack.c.l.b16 %v2192
        %v2197 = vpack.c.b16 %v2196, %v2195
        %2199 = vmatprep.subr.bf16.mxu0 0
        %2200 = vmatpush1.bf16.msra.mxu0 %v2197
        %2201 = vmatprep.subr.bf16.mxu0 0
        %2202 = vmatpush1.bf16.msra.mxu0 0
        %2203 = vmatprep.subr.bf16.mxu0 0
        %2204 = vmatpush1.bf16.msra.mxu0 0
        %2205 = vmatprep.subr.bf16.mxu0 0
        %2206 = vmatpush1.bf16.msra.mxu0 0
        %2207 = vmatprep.subr.bf16.mxu0 0
        %2208 = vmatpush1.bf16.msra.mxu0 0
        %2209 = vmatprep.subr.bf16.mxu0 0
        %2210 = vmatpush1.bf16.msra.mxu0 0
        %2211 = vmatprep.subr.bf16.mxu0 0
        %2212 = vmatpush1.bf16.msra.mxu0 0
        %2213 = vmatprep.subr.bf16.mxu0 0
        %2214 = vmatpush1.bf16.msra.mxu0 0
        %2215 = vmatprep.subr.bf16.mxu0 0
        %2216 = vmatpush1.bf16.msra.mxu0 0
        %2217 = vmatprep.subr.bf16.mxu0 0
        %2218 = vmatpush1.bf16.msra.mxu0 0
        %2219 = vmatprep.subr.bf16.mxu0 0
        %2220 = vmatpush1.bf16.msra.mxu0 0
        %2221 = vmatprep.subr.bf16.mxu0 0
        %2222 = vmatpush1.bf16.msra.mxu0 0
        %2223 = vmatprep.subr.bf16.mxu0 0
        %2224 = vmatpush1.bf16.msra.mxu0 0
        %2225 = vmatprep.subr.bf16.mxu0 0
        %2226 = vmatpush1.bf16.msra.mxu0 0
        %2227 = vmatprep.subr.bf16.mxu0 0
        %2228 = vmatpush1.bf16.msra.mxu0 0
        %2229 = vmatprep.subr.bf16.mxu0 0
        %2230 = vmatpush1.bf16.msra.mxu0 0
        %2231 = vmatprep.mubr.bf16.mxu0 0
        %2232 = vmatmul.mubr.bf16.gmra.mrb[0].mxu0 %v1846
        %v2233 = vpop.f32.mrb[0].mxu0
        %v2234 = vadd.f32 0.0, %v2233
        %v2235 = vpop.f32.mrb[0].mxu0
        %v2236 = vpop.f32.mrb[0].mxu0
        %v2237 = vpop.f32.mrb[0].mxu0
        %2238 = vdwg.mxu0
        %2239 = vst.msk [vmem:[#allocation2 + $0x70] sm:$0xff] %vm1888, %v2234
        %s2240 = scalar_lea.vmem %s7, 64
        %v2241 = vld [vmem:[%s2240] sm:$0xf]
        %v2242 = vld [vmem:[%s2240 + $0x4] sm:$0xf]
        %v2245 = vunpack.c.l.b16 %v2241
        %v2246 = vunpack.c.l.b16 %v2242
        %v2247 = vpack.c.b16 %v2246, %v2245
        %2249 = vmatprep.subr.bf16.mxu0 0
        %2250 = vmatpush1.bf16.msra.mxu0 %v2247
        %2251 = vmatprep.subr.bf16.mxu0 0
        %2252 = vmatpush1.bf16.msra.mxu0 0
        %2253 = vmatprep.subr.bf16.mxu0 0
        %2254 = vmatpush1.bf16.msra.mxu0 0
        %2255 = vmatprep.subr.bf16.mxu0 0
        %2256 = vmatpush1.bf16.msra.mxu0 0
        %2257 = vmatprep.subr.bf16.mxu0 0
        %2258 = vmatpush1.bf16.msra.mxu0 0
        %2259 = vmatprep.subr.bf16.mxu0 0
        %2260 = vmatpush1.bf16.msra.mxu0 0
        %2261 = vmatprep.subr.bf16.mxu0 0
        %2262 = vmatpush1.bf16.msra.mxu0 0
        %2263 = vmatprep.subr.bf16.mxu0 0
        %2264 = vmatpush1.bf16.msra.mxu0 0
        %2265 = vmatprep.subr.bf16.mxu0 0
        %2266 = vmatpush1.bf16.msra.mxu0 0
        %2267 = vmatprep.subr.bf16.mxu0 0
        %2268 = vmatpush1.bf16.msra.mxu0 0
        %2269 = vmatprep.subr.bf16.mxu0 0
        %2270 = vmatpush1.bf16.msra.mxu0 0
        %2271 = vmatprep.subr.bf16.mxu0 0
        %2272 = vmatpush1.bf16.msra.mxu0 0
        %2273 = vmatprep.subr.bf16.mxu0 0
        %2274 = vmatpush1.bf16.msra.mxu0 0
        %2275 = vmatprep.subr.bf16.mxu0 0
        %2276 = vmatpush1.bf16.msra.mxu0 0
        %2277 = vmatprep.subr.bf16.mxu0 0
        %2278 = vmatpush1.bf16.msra.mxu0 0
        %2279 = vmatprep.subr.bf16.mxu0 0
        %2280 = vmatpush1.bf16.msra.mxu0 0
        %2281 = vmatprep.mubr.bf16.mxu0 0
        %2282 = vmatmul.mubr.bf16.gmra.mrb[0].mxu0 %v1846
        %v2283 = vpop.f32.mrb[0].mxu0
        %v2284 = vadd.f32 0.0, %v2283
        %v2285 = vpop.f32.mrb[0].mxu0
        %v2286 = vpop.f32.mrb[0].mxu0
        %v2287 = vpop.f32.mrb[0].mxu0
        %2288 = vdwg.mxu0
        %2289 = vst.msk [vmem:[#allocation2 + $0x80] sm:$0xff] %vm1888, %v2284
        %s2290 = scalar_lea.vmem %s7, 72
        %v2291 = vld [vmem:[%s2290] sm:$0xf]
        %v2292 = vld [vmem:[%s2290 + $0x4] sm:$0xf]
        %v2295 = vunpack.c.l.b16 %v2291
        %v2296 = vunpack.c.l.b16 %v2292
        %v2297 = vpack.c.b16 %v2296, %v2295
        %2299 = vmatprep.subr.bf16.mxu0 0
        %2300 = vmatpush1.bf16.msra.mxu0 %v2297
        %2301 = vmatprep.subr.bf16.mxu0 0
        %2302 = vmatpush1.bf16.msra.mxu0 0
        %2303 = vmatprep.subr.bf16.mxu0 0
        %2304 = vmatpush1.bf16.msra.mxu0 0
        %2305 = vmatprep.subr.bf16.mxu0 0
        %2306 = vmatpush1.bf16.msra.mxu0 0
        %2307 = vmatprep.subr.bf16.mxu0 0
        %2308 = vmatpush1.bf16.msra.mxu0 0
        %2309 = vmatprep.subr.bf16.mxu0 0
        %2310 = vmatpush1.bf16.msra.mxu0 0
        %2311 = vmatprep.subr.bf16.mxu0 0
        %2312 = vmatpush1.bf16.msra.mxu0 0
        %2313 = vmatprep.subr.bf16.mxu0 0
        %2314 = vmatpush1.bf16.msra.mxu0 0
        %2315 = vmatprep.subr.bf16.mxu0 0
        %2316 = vmatpush1.bf16.msra.mxu0 0
        %2317 = vmatprep.subr.bf16.mxu0 0
        %2318 = vmatpush1.bf16.msra.mxu0 0
        %2319 = vmatprep.subr.bf16.mxu0 0
        %2320 = vmatpush1.bf16.msra.mxu0 0
        %2321 = vmatprep.subr.bf16.mxu0 0
        %2322 = vmatpush1.bf16.msra.mxu0 0
        %2323 = vmatprep.subr.bf16.mxu0 0
        %2324 = vmatpush1.bf16.msra.mxu0 0
        %2325 = vmatprep.subr.bf16.mxu0 0
        %2326 = vmatpush1.bf16.msra.mxu0 0
        %2327 = vmatprep.subr.bf16.mxu0 0
        %2328 = vmatpush1.bf16.msra.mxu0 0
        %2329 = vmatprep.subr.bf16.mxu0 0
        %2330 = vmatpush1.bf16.msra.mxu0 0
        %2331 = vmatprep.mubr.bf16.mxu0 0
        %2332 = vmatmul.mubr.bf16.gmra.mrb[0].mxu0 %v1846
        %v2333 = vpop.f32.mrb[0].mxu0
        %v2334 = vadd.f32 0.0, %v2333
        %v2335 = vpop.f32.mrb[0].mxu0
        %v2336 = vpop.f32.mrb[0].mxu0
        %v2337 = vpop.f32.mrb[0].mxu0
        %2338 = vdwg.mxu0
        %2339 = vst.msk [vmem:[#allocation2 + $0x90] sm:$0xff] %vm1888, %v2334
        %s2340 = scalar_lea.vmem %s7, 80
        %v2341 = vld [vmem:[%s2340] sm:$0xf]
        %v2342 = vld [vmem:[%s2340 + $0x4] sm:$0xf]
        %v2345 = vunpack.c.l.b16 %v2341
        %v2346 = vunpack.c.l.b16 %v2342
        %v2347 = vpack.c.b16 %v2346, %v2345
        %2349 = vmatprep.subr.bf16.mxu0 0
        %2350 = vmatpush1.bf16.msra.mxu0 %v2347
        %2351 = vmatprep.subr.bf16.mxu0 0
        %2352 = vmatpush1.bf16.msra.mxu0 0
        %2353 = vmatprep.subr.bf16.mxu0 0
        %2354 = vmatpush1.bf16.msra.mxu0 0
        %2355 = vmatprep.subr.bf16.mxu0 0
        %2356 = vmatpush1.bf16.msra.mxu0 0
        %2357 = vmatprep.subr.bf16.mxu0 0
        %2358 = vmatpush1.bf16.msra.mxu0 0
        %2359 = vmatprep.subr.bf16.mxu0 0
        %2360 = vmatpush1.bf16.msra.mxu0 0
        %2361 = vmatprep.subr.bf16.mxu0 0
        %2362 = vmatpush1.bf16.msra.mxu0 0
        %2363 = vmatprep.subr.bf16.mxu0 0
        %2364 = vmatpush1.bf16.msra.mxu0 0
        %2365 = vmatprep.subr.bf16.mxu0 0
        %2366 = vmatpush1.bf16.msra.mxu0 0
        %2367 = vmatprep.subr.bf16.mxu0 0
        %2368 = vmatpush1.bf16.msra.mxu0 0
        %2369 = vmatprep.subr.bf16.mxu0 0
        %2370 = vmatpush1.bf16.msra.mxu0 0
        %2371 = vmatprep.subr.bf16.mxu0 0
        %2372 = vmatpush1.bf16.msra.mxu0 0
        %2373 = vmatprep.subr.bf16.mxu0 0
        %2374 = vmatpush1.bf16.msra.mxu0 0
        %2375 = vmatprep.subr.bf16.mxu0 0
        %2376 = vmatpush1.bf16.msra.mxu0 0
        %2377 = vmatprep.subr.bf16.mxu0 0
        %2378 = vmatpush1.bf16.msra.mxu0 0
        %2379 = vmatprep.subr.bf16.mxu0 0
        %2380 = vmatpush1.bf16.msra.mxu0 0
        %2381 = vmatprep.mubr.bf16.mxu0 0
        %2382 = vmatmul.mubr.bf16.gmra.mrb[0].mxu0 %v1846
        %v2383 = vpop.f32.mrb[0].mxu0
        %v2384 = vadd.f32 0.0, %v2383
        %v2385 = vpop.f32.mrb[0].mxu0
        %v2386 = vpop.f32.mrb[0].mxu0
        %v2387 = vpop.f32.mrb[0].mxu0
        %2388 = vdwg.mxu0
        %2389 = vst.msk [vmem:[#allocation2 + $0xa0] sm:$0xff] %vm1888, %v2384
        %s2390 = scalar_lea.vmem %s7, 88
        %v2391 = vld [vmem:[%s2390] sm:$0xf]
        %v2392 = vld [vmem:[%s2390 + $0x4] sm:$0xf]
        %v2395 = vunpack.c.l.b16 %v2391
        %v2396 = vunpack.c.l.b16 %v2392
        %v2397 = vpack.c.b16 %v2396, %v2395
        %2399 = vmatprep.subr.bf16.mxu0 0
        %2400 = vmatpush1.bf16.msra.mxu0 %v2397
        %2401 = vmatprep.subr.bf16.mxu0 0
        %2402 = vmatpush1.bf16.msra.mxu0 0
        %2403 = vmatprep.subr.bf16.mxu0 0
        %2404 = vmatpush1.bf16.msra.mxu0 0
        %2405 = vmatprep.subr.bf16.mxu0 0
        %2406 = vmatpush1.bf16.msra.mxu0 0
        %2407 = vmatprep.subr.bf16.mxu0 0
        %2408 = vmatpush1.bf16.msra.mxu0 0
        %2409 = vmatprep.subr.bf16.mxu0 0
        %2410 = vmatpush1.bf16.msra.mxu0 0
        %2411 = vmatprep.subr.bf16.mxu0 0
        %2412 = vmatpush1.bf16.msra.mxu0 0
        %2413 = vmatprep.subr.bf16.mxu0 0
        %2414 = vmatpush1.bf16.msra.mxu0 0
        %2415 = vmatprep.subr.bf16.mxu0 0
        %2416 = vmatpush1.bf16.msra.mxu0 0
        %2417 = vmatprep.subr.bf16.mxu0 0
        %2418 = vmatpush1.bf16.msra.mxu0 0
        %2419 = vmatprep.subr.bf16.mxu0 0
        %2420 = vmatpush1.bf16.msra.mxu0 0
        %2421 = vmatprep.subr.bf16.mxu0 0
        %2422 = vmatpush1.bf16.msra.mxu0 0
        %2423 = vmatprep.subr.bf16.mxu0 0
        %2424 = vmatpush1.bf16.msra.mxu0 0
        %2425 = vmatprep.subr.bf16.mxu0 0
        %2426 = vmatpush1.bf16.msra.mxu0 0
        %2427 = vmatprep.subr.bf16.mxu0 0
        %2428 = vmatpush1.bf16.msra.mxu0 0
        %2429 = vmatprep.subr.bf16.mxu0 0
        %2430 = vmatpush1.bf16.msra.mxu0 0
        %2431 = vmatprep.mubr.bf16.mxu0 0
        %2432 = vmatmul.mubr.bf16.gmra.mrb[0].mxu0 %v1846
        %v2433 = vpop.f32.mrb[0].mxu0
        %v2434 = vadd.f32 0.0, %v2433
        %v2435 = vpop.f32.mrb[0].mxu0
        %v2436 = vpop.f32.mrb[0].mxu0
        %v2437 = vpop.f32.mrb[0].mxu0
        %2438 = vdwg.mxu0
        %2439 = vst.msk [vmem:[#allocation2 + $0xb0] sm:$0xff] %vm1888, %v2434
        %s2440 = scalar_lea.vmem %s7, 96
        %v2441 = vld [vmem:[%s2440] sm:$0xf]
        %v2442 = vld [vmem:[%s2440 + $0x4] sm:$0xf]
        %v2445 = vunpack.c.l.b16 %v2441
        %v2446 = vunpack.c.l.b16 %v2442
        %v2447 = vpack.c.b16 %v2446, %v2445
        %2449 = vmatprep.subr.bf16.mxu0 0
        %2450 = vmatpush1.bf16.msra.mxu0 %v2447
        %2451 = vmatprep.subr.bf16.mxu0 0
        %2452 = vmatpush1.bf16.msra.mxu0 0
        %2453 = vmatprep.subr.bf16.mxu0 0
        %2454 = vmatpush1.bf16.msra.mxu0 0
        %2455 = vmatprep.subr.bf16.mxu0 0
        %2456 = vmatpush1.bf16.msra.mxu0 0
        %2457 = vmatprep.subr.bf16.mxu0 0
        %2458 = vmatpush1.bf16.msra.mxu0 0
        %2459 = vmatprep.subr.bf16.mxu0 0
        %2460 = vmatpush1.bf16.msra.mxu0 0
        %2461 = vmatprep.subr.bf16.mxu0 0
        %2462 = vmatpush1.bf16.msra.mxu0 0
        %2463 = vmatprep.subr.bf16.mxu0 0
        %2464 = vmatpush1.bf16.msra.mxu0 0
        %2465 = vmatprep.subr.bf16.mxu0 0
        %2466 = vmatpush1.bf16.msra.mxu0 0
        %2467 = vmatprep.subr.bf16.mxu0 0
        %2468 = vmatpush1.bf16.msra.mxu0 0
        %2469 = vmatprep.subr.bf16.mxu0 0
        %2470 = vmatpush1.bf16.msra.mxu0 0
        %2471 = vmatprep.subr.bf16.mxu0 0
        %2472 = vmatpush1.bf16.msra.mxu0 0
        %2473 = vmatprep.subr.bf16.mxu0 0
        %2474 = vmatpush1.bf16.msra.mxu0 0
        %2475 = vmatprep.subr.bf16.mxu0 0
        %2476 = vmatpush1.bf16.msra.mxu0 0
        %2477 = vmatprep.subr.bf16.mxu0 0
        %2478 = vmatpush1.bf16.msra.mxu0 0
        %2479 = vmatprep.subr.bf16.mxu0 0
        %2480 = vmatpush1.bf16.msra.mxu0 0
        %2481 = vmatprep.mubr.bf16.mxu0 0
        %2482 = vmatmul.mubr.bf16.gmra.mrb[0].mxu0 %v1846
        %v2483 = vpop.f32.mrb[0].mxu0
        %v2484 = vadd.f32 0.0, %v2483
        %v2485 = vpop.f32.mrb[0].mxu0
        %v2486 = vpop.f32.mrb[0].mxu0
        %v2487 = vpop.f32.mrb[0].mxu0
        %2488 = vdwg.mxu0
        %2489 = vst.msk [vmem:[#allocation2 + $0xc0] sm:$0xff] %vm1888, %v2484
        %s2490 = scalar_lea.vmem %s7, 104
        %v2491 = vld [vmem:[%s2490] sm:$0xf]
        %v2492 = vld [vmem:[%s2490 + $0x4] sm:$0xf]
        %v2495 = vunpack.c.l.b16 %v2491
        %v2496 = vunpack.c.l.b16 %v2492
        %v2497 = vpack.c.b16 %v2496, %v2495
        %2499 = vmatprep.subr.bf16.mxu0 0
        %2500 = vmatpush1.bf16.msra.mxu0 %v2497
        %2501 = vmatprep.subr.bf16.mxu0 0
        %2502 = vmatpush1.bf16.msra.mxu0 0
        %2503 = vmatprep.subr.bf16.mxu0 0
        %2504 = vmatpush1.bf16.msra.mxu0 0
        %2505 = vmatprep.subr.bf16.mxu0 0
        %2506 = vmatpush1.bf16.msra.mxu0 0
        %2507 = vmatprep.subr.bf16.mxu0 0
        %2508 = vmatpush1.bf16.msra.mxu0 0
        %2509 = vmatprep.subr.bf16.mxu0 0
        %2510 = vmatpush1.bf16.msra.mxu0 0
        %2511 = vmatprep.subr.bf16.mxu0 0
        %2512 = vmatpush1.bf16.msra.mxu0 0
        %2513 = vmatprep.subr.bf16.mxu0 0
        %2514 = vmatpush1.bf16.msra.mxu0 0
        %2515 = vmatprep.subr.bf16.mxu0 0
        %2516 = vmatpush1.bf16.msra.mxu0 0
        %2517 = vmatprep.subr.bf16.mxu0 0
        %2518 = vmatpush1.bf16.msra.mxu0 0
        %2519 = vmatprep.subr.bf16.mxu0 0
        %2520 = vmatpush1.bf16.msra.mxu0 0
        %2521 = vmatprep.subr.bf16.mxu0 0
        %2522 = vmatpush1.bf16.msra.mxu0 0
        %2523 = vmatprep.subr.bf16.mxu0 0
        %2524 = vmatpush1.bf16.msra.mxu0 0
        %2525 = vmatprep.subr.bf16.mxu0 0
        %2526 = vmatpush1.bf16.msra.mxu0 0
        %2527 = vmatprep.subr.bf16.mxu0 0
        %2528 = vmatpush1.bf16.msra.mxu0 0
        %2529 = vmatprep.subr.bf16.mxu0 0
        %2530 = vmatpush1.bf16.msra.mxu0 0
        %2531 = vmatprep.mubr.bf16.mxu0 0
        %2532 = vmatmul.mubr.bf16.gmra.mrb[0].mxu0 %v1846
        %v2533 = vpop.f32.mrb[0].mxu0
        %v2534 = vadd.f32 0.0, %v2533
        %v2535 = vpop.f32.mrb[0].mxu0
        %v2536 = vpop.f32.mrb[0].mxu0
        %v2537 = vpop.f32.mrb[0].mxu0
        %2538 = vdwg.mxu0
        %2539 = vst.msk [vmem:[#allocation2 + $0xd0] sm:$0xff] %vm1888, %v2534
        %s2540 = scalar_lea.vmem %s7, 112
        %v2541 = vld [vmem:[%s2540] sm:$0xf]
        %v2542 = vld [vmem:[%s2540 + $0x4] sm:$0xf]
        %v2545 = vunpack.c.l.b16 %v2541
        %v2546 = vunpack.c.l.b16 %v2542
        %v2547 = vpack.c.b16 %v2546, %v2545
        %2549 = vmatprep.subr.bf16.mxu0 0
        %2550 = vmatpush1.bf16.msra.mxu0 %v2547
        %2551 = vmatprep.subr.bf16.mxu0 0
        %2552 = vmatpush1.bf16.msra.mxu0 0
        %2553 = vmatprep.subr.bf16.mxu0 0
        %2554 = vmatpush1.bf16.msra.mxu0 0
        %2555 = vmatprep.subr.bf16.mxu0 0
        %2556 = vmatpush1.bf16.msra.mxu0 0
        %2557 = vmatprep.subr.bf16.mxu0 0
        %2558 = vmatpush1.bf16.msra.mxu0 0
        %2559 = vmatprep.subr.bf16.mxu0 0
        %2560 = vmatpush1.bf16.msra.mxu0 0
        %2561 = vmatprep.subr.bf16.mxu0 0
        %2562 = vmatpush1.bf16.msra.mxu0 0
        %2563 = vmatprep.subr.bf16.mxu0 0
        %2564 = vmatpush1.bf16.msra.mxu0 0
        %2565 = vmatprep.subr.bf16.mxu0 0
        %2566 = vmatpush1.bf16.msra.mxu0 0
        %2567 = vmatprep.subr.bf16.mxu0 0
        %2568 = vmatpush1.bf16.msra.mxu0 0
        %2569 = vmatprep.subr.bf16.mxu0 0
        %2570 = vmatpush1.bf16.msra.mxu0 0
        %2571 = vmatprep.subr.bf16.mxu0 0
        %2572 = vmatpush1.bf16.msra.mxu0 0
        %2573 = vmatprep.subr.bf16.mxu0 0
        %2574 = vmatpush1.bf16.msra.mxu0 0
        %2575 = vmatprep.subr.bf16.mxu0 0
        %2576 = vmatpush1.bf16.msra.mxu0 0
        %2577 = vmatprep.subr.bf16.mxu0 0
        %2578 = vmatpush1.bf16.msra.mxu0 0
        %2579 = vmatprep.subr.bf16.mxu0 0
        %2580 = vmatpush1.bf16.msra.mxu0 0
        %2581 = vmatprep.mubr.bf16.mxu0 0
        %2582 = vmatmul.mubr.bf16.gmra.mrb[0].mxu0 %v1846
        %v2583 = vpop.f32.mrb[0].mxu0
        %v2584 = vadd.f32 0.0, %v2583
        %v2585 = vpop.f32.mrb[0].mxu0
        %v2586 = vpop.f32.mrb[0].mxu0
        %v2587 = vpop.f32.mrb[0].mxu0
        %2588 = vdwg.mxu0
        %2589 = vst.msk [vmem:[#allocation2 + $0xe0] sm:$0xff] %vm1888, %v2584
        %s2590 = scalar_lea.vmem %s7, 120
        %v2591 = vld [vmem:[%s2590] sm:$0xf]
        %v2592 = vld [vmem:[%s2590 + $0x4] sm:$0xf]
        %v2595 = vunpack.c.l.b16 %v2591
        %v2596 = vunpack.c.l.b16 %v2592
        %v2597 = vpack.c.b16 %v2596, %v2595
        %2599 = vmatprep.subr.bf16.mxu0 0
        %2600 = vmatpush1.bf16.msra.mxu0 %v2597
        %2601 = vmatprep.subr.bf16.mxu0 0
        %2602 = vmatpush1.bf16.msra.mxu0 0
        %2603 = vmatprep.subr.bf16.mxu0 0
        %2604 = vmatpush1.bf16.msra.mxu0 0
        %2605 = vmatprep.subr.bf16.mxu0 0
        %2606 = vmatpush1.bf16.msra.mxu0 0
        %2607 = vmatprep.subr.bf16.mxu0 0
        %2608 = vmatpush1.bf16.msra.mxu0 0
        %2609 = vmatprep.subr.bf16.mxu0 0
        %2610 = vmatpush1.bf16.msra.mxu0 0
        %2611 = vmatprep.subr.bf16.mxu0 0
        %2612 = vmatpush1.bf16.msra.mxu0 0
        %2613 = vmatprep.subr.bf16.mxu0 0
        %2614 = vmatpush1.bf16.msra.mxu0 0
        %2615 = vmatprep.subr.bf16.mxu0 0
        %2616 = vmatpush1.bf16.msra.mxu0 0
        %2617 = vmatprep.subr.bf16.mxu0 0
        %2618 = vmatpush1.bf16.msra.mxu0 0
        %2619 = vmatprep.subr.bf16.mxu0 0
        %2620 = vmatpush1.bf16.msra.mxu0 0
        %2621 = vmatprep.subr.bf16.mxu0 0
        %2622 = vmatpush1.bf16.msra.mxu0 0
        %2623 = vmatprep.subr.bf16.mxu0 0
        %2624 = vmatpush1.bf16.msra.mxu0 0
        %2625 = vmatprep.subr.bf16.mxu0 0
        %2626 = vmatpush1.bf16.msra.mxu0 0
        %2627 = vmatprep.subr.bf16.mxu0 0
        %2628 = vmatpush1.bf16.msra.mxu0 0
        %2629 = vmatprep.subr.bf16.mxu0 0
        %2630 = vmatpush1.bf16.msra.mxu0 0
        %2631 = vmatprep.mubr.bf16.mxu0 0
        %2632 = vmatmul.mubr.bf16.gmra.mrb[0].mxu0 %v1846
        %v2633 = vpop.f32.mrb[0].mxu0
        %v2634 = vadd.f32 0.0, %v2633
        %v2635 = vpop.f32.mrb[0].mxu0
        %v2636 = vpop.f32.mrb[0].mxu0
        %v2637 = vpop.f32.mrb[0].mxu0
        %2638 = vdwg.mxu0
        %2639 = vst.msk [vmem:[#allocation2 + $0xf0] sm:$0xff] %vm1888, %v2634
        %v2640 = vld [vmem:[#allocation12] sm:$0xf]
        %v2641 = vld [vmem:[#allocation2] sm:$0xff]
        %v2642 = vld [vmem:[#allocation2 + $0x10] sm:$0xff]
        %v2643 = vld [vmem:[#allocation2 + $0x20] sm:$0xff]
        %v2644 = vld [vmem:[#allocation2 + $0x30] sm:$0xff]
        %v2645 = vld [vmem:[#allocation2 + $0x40] sm:$0xff]
        %v2646 = vld [vmem:[#allocation2 + $0x50] sm:$0xff]
        %v2647 = vld [vmem:[#allocation2 + $0x60] sm:$0xff]
        %v2648 = vld [vmem:[#allocation2 + $0x70] sm:$0xff]
        %v2649 = vld [vmem:[#allocation2 + $0x80] sm:$0xff]
        %v2650 = vld [vmem:[#allocation2 + $0x90] sm:$0xff]
        %v2651 = vld [vmem:[#allocation2 + $0xa0] sm:$0xff]
        %v2652 = vld [vmem:[#allocation2 + $0xb0] sm:$0xff]
        %v2653 = vld [vmem:[#allocation2 + $0xc0] sm:$0xff]
        %v2654 = vld [vmem:[#allocation2 + $0xd0] sm:$0xff]
        %v2655 = vld [vmem:[#allocation2 + $0xe0] sm:$0xff]
        %v2656 = vld [vmem:[#allocation2 + $0xf0] sm:$0xff]
        %v2657 = vpack.c.bf16 %v2642, %v2641
        %v2658 = vpack.c.bf16 %v2644, %v2643
        %v2659 = vpack.c.bf16 %v2646, %v2645
        %v2660 = vpack.c.bf16 %v2648, %v2647
        %v2661 = vpack.c.bf16 %v2650, %v2649
        %v2662 = vpack.c.bf16 %v2652, %v2651
        %v2663 = vpack.c.bf16 %v2654, %v2653
        %v2664 = vpack.c.bf16 %v2656, %v2655
        %2665 = vmatprep.subr.bf16.mxu0 0
        %2666 = vmatpush1.bf16.msra.mxu0 %v2657
        %2667 = vmatprep.subr.bf16.mxu0 0
        %2668 = vmatpush1.bf16.msra.mxu0 %v2658
        %2669 = vmatprep.subr.bf16.mxu0 0
        %2670 = vmatpush1.bf16.msra.mxu0 %v2659
        %2671 = vmatprep.subr.bf16.mxu0 0
        %2672 = vmatpush1.bf16.msra.mxu0 %v2660
        %2673 = vmatprep.subr.bf16.mxu0 0
        %2674 = vmatpush1.bf16.msra.mxu0 %v2661
        %2675 = vmatprep.subr.bf16.mxu0 0
        %2676 = vmatpush1.bf16.msra.mxu0 %v2662
        %2677 = vmatprep.subr.bf16.mxu0 0
        %2678 = vmatpush1.bf16.msra.mxu0 %v2663
        %2679 = vmatprep.subr.bf16.mxu0 0
        %2680 = vmatpush1.bf16.msra.mxu0 %v2664
        %2681 = vmatprep.subr.bf16.mxu0 0
        %2682 = vmatpush1.bf16.msra.mxu0 0
        %2683 = vmatprep.subr.bf16.mxu0 0
        %2684 = vmatpush1.bf16.msra.mxu0 0
        %2685 = vmatprep.subr.bf16.mxu0 0
        %2686 = vmatpush1.bf16.msra.mxu0 0
        %2687 = vmatprep.subr.bf16.mxu0 0
        %2688 = vmatpush1.bf16.msra.mxu0 0
        %2689 = vmatprep.subr.bf16.mxu0 0
        %2690 = vmatpush1.bf16.msra.mxu0 0
        %2691 = vmatprep.subr.bf16.mxu0 0
        %2692 = vmatpush1.bf16.msra.mxu0 0
        %2693 = vmatprep.subr.bf16.mxu0 0
        %2694 = vmatpush1.bf16.msra.mxu0 0
        %2695 = vmatprep.subr.bf16.mxu0 0
        %2696 = vmatpush1.bf16.msra.mxu0 0
        %2697 = vmatprep.mubr.bf16.mxu0 0
        %2698 = vmatmul.mubr.bf16.gmra.mrb[0].mxu0 %v2640
        %v2699 = vpop.f32.mrb[0].mxu0
        %v2700 = vadd.f32 0.0, %v2699
        %v2701 = vpop.f32.mrb[0].mxu0
        %v2702 = vpop.f32.mrb[0].mxu0
        %v2703 = vpop.f32.mrb[0].mxu0
        %2704 = vdwg.mxu0
        %s2705 = scalar_lea.vmem %s13, 40
        %v2706 = vld [vmem:[%s2705] sm:$0xff]
        %2708 = vset.pattern.permute.xlu0 0
        %2709 = vperm.xlu0 %2708, %v2706
        %v2710 = vpop.permute.xlu0 %2709
        %v2712 = vmul.f32 %v2700, %v2710
        %s2713 = scalar_lea.vmem %s14, 40
        %v2714 = vld [vmem:[%s2713] sm:$0xff]
        %2716 = vset.pattern.permute.xlu0 0
        %2717 = vperm.xlu0 %2716, %v2714
        %v2718 = vpop.permute.xlu0 %2717
        %v2720 = vadd.f32 %v2712, %v2718
        %v2721 = vmax.f32 %v2720, 0.0
        %v2722 = vpack.c.bf16 %v2721, %v2721
        %v2723 = vld [vmem:[#allocation14] sm:$0xff]
        %v2724 = vld [vmem:[#allocation14 + $0x8] sm:$0xff]
        %v2725 = vld [vmem:[#allocation14 + $0x10] sm:$0xff]
        %v2726 = vld [vmem:[#allocation14 + $0x18] sm:$0xff]
        %v2727 = vld [vmem:[#allocation14 + $0x20] sm:$0xff]
        %v2728 = vld [vmem:[#allocation14 + $0x28] sm:$0xff]
        %v2729 = vld [vmem:[#allocation14 + $0x30] sm:$0xff]
        %v2730 = vld [vmem:[#allocation14 + $0x38] sm:$0xff]
        %v2739 = vunpack.c.l.b16 %v2723
        %v2740 = vunpack.c.h.b16 %v2723
        %v2741 = vunpack.c.l.b16 %v2724
        %v2742 = vunpack.c.h.b16 %v2724
        %v2743 = vunpack.c.l.b16 %v2725
        %v2744 = vunpack.c.h.b16 %v2725
        %v2745 = vunpack.c.l.b16 %v2726
        %v2746 = vunpack.c.h.b16 %v2726
        %v2747 = vunpack.c.l.b16 %v2727
        %v2748 = vunpack.c.h.b16 %v2727
        %v2749 = vunpack.c.l.b16 %v2728
        %v2750 = vunpack.c.h.b16 %v2728
        %v2751 = vunpack.c.l.b16 %v2729
        %v2752 = vunpack.c.h.b16 %v2729
        %v2753 = vunpack.c.l.b16 %v2730
        %v2754 = vunpack.c.h.b16 %v2730
        %v2755 = vpack.c.b16 %v2741, %v2739
        %v2756 = vpack.c.b16 %v2742, %v2740
        %v2757 = vpack.c.b16 %v2745, %v2743
        %v2758 = vpack.c.b16 %v2746, %v2744
        %v2759 = vpack.c.b16 %v2749, %v2747
        %v2760 = vpack.c.b16 %v2750, %v2748
        %v2761 = vpack.c.b16 %v2753, %v2751
        %v2762 = vpack.c.b16 %v2754, %v2752
        %v2772 = vsel %vm1888, %v2722, 0
        %2774 = vmatprep.subr.bf16.mxu0 %v2756
        %2775 = vmatpush1.bf16.msra.mxu0 %v2755
        %2776 = vmatprep.subr.bf16.mxu0 %v2758
        %2777 = vmatpush1.bf16.msra.mxu0 %v2757
        %2778 = vmatprep.subr.bf16.mxu0 %v2760
        %2779 = vmatpush1.bf16.msra.mxu0 %v2759
        %2780 = vmatprep.subr.bf16.mxu0 %v2762
        %2781 = vmatpush1.bf16.msra.mxu0 %v2761
        %2782 = vmatprep.subr.bf16.mxu0 0
        %2783 = vmatpush1.bf16.msra.mxu0 0
        %2784 = vmatprep.subr.bf16.mxu0 0
        %2785 = vmatpush1.bf16.msra.mxu0 0
        %2786 = vmatprep.subr.bf16.mxu0 0
        %2787 = vmatpush1.bf16.msra.mxu0 0
        %2788 = vmatprep.subr.bf16.mxu0 0
        %2789 = vmatpush1.bf16.msra.mxu0 0
        %2790 = vmatprep.subr.bf16.mxu0 0
        %2791 = vmatpush1.bf16.msra.mxu0 0
        %2792 = vmatprep.subr.bf16.mxu0 0
        %2793 = vmatpush1.bf16.msra.mxu0 0
        %2794 = vmatprep.subr.bf16.mxu0 0
        %2795 = vmatpush1.bf16.msra.mxu0 0
        %2796 = vmatprep.subr.bf16.mxu0 0
        %2797 = vmatpush1.bf16.msra.mxu0 0
        %2798 = vmatprep.subr.bf16.mxu0 0
        %2799 = vmatpush1.bf16.msra.mxu0 0
        %2800 = vmatprep.subr.bf16.mxu0 0
        %2801 = vmatpush1.bf16.msra.mxu0 0
        %2802 = vmatprep.subr.bf16.mxu0 0
        %2803 = vmatpush1.bf16.msra.mxu0 0
        %2804 = vmatprep.subr.bf16.mxu0 0
        %2805 = vmatpush1.bf16.msra.mxu0 0
        %2806 = vmatprep.mubr.bf16.mxu0 0
        %2807 = vmatmul.mubr.bf16.gmra.mrb[0].mxu0 %v2772
        %v2808 = vpop.f32.mrb[0].mxu0
        %v2809 = vadd.f32 0.0, %v2808
        %v2810 = vpop.f32.mrb[0].mxu0
        %v2811 = vadd.f32 0.0, %v2810
        %v2812 = vpop.f32.mrb[0].mxu0
        %v2813 = vpop.f32.mrb[0].mxu0
        %2814 = vdwg.mxu0
        %2815 = vst [vmem:[#allocation2] sm:$0xff] %v2809
        %2816 = vst [vmem:[#allocation2 + $0x8] sm:$0xff] %v2811
        %s2817 = scalar_lea.vmem [#allocation14], 64
        %v2818 = vld [vmem:[%s2817] sm:$0xff]
        %v2819 = vld [vmem:[%s2817 + $0x8] sm:$0xff]
        %v2820 = vld [vmem:[%s2817 + $0x10] sm:$0xff]
        %v2821 = vld [vmem:[%s2817 + $0x18] sm:$0xff]
        %v2822 = vld [vmem:[%s2817 + $0x20] sm:$0xff]
        %v2823 = vld [vmem:[%s2817 + $0x28] sm:$0xff]
        %v2824 = vld [vmem:[%s2817 + $0x30] sm:$0xff]
        %v2825 = vld [vmem:[%s2817 + $0x38] sm:$0xff]
        %v2834 = vunpack.c.l.b16 %v2818
        %v2835 = vunpack.c.h.b16 %v2818
        %v2836 = vunpack.c.l.b16 %v2819
        %v2837 = vunpack.c.h.b16 %v2819
        %v2838 = vunpack.c.l.b16 %v2820
        %v2839 = vunpack.c.h.b16 %v2820
        %v2840 = vunpack.c.l.b16 %v2821
        %v2841 = vunpack.c.h.b16 %v2821
        %v2842 = vunpack.c.l.b16 %v2822
        %v2843 = vunpack.c.h.b16 %v2822
        %v2844 = vunpack.c.l.b16 %v2823
        %v2845 = vunpack.c.h.b16 %v2823
        %v2846 = vunpack.c.l.b16 %v2824
        %v2847 = vunpack.c.h.b16 %v2824
        %v2848 = vunpack.c.l.b16 %v2825
        %v2849 = vunpack.c.h.b16 %v2825
        %v2850 = vpack.c.b16 %v2836, %v2834
        %v2851 = vpack.c.b16 %v2837, %v2835
        %v2852 = vpack.c.b16 %v2840, %v2838
        %v2853 = vpack.c.b16 %v2841, %v2839
        %v2854 = vpack.c.b16 %v2844, %v2842
        %v2855 = vpack.c.b16 %v2845, %v2843
        %v2856 = vpack.c.b16 %v2848, %v2846
        %v2857 = vpack.c.b16 %v2849, %v2847
        %2866 = vmatprep.subr.bf16.mxu0 %v2851
        %2867 = vmatpush1.bf16.msra.mxu0 %v2850
        %2868 = vmatprep.subr.bf16.mxu0 %v2853
        %2869 = vmatpush1.bf16.msra.mxu0 %v2852
        %2870 = vmatprep.subr.bf16.mxu0 %v2855
        %2871 = vmatpush1.bf16.msra.mxu0 %v2854
        %2872 = vmatprep.subr.bf16.mxu0 %v2857
        %2873 = vmatpush1.bf16.msra.mxu0 %v2856
        %2874 = vmatprep.subr.bf16.mxu0 0
        %2875 = vmatpush1.bf16.msra.mxu0 0
        %2876 = vmatprep.subr.bf16.mxu0 0
        %2877 = vmatpush1.bf16.msra.mxu0 0
        %2878 = vmatprep.subr.bf16.mxu0 0
        %2879 = vmatpush1.bf16.msra.mxu0 0
        %2880 = vmatprep.subr.bf16.mxu0 0
        %2881 = vmatpush1.bf16.msra.mxu0 0
        %2882 = vmatprep.subr.bf16.mxu0 0
        %2883 = vmatpush1.bf16.msra.mxu0 0
        %2884 = vmatprep.subr.bf16.mxu0 0
        %2885 = vmatpush1.bf16.msra.mxu0 0
        %2886 = vmatprep.subr.bf16.mxu0 0
        %2887 = vmatpush1.bf16.msra.mxu0 0
        %2888 = vmatprep.subr.bf16.mxu0 0
        %2889 = vmatpush1.bf16.msra.mxu0 0
        %2890 = vmatprep.subr.bf16.mxu0 0
        %2891 = vmatpush1.bf16.msra.mxu0 0
        %2892 = vmatprep.subr.bf16.mxu0 0
        %2893 = vmatpush1.bf16.msra.mxu0 0
        %2894 = vmatprep.subr.bf16.mxu0 0
        %2895 = vmatpush1.bf16.msra.mxu0 0
        %2896 = vmatprep.subr.bf16.mxu0 0
        %2897 = vmatpush1.bf16.msra.mxu0 0
        %2898 = vmatprep.mubr.bf16.mxu0 0
        %2899 = vmatmul.mubr.bf16.gmra.mrb[0].mxu0 %v2772
        %v2900 = vpop.f32.mrb[0].mxu0
        %v2901 = vadd.f32 0.0, %v2900
        %v2902 = vpop.f32.mrb[0].mxu0
        %v2903 = vadd.f32 0.0, %v2902
        %v2904 = vpop.f32.mrb[0].mxu0
        %v2905 = vpop.f32.mrb[0].mxu0
        %2906 = vdwg.mxu0
        %2907 = vst [vmem:[#allocation2 + $0x10] sm:$0xff] %v2901
        %2908 = vst [vmem:[#allocation2 + $0x18] sm:$0xff] %v2903
        %s2909 = scalar_lea.vmem [#allocation14], 128
        %v2910 = vld [vmem:[%s2909] sm:$0xff]
        %v2911 = vld [vmem:[%s2909 + $0x8] sm:$0xff]
        %v2912 = vld [vmem:[%s2909 + $0x10] sm:$0xff]
        %v2913 = vld [vmem:[%s2909 + $0x18] sm:$0xff]
        %v2914 = vld [vmem:[%s2909 + $0x20] sm:$0xff]
        %v2915 = vld [vmem:[%s2909 + $0x28] sm:$0xff]
        %v2916 = vld [vmem:[%s2909 + $0x30] sm:$0xff]
        %v2917 = vld [vmem:[%s2909 + $0x38] sm:$0xff]
        %v2926 = vunpack.c.l.b16 %v2910
        %v2927 = vunpack.c.h.b16 %v2910
        %v2928 = vunpack.c.l.b16 %v2911
        %v2929 = vunpack.c.h.b16 %v2911
        %v2930 = vunpack.c.l.b16 %v2912
        %v2931 = vunpack.c.h.b16 %v2912
        %v2932 = vunpack.c.l.b16 %v2913
        %v2933 = vunpack.c.h.b16 %v2913
        %v2934 = vunpack.c.l.b16 %v2914
        %v2935 = vunpack.c.h.b16 %v2914
        %v2936 = vunpack.c.l.b16 %v2915
        %v2937 = vunpack.c.h.b16 %v2915
        %v2938 = vunpack.c.l.b16 %v2916
        %v2939 = vunpack.c.h.b16 %v2916
        %v2940 = vunpack.c.l.b16 %v2917
        %v2941 = vunpack.c.h.b16 %v2917
        %v2942 = vpack.c.b16 %v2928, %v2926
        %v2943 = vpack.c.b16 %v2929, %v2927
        %v2944 = vpack.c.b16 %v2932, %v2930
        %v2945 = vpack.c.b16 %v2933, %v2931
        %v2946 = vpack.c.b16 %v2936, %v2934
        %v2947 = vpack.c.b16 %v2937, %v2935
        %v2948 = vpack.c.b16 %v2940, %v2938
        %v2949 = vpack.c.b16 %v2941, %v2939
        %2958 = vmatprep.subr.bf16.mxu0 %v2943
        %2959 = vmatpush1.bf16.msra.mxu0 %v2942
        %2960 = vmatprep.subr.bf16.mxu0 %v2945
        %2961 = vmatpush1.bf16.msra.mxu0 %v2944
        %2962 = vmatprep.subr.bf16.mxu0 %v2947
        %2963 = vmatpush1.bf16.msra.mxu0 %v2946
        %2964 = vmatprep.subr.bf16.mxu0 %v2949
        %2965 = vmatpush1.bf16.msra.mxu0 %v2948
        %2966 = vmatprep.subr.bf16.mxu0 0
        %2967 = vmatpush1.bf16.msra.mxu0 0
        %2968 = vmatprep.subr.bf16.mxu0 0
        %2969 = vmatpush1.bf16.msra.mxu0 0
        %2970 = vmatprep.subr.bf16.mxu0 0
        %2971 = vmatpush1.bf16.msra.mxu0 0
        %2972 = vmatprep.subr.bf16.mxu0 0
        %2973 = vmatpush1.bf16.msra.mxu0 0
        %2974 = vmatprep.subr.bf16.mxu0 0
        %2975 = vmatpush1.bf16.msra.mxu0 0
        %2976 = vmatprep.subr.bf16.mxu0 0
        %2977 = vmatpush1.bf16.msra.mxu0 0
        %2978 = vmatprep.subr.bf16.mxu0 0
        %2979 = vmatpush1.bf16.msra.mxu0 0
        %2980 = vmatprep.subr.bf16.mxu0 0
        %2981 = vmatpush1.bf16.msra.mxu0 0
        %2982 = vmatprep.subr.bf16.mxu0 0
        %2983 = vmatpush1.bf16.msra.mxu0 0
        %2984 = vmatprep.subr.bf16.mxu0 0
        %2985 = vmatpush1.bf16.msra.mxu0 0
        %2986 = vmatprep.subr.bf16.mxu0 0
        %2987 = vmatpush1.bf16.msra.mxu0 0
        %2988 = vmatprep.subr.bf16.mxu0 0
        %2989 = vmatpush1.bf16.msra.mxu0 0
        %2990 = vmatprep.mubr.bf16.mxu0 0
        %2991 = vmatmul.mubr.bf16.gmra.mrb[0].mxu0 %v2772
        %v2992 = vpop.f32.mrb[0].mxu0
        %v2993 = vadd.f32 0.0, %v2992
        %v2994 = vpop.f32.mrb[0].mxu0
        %v2995 = vadd.f32 0.0, %v2994
        %v2996 = vpop.f32.mrb[0].mxu0
        %v2997 = vpop.f32.mrb[0].mxu0
        %2998 = vdwg.mxu0
        %2999 = vst [vmem:[#allocation2 + $0x20] sm:$0xff] %v2993
        %3000 = vst [vmem:[#allocation2 + $0x28] sm:$0xff] %v2995
        %s3001 = scalar_lea.vmem [#allocation14], 192
        %v3002 = vld [vmem:[%s3001] sm:$0xff]
        %v3003 = vld [vmem:[%s3001 + $0x8] sm:$0xff]
        %v3004 = vld [vmem:[%s3001 + $0x10] sm:$0xff]
        %v3005 = vld [vmem:[%s3001 + $0x18] sm:$0xff]
        %v3006 = vld [vmem:[%s3001 + $0x20] sm:$0xff]
        %v3007 = vld [vmem:[%s3001 + $0x28] sm:$0xff]
        %v3008 = vld [vmem:[%s3001 + $0x30] sm:$0xff]
        %v3009 = vld [vmem:[%s3001 + $0x38] sm:$0xff]
        %v3018 = vunpack.c.l.b16 %v3002
        %v3019 = vunpack.c.h.b16 %v3002
        %v3020 = vunpack.c.l.b16 %v3003
        %v3021 = vunpack.c.h.b16 %v3003
        %v3022 = vunpack.c.l.b16 %v3004
        %v3023 = vunpack.c.h.b16 %v3004
        %v3024 = vunpack.c.l.b16 %v3005
        %v3025 = vunpack.c.h.b16 %v3005
        %v3026 = vunpack.c.l.b16 %v3006
        %v3027 = vunpack.c.h.b16 %v3006
        %v3028 = vunpack.c.l.b16 %v3007
        %v3029 = vunpack.c.h.b16 %v3007
        %v3030 = vunpack.c.l.b16 %v3008
        %v3031 = vunpack.c.h.b16 %v3008
        %v3032 = vunpack.c.l.b16 %v3009
        %v3033 = vunpack.c.h.b16 %v3009
        %v3034 = vpack.c.b16 %v3020, %v3018
        %v3035 = vpack.c.b16 %v3021, %v3019
        %v3036 = vpack.c.b16 %v3024, %v3022
        %v3037 = vpack.c.b16 %v3025, %v3023
        %v3038 = vpack.c.b16 %v3028, %v3026
        %v3039 = vpack.c.b16 %v3029, %v3027
        %v3040 = vpack.c.b16 %v3032, %v3030
        %v3041 = vpack.c.b16 %v3033, %v3031
        %3050 = vmatprep.subr.bf16.mxu0 %v3035
        %3051 = vmatpush1.bf16.msra.mxu0 %v3034
        %3052 = vmatprep.subr.bf16.mxu0 %v3037
        %3053 = vmatpush1.bf16.msra.mxu0 %v3036
        %3054 = vmatprep.subr.bf16.mxu0 %v3039
        %3055 = vmatpush1.bf16.msra.mxu0 %v3038
        %3056 = vmatprep.subr.bf16.mxu0 %v3041
        %3057 = vmatpush1.bf16.msra.mxu0 %v3040
        %3058 = vmatprep.subr.bf16.mxu0 0
        %3059 = vmatpush1.bf16.msra.mxu0 0
        %3060 = vmatprep.subr.bf16.mxu0 0
        %3061 = vmatpush1.bf16.msra.mxu0 0
        %3062 = vmatprep.subr.bf16.mxu0 0
        %3063 = vmatpush1.bf16.msra.mxu0 0
        %3064 = vmatprep.subr.bf16.mxu0 0
        %3065 = vmatpush1.bf16.msra.mxu0 0
        %3066 = vmatprep.subr.bf16.mxu0 0
        %3067 = vmatpush1.bf16.msra.mxu0 0
        %3068 = vmatprep.subr.bf16.mxu0 0
        %3069 = vmatpush1.bf16.msra.mxu0 0
        %3070 = vmatprep.subr.bf16.mxu0 0
        %3071 = vmatpush1.bf16.msra.mxu0 0
        %3072 = vmatprep.subr.bf16.mxu0 0
        %3073 = vmatpush1.bf16.msra.mxu0 0
        %3074 = vmatprep.subr.bf16.mxu0 0
        %3075 = vmatpush1.bf16.msra.mxu0 0
        %3076 = vmatprep.subr.bf16.mxu0 0
        %3077 = vmatpush1.bf16.msra.mxu0 0
        %3078 = vmatprep.subr.bf16.mxu0 0
        %3079 = vmatpush1.bf16.msra.mxu0 0
        %3080 = vmatprep.subr.bf16.mxu0 0
        %3081 = vmatpush1.bf16.msra.mxu0 0
        %3082 = vmatprep.mubr.bf16.mxu0 0
        %3083 = vmatmul.mubr.bf16.gmra.mrb[0].mxu0 %v2772
        %v3084 = vpop.f32.mrb[0].mxu0
        %v3085 = vadd.f32 0.0, %v3084
        %v3086 = vpop.f32.mrb[0].mxu0
        %v3087 = vadd.f32 0.0, %v3086
        %v3088 = vpop.f32.mrb[0].mxu0
        %v3089 = vpop.f32.mrb[0].mxu0
        %3090 = vdwg.mxu0
        %3091 = vst [vmem:[#allocation2 + $0x30] sm:$0xff] %v3085
        %3092 = vst [vmem:[#allocation2 + $0x38] sm:$0xff] %v3087
        %s3093 = scalar_lea.vmem [#allocation14], 256
        %v3094 = vld [vmem:[%s3093] sm:$0xff]
        %v3095 = vld [vmem:[%s3093 + $0x8] sm:$0xff]
        %v3096 = vld [vmem:[%s3093 + $0x10] sm:$0xff]
        %v3097 = vld [vmem:[%s3093 + $0x18] sm:$0xff]
        %v3098 = vld [vmem:[%s3093 + $0x20] sm:$0xff]
        %v3099 = vld [vmem:[%s3093 + $0x28] sm:$0xff]
        %v3100 = vld [vmem:[%s3093 + $0x30] sm:$0xff]
        %v3101 = vld [vmem:[%s3093 + $0x38] sm:$0xff]
        %v3110 = vunpack.c.l.b16 %v3094
        %v3111 = vunpack.c.h.b16 %v3094
        %v3112 = vunpack.c.l.b16 %v3095
        %v3113 = vunpack.c.h.b16 %v3095
        %v3114 = vunpack.c.l.b16 %v3096
        %v3115 = vunpack.c.h.b16 %v3096
        %v3116 = vunpack.c.l.b16 %v3097
        %v3117 = vunpack.c.h.b16 %v3097
        %v3118 = vunpack.c.l.b16 %v3098
        %v3119 = vunpack.c.h.b16 %v3098
        %v3120 = vunpack.c.l.b16 %v3099
        %v3121 = vunpack.c.h.b16 %v3099
        %v3122 = vunpack.c.l.b16 %v3100
        %v3123 = vunpack.c.h.b16 %v3100
        %v3124 = vunpack.c.l.b16 %v3101
        %v3125 = vunpack.c.h.b16 %v3101
        %v3126 = vpack.c.b16 %v3112, %v3110
        %v3127 = vpack.c.b16 %v3113, %v3111
        %v3128 = vpack.c.b16 %v3116, %v3114
        %v3129 = vpack.c.b16 %v3117, %v3115
        %v3130 = vpack.c.b16 %v3120, %v3118
        %v3131 = vpack.c.b16 %v3121, %v3119
        %v3132 = vpack.c.b16 %v3124, %v3122
        %v3133 = vpack.c.b16 %v3125, %v3123
        %3142 = vmatprep.subr.bf16.mxu0 %v3127
        %3143 = vmatpush1.bf16.msra.mxu0 %v3126
        %3144 = vmatprep.subr.bf16.mxu0 %v3129
        %3145 = vmatpush1.bf16.msra.mxu0 %v3128
        %3146 = vmatprep.subr.bf16.mxu0 %v3131
        %3147 = vmatpush1.bf16.msra.mxu0 %v3130
        %3148 = vmatprep.subr.bf16.mxu0 %v3133
        %3149 = vmatpush1.bf16.msra.mxu0 %v3132
        %3150 = vmatprep.subr.bf16.mxu0 0
        %3151 = vmatpush1.bf16.msra.mxu0 0
        %3152 = vmatprep.subr.bf16.mxu0 0
        %3153 = vmatpush1.bf16.msra.mxu0 0
        %3154 = vmatprep.subr.bf16.mxu0 0
        %3155 = vmatpush1.bf16.msra.mxu0 0
        %3156 = vmatprep.subr.bf16.mxu0 0
        %3157 = vmatpush1.bf16.msra.mxu0 0
        %3158 = vmatprep.subr.bf16.mxu0 0
        %3159 = vmatpush1.bf16.msra.mxu0 0
        %3160 = vmatprep.subr.bf16.mxu0 0
        %3161 = vmatpush1.bf16.msra.mxu0 0
        %3162 = vmatprep.subr.bf16.mxu0 0
        %3163 = vmatpush1.bf16.msra.mxu0 0
        %3164 = vmatprep.subr.bf16.mxu0 0
        %3165 = vmatpush1.bf16.msra.mxu0 0
        %3166 = vmatprep.subr.bf16.mxu0 0
        %3167 = vmatpush1.bf16.msra.mxu0 0
        %3168 = vmatprep.subr.bf16.mxu0 0
        %3169 = vmatpush1.bf16.msra.mxu0 0
        %3170 = vmatprep.subr.bf16.mxu0 0
        %3171 = vmatpush1.bf16.msra.mxu0 0
        %3172 = vmatprep.subr.bf16.mxu0 0
        %3173 = vmatpush1.bf16.msra.mxu0 0
        %3174 = vmatprep.mubr.bf16.mxu0 0
        %3175 = vmatmul.mubr.bf16.gmra.mrb[0].mxu0 %v2772
        %v3176 = vpop.f32.mrb[0].mxu0
        %v3177 = vadd.f32 0.0, %v3176
        %v3178 = vpop.f32.mrb[0].mxu0
        %v3179 = vadd.f32 0.0, %v3178
        %v3180 = vpop.f32.mrb[0].mxu0
        %v3181 = vpop.f32.mrb[0].mxu0
        %3182 = vdwg.mxu0
        %3183 = vst [vmem:[#allocation2 + $0x40] sm:$0xff] %v3177
        %3184 = vst [vmem:[#allocation2 + $0x48] sm:$0xff] %v3179
        %s3185 = scalar_lea.vmem [#allocation14], 320
        %v3186 = vld [vmem:[%s3185] sm:$0xff]
        %v3187 = vld [vmem:[%s3185 + $0x8] sm:$0xff]
        %v3188 = vld [vmem:[%s3185 + $0x10] sm:$0xff]
        %v3189 = vld [vmem:[%s3185 + $0x18] sm:$0xff]
        %v3190 = vld [vmem:[%s3185 + $0x20] sm:$0xff]
        %v3191 = vld [vmem:[%s3185 + $0x28] sm:$0xff]
        %v3192 = vld [vmem:[%s3185 + $0x30] sm:$0xff]
        %v3193 = vld [vmem:[%s3185 + $0x38] sm:$0xff]
        %v3202 = vunpack.c.l.b16 %v3186
        %v3203 = vunpack.c.h.b16 %v3186
        %v3204 = vunpack.c.l.b16 %v3187
        %v3205 = vunpack.c.h.b16 %v3187
        %v3206 = vunpack.c.l.b16 %v3188
        %v3207 = vunpack.c.h.b16 %v3188
        %v3208 = vunpack.c.l.b16 %v3189
        %v3209 = vunpack.c.h.b16 %v3189
        %v3210 = vunpack.c.l.b16 %v3190
        %v3211 = vunpack.c.h.b16 %v3190
        %v3212 = vunpack.c.l.b16 %v3191
        %v3213 = vunpack.c.h.b16 %v3191
        %v3214 = vunpack.c.l.b16 %v3192
        %v3215 = vunpack.c.h.b16 %v3192
        %v3216 = vunpack.c.l.b16 %v3193
        %v3217 = vunpack.c.h.b16 %v3193
        %v3218 = vpack.c.b16 %v3204, %v3202
        %v3219 = vpack.c.b16 %v3205, %v3203
        %v3220 = vpack.c.b16 %v3208, %v3206
        %v3221 = vpack.c.b16 %v3209, %v3207
        %v3222 = vpack.c.b16 %v3212, %v3210
        %v3223 = vpack.c.b16 %v3213, %v3211
        %v3224 = vpack.c.b16 %v3216, %v3214
        %v3225 = vpack.c.b16 %v3217, %v3215
        %3234 = vmatprep.subr.bf16.mxu0 %v3219
        %3235 = vmatpush1.bf16.msra.mxu0 %v3218
        %3236 = vmatprep.subr.bf16.mxu0 %v3221
        %3237 = vmatpush1.bf16.msra.mxu0 %v3220
        %3238 = vmatprep.subr.bf16.mxu0 %v3223
        %3239 = vmatpush1.bf16.msra.mxu0 %v3222
        %3240 = vmatprep.subr.bf16.mxu0 %v3225
        %3241 = vmatpush1.bf16.msra.mxu0 %v3224
        %3242 = vmatprep.subr.bf16.mxu0 0
        %3243 = vmatpush1.bf16.msra.mxu0 0
        %3244 = vmatprep.subr.bf16.mxu0 0
        %3245 = vmatpush1.bf16.msra.mxu0 0
        %3246 = vmatprep.subr.bf16.mxu0 0
        %3247 = vmatpush1.bf16.msra.mxu0 0
        %3248 = vmatprep.subr.bf16.mxu0 0
        %3249 = vmatpush1.bf16.msra.mxu0 0
        %3250 = vmatprep.subr.bf16.mxu0 0
        %3251 = vmatpush1.bf16.msra.mxu0 0
        %3252 = vmatprep.subr.bf16.mxu0 0
        %3253 = vmatpush1.bf16.msra.mxu0 0
        %3254 = vmatprep.subr.bf16.mxu0 0
        %3255 = vmatpush1.bf16.msra.mxu0 0
        %3256 = vmatprep.subr.bf16.mxu0 0
        %3257 = vmatpush1.bf16.msra.mxu0 0
        %3258 = vmatprep.subr.bf16.mxu0 0
        %3259 = vmatpush1.bf16.msra.mxu0 0
        %3260 = vmatprep.subr.bf16.mxu0 0
        %3261 = vmatpush1.bf16.msra.mxu0 0
        %3262 = vmatprep.subr.bf16.mxu0 0
        %3263 = vmatpush1.bf16.msra.mxu0 0
        %3264 = vmatprep.subr.bf16.mxu0 0
        %3265 = vmatpush1.bf16.msra.mxu0 0
        %3266 = vmatprep.mubr.bf16.mxu0 0
        %3267 = vmatmul.mubr.bf16.gmra.mrb[0].mxu0 %v2772
        %v3268 = vpop.f32.mrb[0].mxu0
        %v3269 = vadd.f32 0.0, %v3268
        %v3270 = vpop.f32.mrb[0].mxu0
        %v3271 = vadd.f32 0.0, %v3270
        %v3272 = vpop.f32.mrb[0].mxu0
        %v3273 = vpop.f32.mrb[0].mxu0
        %3274 = vdwg.mxu0
        %3275 = vst [vmem:[#allocation2 + $0x50] sm:$0xff] %v3269
        %3276 = vst [vmem:[#allocation2 + $0x58] sm:$0xff] %v3271
        %s3277 = scalar_lea.vmem [#allocation14], 384
        %v3278 = vld [vmem:[%s3277] sm:$0xff]
        %v3279 = vld [vmem:[%s3277 + $0x8] sm:$0xff]
        %v3280 = vld [vmem:[%s3277 + $0x10] sm:$0xff]
        %v3281 = vld [vmem:[%s3277 + $0x18] sm:$0xff]
        %v3282 = vld [vmem:[%s3277 + $0x20] sm:$0xff]
        %v3283 = vld [vmem:[%s3277 + $0x28] sm:$0xff]
        %v3284 = vld [vmem:[%s3277 + $0x30] sm:$0xff]
        %v3285 = vld [vmem:[%s3277 + $0x38] sm:$0xff]
        %v3294 = vunpack.c.l.b16 %v3278
        %v3295 = vunpack.c.h.b16 %v3278
        %v3296 = vunpack.c.l.b16 %v3279
        %v3297 = vunpack.c.h.b16 %v3279
        %v3298 = vunpack.c.l.b16 %v3280
        %v3299 = vunpack.c.h.b16 %v3280
        %v3300 = vunpack.c.l.b16 %v3281
        %v3301 = vunpack.c.h.b16 %v3281
        %v3302 = vunpack.c.l.b16 %v3282
        %v3303 = vunpack.c.h.b16 %v3282
        %v3304 = vunpack.c.l.b16 %v3283
        %v3305 = vunpack.c.h.b16 %v3283
        %v3306 = vunpack.c.l.b16 %v3284
        %v3307 = vunpack.c.h.b16 %v3284
        %v3308 = vunpack.c.l.b16 %v3285
        %v3309 = vunpack.c.h.b16 %v3285
        %v3310 = vpack.c.b16 %v3296, %v3294
        %v3311 = vpack.c.b16 %v3297, %v3295
        %v3312 = vpack.c.b16 %v3300, %v3298
        %v3313 = vpack.c.b16 %v3301, %v3299
        %v3314 = vpack.c.b16 %v3304, %v3302
        %v3315 = vpack.c.b16 %v3305, %v3303
        %v3316 = vpack.c.b16 %v3308, %v3306
        %v3317 = vpack.c.b16 %v3309, %v3307
        %3326 = vmatprep.subr.bf16.mxu0 %v3311
        %3327 = vmatpush1.bf16.msra.mxu0 %v3310
        %3328 = vmatprep.subr.bf16.mxu0 %v3313
        %3329 = vmatpush1.bf16.msra.mxu0 %v3312
        %3330 = vmatprep.subr.bf16.mxu0 %v3315
        %3331 = vmatpush1.bf16.msra.mxu0 %v3314
        %3332 = vmatprep.subr.bf16.mxu0 %v3317
        %3333 = vmatpush1.bf16.msra.mxu0 %v3316
        %3334 = vmatprep.subr.bf16.mxu0 0
        %3335 = vmatpush1.bf16.msra.mxu0 0
        %3336 = vmatprep.subr.bf16.mxu0 0
        %3337 = vmatpush1.bf16.msra.mxu0 0
        %3338 = vmatprep.subr.bf16.mxu0 0
        %3339 = vmatpush1.bf16.msra.mxu0 0
        %3340 = vmatprep.subr.bf16.mxu0 0
        %3341 = vmatpush1.bf16.msra.mxu0 0
        %3342 = vmatprep.subr.bf16.mxu0 0
        %3343 = vmatpush1.bf16.msra.mxu0 0
        %3344 = vmatprep.subr.bf16.mxu0 0
        %3345 = vmatpush1.bf16.msra.mxu0 0
        %3346 = vmatprep.subr.bf16.mxu0 0
        %3347 = vmatpush1.bf16.msra.mxu0 0
        %3348 = vmatprep.subr.bf16.mxu0 0
        %3349 = vmatpush1.bf16.msra.mxu0 0
        %3350 = vmatprep.subr.bf16.mxu0 0
        %3351 = vmatpush1.bf16.msra.mxu0 0
        %3352 = vmatprep.subr.bf16.mxu0 0
        %3353 = vmatpush1.bf16.msra.mxu0 0
        %3354 = vmatprep.subr.bf16.mxu0 0
        %3355 = vmatpush1.bf16.msra.mxu0 0
        %3356 = vmatprep.subr.bf16.mxu0 0
        %3357 = vmatpush1.bf16.msra.mxu0 0
        %3358 = vmatprep.mubr.bf16.mxu0 0
        %3359 = vmatmul.mubr.bf16.gmra.mrb[0].mxu0 %v2772
        %v3360 = vpop.f32.mrb[0].mxu0
        %v3361 = vadd.f32 0.0, %v3360
        %v3362 = vpop.f32.mrb[0].mxu0
        %v3363 = vadd.f32 0.0, %v3362
        %v3364 = vpop.f32.mrb[0].mxu0
        %v3365 = vpop.f32.mrb[0].mxu0
        %3366 = vdwg.mxu0
        %3367 = vst [vmem:[#allocation2 + $0x60] sm:$0xff] %v3361
        %3368 = vst [vmem:[#allocation2 + $0x68] sm:$0xff] %v3363
        %s3369 = scalar_lea.vmem [#allocation14], 448
        %v3370 = vld [vmem:[%s3369] sm:$0xff]
        %v3371 = vld [vmem:[%s3369 + $0x8] sm:$0xff]
        %v3372 = vld [vmem:[%s3369 + $0x10] sm:$0xff]
        %v3373 = vld [vmem:[%s3369 + $0x18] sm:$0xff]
        %v3374 = vld [vmem:[%s3369 + $0x20] sm:$0xff]
        %v3375 = vld [vmem:[%s3369 + $0x28] sm:$0xff]
        %v3376 = vld [vmem:[%s3369 + $0x30] sm:$0xff]
        %v3377 = vld [vmem:[%s3369 + $0x38] sm:$0xff]
        %v3386 = vunpack.c.l.b16 %v3370
        %v3387 = vunpack.c.h.b16 %v3370
        %v3388 = vunpack.c.l.b16 %v3371
        %v3389 = vunpack.c.h.b16 %v3371
        %v3390 = vunpack.c.l.b16 %v3372
        %v3391 = vunpack.c.h.b16 %v3372
        %v3392 = vunpack.c.l.b16 %v3373
        %v3393 = vunpack.c.h.b16 %v3373
        %v3394 = vunpack.c.l.b16 %v3374
        %v3395 = vunpack.c.h.b16 %v3374
        %v3396 = vunpack.c.l.b16 %v3375
        %v3397 = vunpack.c.h.b16 %v3375
        %v3398 = vunpack.c.l.b16 %v3376
        %v3399 = vunpack.c.h.b16 %v3376
        %v3400 = vunpack.c.l.b16 %v3377
        %v3401 = vunpack.c.h.b16 %v3377
        %v3402 = vpack.c.b16 %v3388, %v3386
        %v3403 = vpack.c.b16 %v3389, %v3387
        %v3404 = vpack.c.b16 %v3392, %v3390
        %v3405 = vpack.c.b16 %v3393, %v3391
        %v3406 = vpack.c.b16 %v3396, %v3394
        %v3407 = vpack.c.b16 %v3397, %v3395
        %v3408 = vpack.c.b16 %v3400, %v3398
        %v3409 = vpack.c.b16 %v3401, %v3399
        %3418 = vmatprep.subr.bf16.mxu0 %v3403
        %3419 = vmatpush1.bf16.msra.mxu0 %v3402
        %3420 = vmatprep.subr.bf16.mxu0 %v3405
        %3421 = vmatpush1.bf16.msra.mxu0 %v3404
        %3422 = vmatprep.subr.bf16.mxu0 %v3407
        %3423 = vmatpush1.bf16.msra.mxu0 %v3406
        %3424 = vmatprep.subr.bf16.mxu0 %v3409
        %3425 = vmatpush1.bf16.msra.mxu0 %v3408
        %3426 = vmatprep.subr.bf16.mxu0 0
        %3427 = vmatpush1.bf16.msra.mxu0 0
        %3428 = vmatprep.subr.bf16.mxu0 0
        %3429 = vmatpush1.bf16.msra.mxu0 0
        %3430 = vmatprep.subr.bf16.mxu0 0
        %3431 = vmatpush1.bf16.msra.mxu0 0
        %3432 = vmatprep.subr.bf16.mxu0 0
        %3433 = vmatpush1.bf16.msra.mxu0 0
        %3434 = vmatprep.subr.bf16.mxu0 0
        %3435 = vmatpush1.bf16.msra.mxu0 0
        %3436 = vmatprep.subr.bf16.mxu0 0
        %3437 = vmatpush1.bf16.msra.mxu0 0
        %3438 = vmatprep.subr.bf16.mxu0 0
        %3439 = vmatpush1.bf16.msra.mxu0 0
        %3440 = vmatprep.subr.bf16.mxu0 0
        %3441 = vmatpush1.bf16.msra.mxu0 0
        %3442 = vmatprep.subr.bf16.mxu0 0
        %3443 = vmatpush1.bf16.msra.mxu0 0
        %3444 = vmatprep.subr.bf16.mxu0 0
        %3445 = vmatpush1.bf16.msra.mxu0 0
        %3446 = vmatprep.subr.bf16.mxu0 0
        %3447 = vmatpush1.bf16.msra.mxu0 0
        %3448 = vmatprep.subr.bf16.mxu0 0
        %3449 = vmatpush1.bf16.msra.mxu0 0
        %3450 = vmatprep.mubr.bf16.mxu0 0
        %3451 = vmatmul.mubr.bf16.gmra.mrb[0].mxu0 %v2772
        %v3452 = vpop.f32.mrb[0].mxu0
        %v3453 = vadd.f32 0.0, %v3452
        %v3454 = vpop.f32.mrb[0].mxu0
        %v3455 = vadd.f32 0.0, %v3454
        %v3456 = vpop.f32.mrb[0].mxu0
        %v3457 = vpop.f32.mrb[0].mxu0
        %3458 = vdwg.mxu0
        %3459 = vst [vmem:[#allocation2 + $0x70] sm:$0xff] %v3453
        %3460 = vst [vmem:[#allocation2 + $0x78] sm:$0xff] %v3455
        %s3461 = scalar_lea.vmem [#allocation14], 512
        %v3462 = vld [vmem:[%s3461] sm:$0xff]
        %v3463 = vld [vmem:[%s3461 + $0x8] sm:$0xff]
        %v3464 = vld [vmem:[%s3461 + $0x10] sm:$0xff]
        %v3465 = vld [vmem:[%s3461 + $0x18] sm:$0xff]
        %v3466 = vld [vmem:[%s3461 + $0x20] sm:$0xff]
        %v3467 = vld [vmem:[%s3461 + $0x28] sm:$0xff]
        %v3468 = vld [vmem:[%s3461 + $0x30] sm:$0xff]
        %v3469 = vld [vmem:[%s3461 + $0x38] sm:$0xff]
        %v3478 = vunpack.c.l.b16 %v3462
        %v3479 = vunpack.c.h.b16 %v3462
        %v3480 = vunpack.c.l.b16 %v3463
        %v3481 = vunpack.c.h.b16 %v3463
        %v3482 = vunpack.c.l.b16 %v3464
        %v3483 = vunpack.c.h.b16 %v3464
        %v3484 = vunpack.c.l.b16 %v3465
        %v3485 = vunpack.c.h.b16 %v3465
        %v3486 = vunpack.c.l.b16 %v3466
        %v3487 = vunpack.c.h.b16 %v3466
        %v3488 = vunpack.c.l.b16 %v3467
        %v3489 = vunpack.c.h.b16 %v3467
        %v3490 = vunpack.c.l.b16 %v3468
        %v3491 = vunpack.c.h.b16 %v3468
        %v3492 = vunpack.c.l.b16 %v3469
        %v3493 = vunpack.c.h.b16 %v3469
        %v3494 = vpack.c.b16 %v3480, %v3478
        %v3495 = vpack.c.b16 %v3481, %v3479
        %v3496 = vpack.c.b16 %v3484, %v3482
        %v3497 = vpack.c.b16 %v3485, %v3483
        %v3498 = vpack.c.b16 %v3488, %v3486
        %v3499 = vpack.c.b16 %v3489, %v3487
        %v3500 = vpack.c.b16 %v3492, %v3490
        %v3501 = vpack.c.b16 %v3493, %v3491
        %3510 = vmatprep.subr.bf16.mxu0 %v3495
        %3511 = vmatpush1.bf16.msra.mxu0 %v3494
        %3512 = vmatprep.subr.bf16.mxu0 %v3497
        %3513 = vmatpush1.bf16.msra.mxu0 %v3496
        %3514 = vmatprep.subr.bf16.mxu0 %v3499
        %3515 = vmatpush1.bf16.msra.mxu0 %v3498
        %3516 = vmatprep.subr.bf16.mxu0 %v3501
        %3517 = vmatpush1.bf16.msra.mxu0 %v3500
        %3518 = vmatprep.subr.bf16.mxu0 0
        %3519 = vmatpush1.bf16.msra.mxu0 0
        %3520 = vmatprep.subr.bf16.mxu0 0
        %3521 = vmatpush1.bf16.msra.mxu0 0
        %3522 = vmatprep.subr.bf16.mxu0 0
        %3523 = vmatpush1.bf16.msra.mxu0 0
        %3524 = vmatprep.subr.bf16.mxu0 0
        %3525 = vmatpush1.bf16.msra.mxu0 0
        %3526 = vmatprep.subr.bf16.mxu0 0
        %3527 = vmatpush1.bf16.msra.mxu0 0
        %3528 = vmatprep.subr.bf16.mxu0 0
        %3529 = vmatpush1.bf16.msra.mxu0 0
        %3530 = vmatprep.subr.bf16.mxu0 0
        %3531 = vmatpush1.bf16.msra.mxu0 0
        %3532 = vmatprep.subr.bf16.mxu0 0
        %3533 = vmatpush1.bf16.msra.mxu0 0
        %3534 = vmatprep.subr.bf16.mxu0 0
        %3535 = vmatpush1.bf16.msra.mxu0 0
        %3536 = vmatprep.subr.bf16.mxu0 0
        %3537 = vmatpush1.bf16.msra.mxu0 0
        %3538 = vmatprep.subr.bf16.mxu0 0
        %3539 = vmatpush1.bf16.msra.mxu0 0
        %3540 = vmatprep.subr.bf16.mxu0 0
        %3541 = vmatpush1.bf16.msra.mxu0 0
        %3542 = vmatprep.mubr.bf16.mxu0 0
        %3543 = vmatmul.mubr.bf16.gmra.mrb[0].mxu0 %v2772
        %v3544 = vpop.f32.mrb[0].mxu0
        %v3545 = vadd.f32 0.0, %v3544
        %v3546 = vpop.f32.mrb[0].mxu0
        %v3547 = vadd.f32 0.0, %v3546
        %v3548 = vpop.f32.mrb[0].mxu0
        %v3549 = vpop.f32.mrb[0].mxu0
        %3550 = vdwg.mxu0
        %3551 = vst [vmem:[#allocation2 + $0x80] sm:$0xff] %v3545
        %3552 = vst [vmem:[#allocation2 + $0x88] sm:$0xff] %v3547
        %s3553 = scalar_lea.vmem [#allocation14], 576
        %v3554 = vld [vmem:[%s3553] sm:$0xff]
        %v3555 = vld [vmem:[%s3553 + $0x8] sm:$0xff]
        %v3556 = vld [vmem:[%s3553 + $0x10] sm:$0xff]
        %v3557 = vld [vmem:[%s3553 + $0x18] sm:$0xff]
        %v3558 = vld [vmem:[%s3553 + $0x20] sm:$0xff]
        %v3559 = vld [vmem:[%s3553 + $0x28] sm:$0xff]
        %v3560 = vld [vmem:[%s3553 + $0x30] sm:$0xff]
        %v3561 = vld [vmem:[%s3553 + $0x38] sm:$0xff]
        %v3570 = vunpack.c.l.b16 %v3554
        %v3571 = vunpack.c.h.b16 %v3554
        %v3572 = vunpack.c.l.b16 %v3555
        %v3573 = vunpack.c.h.b16 %v3555
        %v3574 = vunpack.c.l.b16 %v3556
        %v3575 = vunpack.c.h.b16 %v3556
        %v3576 = vunpack.c.l.b16 %v3557
        %v3577 = vunpack.c.h.b16 %v3557
        %v3578 = vunpack.c.l.b16 %v3558
        %v3579 = vunpack.c.h.b16 %v3558
        %v3580 = vunpack.c.l.b16 %v3559
        %v3581 = vunpack.c.h.b16 %v3559
        %v3582 = vunpack.c.l.b16 %v3560
        %v3583 = vunpack.c.h.b16 %v3560
        %v3584 = vunpack.c.l.b16 %v3561
        %v3585 = vunpack.c.h.b16 %v3561
        %v3586 = vpack.c.b16 %v3572, %v3570
        %v3587 = vpack.c.b16 %v3573, %v3571
        %v3588 = vpack.c.b16 %v3576, %v3574
        %v3589 = vpack.c.b16 %v3577, %v3575
        %v3590 = vpack.c.b16 %v3580, %v3578
        %v3591 = vpack.c.b16 %v3581, %v3579
        %v3592 = vpack.c.b16 %v3584, %v3582
        %v3593 = vpack.c.b16 %v3585, %v3583
        %3602 = vmatprep.subr.bf16.mxu0 %v3587
        %3603 = vmatpush1.bf16.msra.mxu0 %v3586
        %3604 = vmatprep.subr.bf16.mxu0 %v3589
        %3605 = vmatpush1.bf16.msra.mxu0 %v3588
        %3606 = vmatprep.subr.bf16.mxu0 %v3591
        %3607 = vmatpush1.bf16.msra.mxu0 %v3590
        %3608 = vmatprep.subr.bf16.mxu0 %v3593
        %3609 = vmatpush1.bf16.msra.mxu0 %v3592
        %3610 = vmatprep.subr.bf16.mxu0 0
        %3611 = vmatpush1.bf16.msra.mxu0 0
        %3612 = vmatprep.subr.bf16.mxu0 0
        %3613 = vmatpush1.bf16.msra.mxu0 0
        %3614 = vmatprep.subr.bf16.mxu0 0
        %3615 = vmatpush1.bf16.msra.mxu0 0
        %3616 = vmatprep.subr.bf16.mxu0 0
        %3617 = vmatpush1.bf16.msra.mxu0 0
        %3618 = vmatprep.subr.bf16.mxu0 0
        %3619 = vmatpush1.bf16.msra.mxu0 0
        %3620 = vmatprep.subr.bf16.mxu0 0
        %3621 = vmatpush1.bf16.msra.mxu0 0
        %3622 = vmatprep.subr.bf16.mxu0 0
        %3623 = vmatpush1.bf16.msra.mxu0 0
        %3624 = vmatprep.subr.bf16.mxu0 0
        %3625 = vmatpush1.bf16.msra.mxu0 0
        %3626 = vmatprep.subr.bf16.mxu0 0
        %3627 = vmatpush1.bf16.msra.mxu0 0
        %3628 = vmatprep.subr.bf16.mxu0 0
        %3629 = vmatpush1.bf16.msra.mxu0 0
        %3630 = vmatprep.subr.bf16.mxu0 0
        %3631 = vmatpush1.bf16.msra.mxu0 0
        %3632 = vmatprep.subr.bf16.mxu0 0
        %3633 = vmatpush1.bf16.msra.mxu0 0
        %3634 = vmatprep.mubr.bf16.mxu0 0
        %3635 = vmatmul.mubr.bf16.gmra.mrb[0].mxu0 %v2772
        %v3636 = vpop.f32.mrb[0].mxu0
        %v3637 = vadd.f32 0.0, %v3636
        %v3638 = vpop.f32.mrb[0].mxu0
        %v3639 = vadd.f32 0.0, %v3638
        %v3640 = vpop.f32.mrb[0].mxu0
        %v3641 = vpop.f32.mrb[0].mxu0
        %3642 = vdwg.mxu0
        %3643 = vst [vmem:[#allocation2 + $0x90] sm:$0xff] %v3637
        %3644 = vst [vmem:[#allocation2 + $0x98] sm:$0xff] %v3639
        %s3645 = scalar_lea.vmem [#allocation14], 640
        %v3646 = vld [vmem:[%s3645] sm:$0xff]
        %v3647 = vld [vmem:[%s3645 + $0x8] sm:$0xff]
        %v3648 = vld [vmem:[%s3645 + $0x10] sm:$0xff]
        %v3649 = vld [vmem:[%s3645 + $0x18] sm:$0xff]
        %v3650 = vld [vmem:[%s3645 + $0x20] sm:$0xff]
        %v3651 = vld [vmem:[%s3645 + $0x28] sm:$0xff]
        %v3652 = vld [vmem:[%s3645 + $0x30] sm:$0xff]
        %v3653 = vld [vmem:[%s3645 + $0x38] sm:$0xff]
        %v3662 = vunpack.c.l.b16 %v3646
        %v3663 = vunpack.c.h.b16 %v3646
        %v3664 = vunpack.c.l.b16 %v3647
        %v3665 = vunpack.c.h.b16 %v3647
        %v3666 = vunpack.c.l.b16 %v3648
        %v3667 = vunpack.c.h.b16 %v3648
        %v3668 = vunpack.c.l.b16 %v3649
        %v3669 = vunpack.c.h.b16 %v3649
        %v3670 = vunpack.c.l.b16 %v3650
        %v3671 = vunpack.c.h.b16 %v3650
        %v3672 = vunpack.c.l.b16 %v3651
        %v3673 = vunpack.c.h.b16 %v3651
        %v3674 = vunpack.c.l.b16 %v3652
        %v3675 = vunpack.c.h.b16 %v3652
        %v3676 = vunpack.c.l.b16 %v3653
        %v3677 = vunpack.c.h.b16 %v3653
        %v3678 = vpack.c.b16 %v3664, %v3662
        %v3679 = vpack.c.b16 %v3665, %v3663
        %v3680 = vpack.c.b16 %v3668, %v3666
        %v3681 = vpack.c.b16 %v3669, %v3667
        %v3682 = vpack.c.b16 %v3672, %v3670
        %v3683 = vpack.c.b16 %v3673, %v3671
        %v3684 = vpack.c.b16 %v3676, %v3674
        %v3685 = vpack.c.b16 %v3677, %v3675
        %3694 = vmatprep.subr.bf16.mxu0 %v3679
        %3695 = vmatpush1.bf16.msra.mxu0 %v3678
        %3696 = vmatprep.subr.bf16.mxu0 %v3681
        %3697 = vmatpush1.bf16.msra.mxu0 %v3680
        %3698 = vmatprep.subr.bf16.mxu0 %v3683
        %3699 = vmatpush1.bf16.msra.mxu0 %v3682
        %3700 = vmatprep.subr.bf16.mxu0 %v3685
        %3701 = vmatpush1.bf16.msra.mxu0 %v3684
        %3702 = vmatprep.subr.bf16.mxu0 0
        %3703 = vmatpush1.bf16.msra.mxu0 0
        %3704 = vmatprep.subr.bf16.mxu0 0
        %3705 = vmatpush1.bf16.msra.mxu0 0
        %3706 = vmatprep.subr.bf16.mxu0 0
        %3707 = vmatpush1.bf16.msra.mxu0 0
        %3708 = vmatprep.subr.bf16.mxu0 0
        %3709 = vmatpush1.bf16.msra.mxu0 0
        %3710 = vmatprep.subr.bf16.mxu0 0
        %3711 = vmatpush1.bf16.msra.mxu0 0
        %3712 = vmatprep.subr.bf16.mxu0 0
        %3713 = vmatpush1.bf16.msra.mxu0 0
        %3714 = vmatprep.subr.bf16.mxu0 0
        %3715 = vmatpush1.bf16.msra.mxu0 0
        %3716 = vmatprep.subr.bf16.mxu0 0
        %3717 = vmatpush1.bf16.msra.mxu0 0
        %3718 = vmatprep.subr.bf16.mxu0 0
        %3719 = vmatpush1.bf16.msra.mxu0 0
        %3720 = vmatprep.subr.bf16.mxu0 0
        %3721 = vmatpush1.bf16.msra.mxu0 0
        %3722 = vmatprep.subr.bf16.mxu0 0
        %3723 = vmatpush1.bf16.msra.mxu0 0
        %3724 = vmatprep.subr.bf16.mxu0 0
        %3725 = vmatpush1.bf16.msra.mxu0 0
        %3726 = vmatprep.mubr.bf16.mxu0 0
        %3727 = vmatmul.mubr.bf16.gmra.mrb[0].mxu0 %v2772
        %v3728 = vpop.f32.mrb[0].mxu0
        %v3729 = vadd.f32 0.0, %v3728
        %v3730 = vpop.f32.mrb[0].mxu0
        %v3731 = vadd.f32 0.0, %v3730
        %v3732 = vpop.f32.mrb[0].mxu0
        %v3733 = vpop.f32.mrb[0].mxu0
        %3734 = vdwg.mxu0
        %3735 = vst [vmem:[#allocation2 + $0xa0] sm:$0xff] %v3729
        %3736 = vst [vmem:[#allocation2 + $0xa8] sm:$0xff] %v3731
        %s3737 = scalar_lea.vmem [#allocation14], 704
        %v3738 = vld [vmem:[%s3737] sm:$0xff]
        %v3739 = vld [vmem:[%s3737 + $0x8] sm:$0xff]
        %v3740 = vld [vmem:[%s3737 + $0x10] sm:$0xff]
        %v3741 = vld [vmem:[%s3737 + $0x18] sm:$0xff]
        %v3742 = vld [vmem:[%s3737 + $0x20] sm:$0xff]
        %v3743 = vld [vmem:[%s3737 + $0x28] sm:$0xff]
        %v3744 = vld [vmem:[%s3737 + $0x30] sm:$0xff]
        %v3745 = vld [vmem:[%s3737 + $0x38] sm:$0xff]
        %v3754 = vunpack.c.l.b16 %v3738
        %v3755 = vunpack.c.h.b16 %v3738
        %v3756 = vunpack.c.l.b16 %v3739
        %v3757 = vunpack.c.h.b16 %v3739
        %v3758 = vunpack.c.l.b16 %v3740
        %v3759 = vunpack.c.h.b16 %v3740
        %v3760 = vunpack.c.l.b16 %v3741
        %v3761 = vunpack.c.h.b16 %v3741
        %v3762 = vunpack.c.l.b16 %v3742
        %v3763 = vunpack.c.h.b16 %v3742
        %v3764 = vunpack.c.l.b16 %v3743
        %v3765 = vunpack.c.h.b16 %v3743
        %v3766 = vunpack.c.l.b16 %v3744
        %v3767 = vunpack.c.h.b16 %v3744
        %v3768 = vunpack.c.l.b16 %v3745
        %v3769 = vunpack.c.h.b16 %v3745
        %v3770 = vpack.c.b16 %v3756, %v3754
        %v3771 = vpack.c.b16 %v3757, %v3755
        %v3772 = vpack.c.b16 %v3760, %v3758
        %v3773 = vpack.c.b16 %v3761, %v3759
        %v3774 = vpack.c.b16 %v3764, %v3762
        %v3775 = vpack.c.b16 %v3765, %v3763
        %v3776 = vpack.c.b16 %v3768, %v3766
        %v3777 = vpack.c.b16 %v3769, %v3767
        %3786 = vmatprep.subr.bf16.mxu0 %v3771
        %3787 = vmatpush1.bf16.msra.mxu0 %v3770
        %3788 = vmatprep.subr.bf16.mxu0 %v3773
        %3789 = vmatpush1.bf16.msra.mxu0 %v3772
        %3790 = vmatprep.subr.bf16.mxu0 %v3775
        %3791 = vmatpush1.bf16.msra.mxu0 %v3774
        %3792 = vmatprep.subr.bf16.mxu0 %v3777
        %3793 = vmatpush1.bf16.msra.mxu0 %v3776
        %3794 = vmatprep.subr.bf16.mxu0 0
        %3795 = vmatpush1.bf16.msra.mxu0 0
        %3796 = vmatprep.subr.bf16.mxu0 0
        %3797 = vmatpush1.bf16.msra.mxu0 0
        %3798 = vmatprep.subr.bf16.mxu0 0
        %3799 = vmatpush1.bf16.msra.mxu0 0
        %3800 = vmatprep.subr.bf16.mxu0 0
        %3801 = vmatpush1.bf16.msra.mxu0 0
        %3802 = vmatprep.subr.bf16.mxu0 0
        %3803 = vmatpush1.bf16.msra.mxu0 0
        %3804 = vmatprep.subr.bf16.mxu0 0
        %3805 = vmatpush1.bf16.msra.mxu0 0
        %3806 = vmatprep.subr.bf16.mxu0 0
        %3807 = vmatpush1.bf16.msra.mxu0 0
        %3808 = vmatprep.subr.bf16.mxu0 0
        %3809 = vmatpush1.bf16.msra.mxu0 0
        %3810 = vmatprep.subr.bf16.mxu0 0
        %3811 = vmatpush1.bf16.msra.mxu0 0
        %3812 = vmatprep.subr.bf16.mxu0 0
        %3813 = vmatpush1.bf16.msra.mxu0 0
        %3814 = vmatprep.subr.bf16.mxu0 0
        %3815 = vmatpush1.bf16.msra.mxu0 0
        %3816 = vmatprep.subr.bf16.mxu0 0
        %3817 = vmatpush1.bf16.msra.mxu0 0
        %3818 = vmatprep.mubr.bf16.mxu0 0
        %3819 = vmatmul.mubr.bf16.gmra.mrb[0].mxu0 %v2772
        %v3820 = vpop.f32.mrb[0].mxu0
        %v3821 = vadd.f32 0.0, %v3820
        %v3822 = vpop.f32.mrb[0].mxu0
        %v3823 = vadd.f32 0.0, %v3822
        %v3824 = vpop.f32.mrb[0].mxu0
        %v3825 = vpop.f32.mrb[0].mxu0
        %3826 = vdwg.mxu0
        %3827 = vst [vmem:[#allocation2 + $0xb0] sm:$0xff] %v3821
        %3828 = vst [vmem:[#allocation2 + $0xb8] sm:$0xff] %v3823
        %s3829 = scalar_lea.vmem [#allocation14], 768
        %v3830 = vld [vmem:[%s3829] sm:$0xff]
        %v3831 = vld [vmem:[%s3829 + $0x8] sm:$0xff]
        %v3832 = vld [vmem:[%s3829 + $0x10] sm:$0xff]
        %v3833 = vld [vmem:[%s3829 + $0x18] sm:$0xff]
        %v3834 = vld [vmem:[%s3829 + $0x20] sm:$0xff]
        %v3835 = vld [vmem:[%s3829 + $0x28] sm:$0xff]
        %v3836 = vld [vmem:[%s3829 + $0x30] sm:$0xff]
        %v3837 = vld [vmem:[%s3829 + $0x38] sm:$0xff]
        %v3846 = vunpack.c.l.b16 %v3830
        %v3847 = vunpack.c.h.b16 %v3830
        %v3848 = vunpack.c.l.b16 %v3831
        %v3849 = vunpack.c.h.b16 %v3831
        %v3850 = vunpack.c.l.b16 %v3832
        %v3851 = vunpack.c.h.b16 %v3832
        %v3852 = vunpack.c.l.b16 %v3833
        %v3853 = vunpack.c.h.b16 %v3833
        %v3854 = vunpack.c.l.b16 %v3834
        %v3855 = vunpack.c.h.b16 %v3834
        %v3856 = vunpack.c.l.b16 %v3835
        %v3857 = vunpack.c.h.b16 %v3835
        %v3858 = vunpack.c.l.b16 %v3836
        %v3859 = vunpack.c.h.b16 %v3836
        %v3860 = vunpack.c.l.b16 %v3837
        %v3861 = vunpack.c.h.b16 %v3837
        %v3862 = vpack.c.b16 %v3848, %v3846
        %v3863 = vpack.c.b16 %v3849, %v3847
        %v3864 = vpack.c.b16 %v3852, %v3850
        %v3865 = vpack.c.b16 %v3853, %v3851
        %v3866 = vpack.c.b16 %v3856, %v3854
        %v3867 = vpack.c.b16 %v3857, %v3855
        %v3868 = vpack.c.b16 %v3860, %v3858
        %v3869 = vpack.c.b16 %v3861, %v3859
        %3878 = vmatprep.subr.bf16.mxu0 %v3863
        %3879 = vmatpush1.bf16.msra.mxu0 %v3862
        %3880 = vmatprep.subr.bf16.mxu0 %v3865
        %3881 = vmatpush1.bf16.msra.mxu0 %v3864
        %3882 = vmatprep.subr.bf16.mxu0 %v3867
        %3883 = vmatpush1.bf16.msra.mxu0 %v3866
        %3884 = vmatprep.subr.bf16.mxu0 %v3869
        %3885 = vmatpush1.bf16.msra.mxu0 %v3868
        %3886 = vmatprep.subr.bf16.mxu0 0
        %3887 = vmatpush1.bf16.msra.mxu0 0
        %3888 = vmatprep.subr.bf16.mxu0 0
        %3889 = vmatpush1.bf16.msra.mxu0 0
        %3890 = vmatprep.subr.bf16.mxu0 0
        %3891 = vmatpush1.bf16.msra.mxu0 0
        %3892 = vmatprep.subr.bf16.mxu0 0
        %3893 = vmatpush1.bf16.msra.mxu0 0
        %3894 = vmatprep.subr.bf16.mxu0 0
        %3895 = vmatpush1.bf16.msra.mxu0 0
        %3896 = vmatprep.subr.bf16.mxu0 0
        %3897 = vmatpush1.bf16.msra.mxu0 0
        %3898 = vmatprep.subr.bf16.mxu0 0
        %3899 = vmatpush1.bf16.msra.mxu0 0
        %3900 = vmatprep.subr.bf16.mxu0 0
        %3901 = vmatpush1.bf16.msra.mxu0 0
        %3902 = vmatprep.subr.bf16.mxu0 0
        %3903 = vmatpush1.bf16.msra.mxu0 0
        %3904 = vmatprep.subr.bf16.mxu0 0
        %3905 = vmatpush1.bf16.msra.mxu0 0
        %3906 = vmatprep.subr.bf16.mxu0 0
        %3907 = vmatpush1.bf16.msra.mxu0 0
        %3908 = vmatprep.subr.bf16.mxu0 0
        %3909 = vmatpush1.bf16.msra.mxu0 0
        %3910 = vmatprep.mubr.bf16.mxu0 0
        %3911 = vmatmul.mubr.bf16.gmra.mrb[0].mxu0 %v2772
        %v3912 = vpop.f32.mrb[0].mxu0
        %v3913 = vadd.f32 0.0, %v3912
        %v3914 = vpop.f32.mrb[0].mxu0
        %v3915 = vadd.f32 0.0, %v3914
        %v3916 = vpop.f32.mrb[0].mxu0
        %v3917 = vpop.f32.mrb[0].mxu0
        %3918 = vdwg.mxu0
        %3919 = vst [vmem:[#allocation2 + $0xc0] sm:$0xff] %v3913
        %3920 = vst [vmem:[#allocation2 + $0xc8] sm:$0xff] %v3915
        %s3921 = scalar_lea.vmem [#allocation14], 832
        %v3922 = vld [vmem:[%s3921] sm:$0xff]
        %v3923 = vld [vmem:[%s3921 + $0x8] sm:$0xff]
        %v3924 = vld [vmem:[%s3921 + $0x10] sm:$0xff]
        %v3925 = vld [vmem:[%s3921 + $0x18] sm:$0xff]
        %v3926 = vld [vmem:[%s3921 + $0x20] sm:$0xff]
        %v3927 = vld [vmem:[%s3921 + $0x28] sm:$0xff]
        %v3928 = vld [vmem:[%s3921 + $0x30] sm:$0xff]
        %v3929 = vld [vmem:[%s3921 + $0x38] sm:$0xff]
        %v3938 = vunpack.c.l.b16 %v3922
        %v3939 = vunpack.c.h.b16 %v3922
        %v3940 = vunpack.c.l.b16 %v3923
        %v3941 = vunpack.c.h.b16 %v3923
        %v3942 = vunpack.c.l.b16 %v3924
        %v3943 = vunpack.c.h.b16 %v3924
        %v3944 = vunpack.c.l.b16 %v3925
        %v3945 = vunpack.c.h.b16 %v3925
        %v3946 = vunpack.c.l.b16 %v3926
        %v3947 = vunpack.c.h.b16 %v3926
        %v3948 = vunpack.c.l.b16 %v3927
        %v3949 = vunpack.c.h.b16 %v3927
        %v3950 = vunpack.c.l.b16 %v3928
        %v3951 = vunpack.c.h.b16 %v3928
        %v3952 = vunpack.c.l.b16 %v3929
        %v3953 = vunpack.c.h.b16 %v3929
        %v3954 = vpack.c.b16 %v3940, %v3938
        %v3955 = vpack.c.b16 %v3941, %v3939
        %v3956 = vpack.c.b16 %v3944, %v3942
        %v3957 = vpack.c.b16 %v3945, %v3943
        %v3958 = vpack.c.b16 %v3948, %v3946
        %v3959 = vpack.c.b16 %v3949, %v3947
        %v3960 = vpack.c.b16 %v3952, %v3950
        %v3961 = vpack.c.b16 %v3953, %v3951
        %3970 = vmatprep.subr.bf16.mxu0 %v3955
        %3971 = vmatpush1.bf16.msra.mxu0 %v3954
        %3972 = vmatprep.subr.bf16.mxu0 %v3957
        %3973 = vmatpush1.bf16.msra.mxu0 %v3956
        %3974 = vmatprep.subr.bf16.mxu0 %v3959
        %3975 = vmatpush1.bf16.msra.mxu0 %v3958
        %3976 = vmatprep.subr.bf16.mxu0 %v3961
        %3977 = vmatpush1.bf16.msra.mxu0 %v3960
        %3978 = vmatprep.subr.bf16.mxu0 0
        %3979 = vmatpush1.bf16.msra.mxu0 0
        %3980 = vmatprep.subr.bf16.mxu0 0
        %3981 = vmatpush1.bf16.msra.mxu0 0
        %3982 = vmatprep.subr.bf16.mxu0 0
        %3983 = vmatpush1.bf16.msra.mxu0 0
        %3984 = vmatprep.subr.bf16.mxu0 0
        %3985 = vmatpush1.bf16.msra.mxu0 0
        %3986 = vmatprep.subr.bf16.mxu0 0
        %3987 = vmatpush1.bf16.msra.mxu0 0
        %3988 = vmatprep.subr.bf16.mxu0 0
        %3989 = vmatpush1.bf16.msra.mxu0 0
        %3990 = vmatprep.subr.bf16.mxu0 0
        %3991 = vmatpush1.bf16.msra.mxu0 0
        %3992 = vmatprep.subr.bf16.mxu0 0
        %3993 = vmatpush1.bf16.msra.mxu0 0
        %3994 = vmatprep.subr.bf16.mxu0 0
        %3995 = vmatpush1.bf16.msra.mxu0 0
        %3996 = vmatprep.subr.bf16.mxu0 0
        %3997 = vmatpush1.bf16.msra.mxu0 0
        %3998 = vmatprep.subr.bf16.mxu0 0
        %3999 = vmatpush1.bf16.msra.mxu0 0
        %4000 = vmatprep.subr.bf16.mxu0 0
        %4001 = vmatpush1.bf16.msra.mxu0 0
        %4002 = vmatprep.mubr.bf16.mxu0 0
        %4003 = vmatmul.mubr.bf16.gmra.mrb[0].mxu0 %v2772
        %v4004 = vpop.f32.mrb[0].mxu0
        %v4005 = vadd.f32 0.0, %v4004
        %v4006 = vpop.f32.mrb[0].mxu0
        %v4007 = vadd.f32 0.0, %v4006
        %v4008 = vpop.f32.mrb[0].mxu0
        %v4009 = vpop.f32.mrb[0].mxu0
        %4010 = vdwg.mxu0
        %4011 = vst [vmem:[#allocation2 + $0xd0] sm:$0xff] %v4005
        %4012 = vst [vmem:[#allocation2 + $0xd8] sm:$0xff] %v4007
        %s4013 = scalar_lea.vmem [#allocation14], 896
        %v4014 = vld [vmem:[%s4013] sm:$0xff]
        %v4015 = vld [vmem:[%s4013 + $0x8] sm:$0xff]
        %v4016 = vld [vmem:[%s4013 + $0x10] sm:$0xff]
        %v4017 = vld [vmem:[%s4013 + $0x18] sm:$0xff]
        %v4018 = vld [vmem:[%s4013 + $0x20] sm:$0xff]
        %v4019 = vld [vmem:[%s4013 + $0x28] sm:$0xff]
        %v4020 = vld [vmem:[%s4013 + $0x30] sm:$0xff]
        %v4021 = vld [vmem:[%s4013 + $0x38] sm:$0xff]
        %v4030 = vunpack.c.l.b16 %v4014
        %v4031 = vunpack.c.h.b16 %v4014
        %v4032 = vunpack.c.l.b16 %v4015
        %v4033 = vunpack.c.h.b16 %v4015
        %v4034 = vunpack.c.l.b16 %v4016
        %v4035 = vunpack.c.h.b16 %v4016
        %v4036 = vunpack.c.l.b16 %v4017
        %v4037 = vunpack.c.h.b16 %v4017
        %v4038 = vunpack.c.l.b16 %v4018
        %v4039 = vunpack.c.h.b16 %v4018
        %v4040 = vunpack.c.l.b16 %v4019
        %v4041 = vunpack.c.h.b16 %v4019
        %v4042 = vunpack.c.l.b16 %v4020
        %v4043 = vunpack.c.h.b16 %v4020
        %v4044 = vunpack.c.l.b16 %v4021
        %v4045 = vunpack.c.h.b16 %v4021
        %v4046 = vpack.c.b16 %v4032, %v4030
        %v4047 = vpack.c.b16 %v4033, %v4031
        %v4048 = vpack.c.b16 %v4036, %v4034
        %v4049 = vpack.c.b16 %v4037, %v4035
        %v4050 = vpack.c.b16 %v4040, %v4038
        %v4051 = vpack.c.b16 %v4041, %v4039
        %v4052 = vpack.c.b16 %v4044, %v4042
        %v4053 = vpack.c.b16 %v4045, %v4043
        %4062 = vmatprep.subr.bf16.mxu0 %v4047
        %4063 = vmatpush1.bf16.msra.mxu0 %v4046
        %4064 = vmatprep.subr.bf16.mxu0 %v4049
        %4065 = vmatpush1.bf16.msra.mxu0 %v4048
        %4066 = vmatprep.subr.bf16.mxu0 %v4051
        %4067 = vmatpush1.bf16.msra.mxu0 %v4050
        %4068 = vmatprep.subr.bf16.mxu0 %v4053
        %4069 = vmatpush1.bf16.msra.mxu0 %v4052
        %4070 = vmatprep.subr.bf16.mxu0 0
        %4071 = vmatpush1.bf16.msra.mxu0 0
        %4072 = vmatprep.subr.bf16.mxu0 0
        %4073 = vmatpush1.bf16.msra.mxu0 0
        %4074 = vmatprep.subr.bf16.mxu0 0
        %4075 = vmatpush1.bf16.msra.mxu0 0
        %4076 = vmatprep.subr.bf16.mxu0 0
        %4077 = vmatpush1.bf16.msra.mxu0 0
        %4078 = vmatprep.subr.bf16.mxu0 0
        %4079 = vmatpush1.bf16.msra.mxu0 0
        %4080 = vmatprep.subr.bf16.mxu0 0
        %4081 = vmatpush1.bf16.msra.mxu0 0
        %4082 = vmatprep.subr.bf16.mxu0 0
        %4083 = vmatpush1.bf16.msra.mxu0 0
        %4084 = vmatprep.subr.bf16.mxu0 0
        %4085 = vmatpush1.bf16.msra.mxu0 0
        %4086 = vmatprep.subr.bf16.mxu0 0
        %4087 = vmatpush1.bf16.msra.mxu0 0
        %4088 = vmatprep.subr.bf16.mxu0 0
        %4089 = vmatpush1.bf16.msra.mxu0 0
        %4090 = vmatprep.subr.bf16.mxu0 0
        %4091 = vmatpush1.bf16.msra.mxu0 0
        %4092 = vmatprep.subr.bf16.mxu0 0
        %4093 = vmatpush1.bf16.msra.mxu0 0
        %4094 = vmatprep.mubr.bf16.mxu0 0
        %4095 = vmatmul.mubr.bf16.gmra.mrb[0].mxu0 %v2772
        %v4096 = vpop.f32.mrb[0].mxu0
        %v4097 = vadd.f32 0.0, %v4096
        %v4098 = vpop.f32.mrb[0].mxu0
        %v4099 = vadd.f32 0.0, %v4098
        %v4100 = vpop.f32.mrb[0].mxu0
        %v4101 = vpop.f32.mrb[0].mxu0
        %4102 = vdwg.mxu0
        %4103 = vst [vmem:[#allocation2 + $0xe0] sm:$0xff] %v4097
        %4104 = vst [vmem:[#allocation2 + $0xe8] sm:$0xff] %v4099
        %s4105 = scalar_lea.vmem [#allocation14], 960
        %v4106 = vld [vmem:[%s4105] sm:$0xff]
        %v4107 = vld [vmem:[%s4105 + $0x8] sm:$0xff]
        %v4108 = vld [vmem:[%s4105 + $0x10] sm:$0xff]
        %v4109 = vld [vmem:[%s4105 + $0x18] sm:$0xff]
        %v4110 = vld [vmem:[%s4105 + $0x20] sm:$0xff]
        %v4111 = vld [vmem:[%s4105 + $0x28] sm:$0xff]
        %v4112 = vld [vmem:[%s4105 + $0x30] sm:$0xff]
        %v4113 = vld [vmem:[%s4105 + $0x38] sm:$0xff]
        %v4122 = vunpack.c.l.b16 %v4106
        %v4123 = vunpack.c.h.b16 %v4106
        %v4124 = vunpack.c.l.b16 %v4107
        %v4125 = vunpack.c.h.b16 %v4107
        %v4126 = vunpack.c.l.b16 %v4108
        %v4127 = vunpack.c.h.b16 %v4108
        %v4128 = vunpack.c.l.b16 %v4109
        %v4129 = vunpack.c.h.b16 %v4109
        %v4130 = vunpack.c.l.b16 %v4110
        %v4131 = vunpack.c.h.b16 %v4110
        %v4132 = vunpack.c.l.b16 %v4111
        %v4133 = vunpack.c.h.b16 %v4111
        %v4134 = vunpack.c.l.b16 %v4112
        %v4135 = vunpack.c.h.b16 %v4112
        %v4136 = vunpack.c.l.b16 %v4113
        %v4137 = vunpack.c.h.b16 %v4113
        %v4138 = vpack.c.b16 %v4124, %v4122
        %v4139 = vpack.c.b16 %v4125, %v4123
        %v4140 = vpack.c.b16 %v4128, %v4126
        %v4141 = vpack.c.b16 %v4129, %v4127
        %v4142 = vpack.c.b16 %v4132, %v4130
        %v4143 = vpack.c.b16 %v4133, %v4131
        %v4144 = vpack.c.b16 %v4136, %v4134
        %v4145 = vpack.c.b16 %v4137, %v4135
        %4154 = vmatprep.subr.bf16.mxu0 %v4139
        %4155 = vmatpush1.bf16.msra.mxu0 %v4138
        %4156 = vmatprep.subr.bf16.mxu0 %v4141
        %4157 = vmatpush1.bf16.msra.mxu0 %v4140
        %4158 = vmatprep.subr.bf16.mxu0 %v4143
        %4159 = vmatpush1.bf16.msra.mxu0 %v4142
        %4160 = vmatprep.subr.bf16.mxu0 %v4145
        %4161 = vmatpush1.bf16.msra.mxu0 %v4144
        %4162 = vmatprep.subr.bf16.mxu0 0
        %4163 = vmatpush1.bf16.msra.mxu0 0
        %4164 = vmatprep.subr.bf16.mxu0 0
        %4165 = vmatpush1.bf16.msra.mxu0 0
        %4166 = vmatprep.subr.bf16.mxu0 0
        %4167 = vmatpush1.bf16.msra.mxu0 0
        %4168 = vmatprep.subr.bf16.mxu0 0
        %4169 = vmatpush1.bf16.msra.mxu0 0
        %4170 = vmatprep.subr.bf16.mxu0 0
        %4171 = vmatpush1.bf16.msra.mxu0 0
        %4172 = vmatprep.subr.bf16.mxu0 0
        %4173 = vmatpush1.bf16.msra.mxu0 0
        %4174 = vmatprep.subr.bf16.mxu0 0
        %4175 = vmatpush1.bf16.msra.mxu0 0
        %4176 = vmatprep.subr.bf16.mxu0 0
        %4177 = vmatpush1.bf16.msra.mxu0 0
        %4178 = vmatprep.subr.bf16.mxu0 0
        %4179 = vmatpush1.bf16.msra.mxu0 0
        %4180 = vmatprep.subr.bf16.mxu0 0
        %4181 = vmatpush1.bf16.msra.mxu0 0
        %4182 = vmatprep.subr.bf16.mxu0 0
        %4183 = vmatpush1.bf16.msra.mxu0 0
        %4184 = vmatprep.subr.bf16.mxu0 0
        %4185 = vmatpush1.bf16.msra.mxu0 0
        %4186 = vmatprep.mubr.bf16.mxu0 0
        %4187 = vmatmul.mubr.bf16.gmra.mrb[0].mxu0 %v2772
        %v4188 = vpop.f32.mrb[0].mxu0
        %v4189 = vadd.f32 0.0, %v4188
        %v4190 = vpop.f32.mrb[0].mxu0
        %v4191 = vadd.f32 0.0, %v4190
        %v4192 = vpop.f32.mrb[0].mxu0
        %v4193 = vpop.f32.mrb[0].mxu0
        %4194 = vdwg.mxu0
        %4195 = vst [vmem:[#allocation2 + $0xf0] sm:$0xff] %v4189
        %4196 = vst [vmem:[#allocation2 + $0xf8] sm:$0xff] %v4191
        %v4197 = vld [vmem:[%s10] sm:$0xf]
        %v4198 = vld [vmem:[#allocation2] sm:$0xff]
        %v4199 = vld [vmem:[#allocation2 + $0x8] sm:$0xff]
        %v4200 = vld [vmem:[#allocation2 + $0x10] sm:$0xff]
        %v4201 = vld [vmem:[#allocation2 + $0x18] sm:$0xff]
        %v4202 = vld [vmem:[#allocation2 + $0x20] sm:$0xff]
        %v4203 = vld [vmem:[#allocation2 + $0x28] sm:$0xff]
        %v4204 = vld [vmem:[#allocation2 + $0x30] sm:$0xff]
        %v4205 = vld [vmem:[#allocation2 + $0x38] sm:$0xff]
        %v4206 = vld [vmem:[#allocation2 + $0x40] sm:$0xff]
        %v4207 = vld [vmem:[#allocation2 + $0x48] sm:$0xff]
        %v4208 = vld [vmem:[#allocation2 + $0x50] sm:$0xff]
        %v4209 = vld [vmem:[#allocation2 + $0x58] sm:$0xff]
        %v4210 = vld [vmem:[#allocation2 + $0x60] sm:$0xff]
        %v4211 = vld [vmem:[#allocation2 + $0x68] sm:$0xff]
        %v4212 = vld [vmem:[#allocation2 + $0x70] sm:$0xff]
        %v4213 = vld [vmem:[#allocation2 + $0x78] sm:$0xff]
        %v4214 = vld [vmem:[#allocation2 + $0x80] sm:$0xff]
        %v4215 = vld [vmem:[#allocation2 + $0x88] sm:$0xff]
        %v4216 = vld [vmem:[#allocation2 + $0x90] sm:$0xff]
        %v4217 = vld [vmem:[#allocation2 + $0x98] sm:$0xff]
        %v4218 = vld [vmem:[#allocation2 + $0xa0] sm:$0xff]
        %v4219 = vld [vmem:[#allocation2 + $0xa8] sm:$0xff]
        %v4220 = vld [vmem:[#allocation2 + $0xb0] sm:$0xff]
        %v4221 = vld [vmem:[#allocation2 + $0xb8] sm:$0xff]
        %v4222 = vld [vmem:[#allocation2 + $0xc0] sm:$0xff]
        %v4223 = vld [vmem:[#allocation2 + $0xc8] sm:$0xff]
        %v4224 = vld [vmem:[#allocation2 + $0xd0] sm:$0xff]
        %v4225 = vld [vmem:[#allocation2 + $0xd8] sm:$0xff]
        %v4226 = vld [vmem:[#allocation2 + $0xe0] sm:$0xff]
        %v4227 = vld [vmem:[#allocation2 + $0xe8] sm:$0xff]
        %v4228 = vld [vmem:[#allocation2 + $0xf0] sm:$0xff]
        %v4229 = vld [vmem:[#allocation2 + $0xf8] sm:$0xff]
        %v4230 = vpack.c.bf16 %v4200, %v4198
        %v4231 = vpack.c.bf16 %v4201, %v4199
        %v4232 = vpack.c.bf16 %v4204, %v4202
        %v4233 = vpack.c.bf16 %v4205, %v4203
        %v4234 = vpack.c.bf16 %v4208, %v4206
        %v4235 = vpack.c.bf16 %v4209, %v4207
        %v4236 = vpack.c.bf16 %v4212, %v4210
        %v4237 = vpack.c.bf16 %v4213, %v4211
        %v4238 = vpack.c.bf16 %v4216, %v4214
        %v4239 = vpack.c.bf16 %v4217, %v4215
        %v4240 = vpack.c.bf16 %v4220, %v4218
        %v4241 = vpack.c.bf16 %v4221, %v4219
        %v4242 = vpack.c.bf16 %v4224, %v4222
        %v4243 = vpack.c.bf16 %v4225, %v4223
        %v4244 = vpack.c.bf16 %v4228, %v4226
        %v4245 = vpack.c.bf16 %v4229, %v4227
        %4246 = vmatprep.subr.bf16.mxu0 %v4231
        %4247 = vmatpush1.bf16.msra.mxu0 %v4230
        %4248 = vmatprep.subr.bf16.mxu0 %v4233
        %4249 = vmatpush1.bf16.msra.mxu0 %v4232
        %4250 = vmatprep.subr.bf16.mxu0 %v4235
        %4251 = vmatpush1.bf16.msra.mxu0 %v4234
        %4252 = vmatprep.subr.bf16.mxu0 %v4237
        %4253 = vmatpush1.bf16.msra.mxu0 %v4236
        %4254 = vmatprep.subr.bf16.mxu0 %v4239
        %4255 = vmatpush1.bf16.msra.mxu0 %v4238
        %4256 = vmatprep.subr.bf16.mxu0 %v4241
        %4257 = vmatpush1.bf16.msra.mxu0 %v4240
        %4258 = vmatprep.subr.bf16.mxu0 %v4243
        %4259 = vmatpush1.bf16.msra.mxu0 %v4242
        %4260 = vmatprep.subr.bf16.mxu0 %v4245
        %4261 = vmatpush1.bf16.msra.mxu0 %v4244
        %4262 = vmatprep.subr.bf16.mxu0 0
        %4263 = vmatpush1.bf16.msra.mxu0 0
        %4264 = vmatprep.subr.bf16.mxu0 0
        %4265 = vmatpush1.bf16.msra.mxu0 0
        %4266 = vmatprep.subr.bf16.mxu0 0
        %4267 = vmatpush1.bf16.msra.mxu0 0
        %4268 = vmatprep.subr.bf16.mxu0 0
        %4269 = vmatpush1.bf16.msra.mxu0 0
        %4270 = vmatprep.subr.bf16.mxu0 0
        %4271 = vmatpush1.bf16.msra.mxu0 0
        %4272 = vmatprep.subr.bf16.mxu0 0
        %4273 = vmatpush1.bf16.msra.mxu0 0
        %4274 = vmatprep.subr.bf16.mxu0 0
        %4275 = vmatpush1.bf16.msra.mxu0 0
        %4276 = vmatprep.subr.bf16.mxu0 0
        %4277 = vmatpush1.bf16.msra.mxu0 0
        %4278 = vmatprep.mubr.bf16.mxu0 0
        %4279 = vmatmul.mubr.bf16.gmra.mrb[0].mxu0 %v4197
        %v4280 = vpop.f32.mrb[0].mxu0
        %v4281 = vadd.f32 0.0, %v4280
        %v4282 = vpop.f32.mrb[0].mxu0
        %v4283 = vadd.f32 0.0, %v4282
        %v4284 = vpop.f32.mrb[0].mxu0
        %v4285 = vpop.f32.mrb[0].mxu0
        %4286 = vdwg.mxu0
        %s4287 = scalar_lea.vmem %s13, 48
        %v4288 = vld [vmem:[%s4287] sm:$0xff]
        %4290 = vset.pattern.permute.xlu0 0
        %4291 = vperm.xlu0 %4290, %v4288
        %v4292 = vpop.permute.xlu0 %4291
        %v4294 = vmul.f32 %v4281, %v4292
        %v4295 = vmul.f32 %v4283, %v4292
        %s4296 = scalar_lea.vmem %s14, 48
        %v4297 = vld [vmem:[%s4296] sm:$0xff]
        %4299 = vset.pattern.permute.xlu0 0
        %4300 = vperm.xlu0 %4299, %v4297
        %v4301 = vpop.permute.xlu0 %4300
        %v4303 = vadd.f32 %v4294, %v4301
        %v4304 = vadd.f32 %v4295, %v4301
        %v4305 = vmax.f32 %v4303, 0.0
        %v4306 = vmax.f32 %v4304, 0.0
        %v4307 = vld [vmem:[%s11] sm:$0xf]
        %v4308 = vpack.c.bf16 %v4305, %v4305
        %v4309 = vpack.c.bf16 %v4306, %v4306
        %v4310 = vld [vmem:[%s12] sm:$0xff]
        %4312 = vset.pattern.permute.xlu0 0
        %4313 = vperm.xlu0 %4312, %v4310
        %v4314 = vpop.permute.xlu0 %4313
        %v4317 = vsel %vm586, %v4307, 0
        %v4320 = vsel %vm590, %v4308, 0
        %v4323 = vsel %vm590, %v4309, 0
        %4325 = vmatprep.subr.bf16.mxu0 %v4323
        %4326 = vmatpush1.bf16.msra.mxu0 %v4320
        %4327 = vmatprep.subr.bf16.mxu0 0
        %4328 = vmatpush1.bf16.msra.mxu0 0
        %4329 = vmatprep.subr.bf16.mxu0 0
        %4330 = vmatpush1.bf16.msra.mxu0 0
        %4331 = vmatprep.subr.bf16.mxu0 0
        %4332 = vmatpush1.bf16.msra.mxu0 0
        %4333 = vmatprep.subr.bf16.mxu0 0
        %4334 = vmatpush1.bf16.msra.mxu0 0
        %4335 = vmatprep.subr.bf16.mxu0 0
        %4336 = vmatpush1.bf16.msra.mxu0 0
        %4337 = vmatprep.subr.bf16.mxu0 0
        %4338 = vmatpush1.bf16.msra.mxu0 0
        %4339 = vmatprep.subr.bf16.mxu0 0
        %4340 = vmatpush1.bf16.msra.mxu0 0
        %4341 = vmatprep.subr.bf16.mxu0 0
        %4342 = vmatpush1.bf16.msra.mxu0 0
        %4343 = vmatprep.subr.bf16.mxu0 0
        %4344 = vmatpush1.bf16.msra.mxu0 0
        %4345 = vmatprep.subr.bf16.mxu0 0
        %4346 = vmatpush1.bf16.msra.mxu0 0
        %4347 = vmatprep.subr.bf16.mxu0 0
        %4348 = vmatpush1.bf16.msra.mxu0 0
        %4349 = vmatprep.subr.bf16.mxu0 0
        %4350 = vmatpush1.bf16.msra.mxu0 0
        %4351 = vmatprep.subr.bf16.mxu0 0
        %4352 = vmatpush1.bf16.msra.mxu0 0
        %4353 = vmatprep.subr.bf16.mxu0 0
        %4354 = vmatpush1.bf16.msra.mxu0 0
        %4355 = vmatprep.subr.bf16.mxu0 0
        %4356 = vmatpush1.bf16.msra.mxu0 0
        %4357 = vmatprep.mubr.bf16.mxu0 0
        %4358 = vmatmul.mubr.bf16.gmra.mrb[0].mxu0 %v4317
        %v4359 = vpop.f32.mrb[0].mxu0
        %v4360 = vadd.f32 %v4314, %v4359
        %v4361 = vpop.f32.mrb[0].mxu0
        %v4362 = vadd.f32 %v4314, %v4361
        %v4363 = vpop.f32.mrb[0].mxu0
        %v4364 = vpop.f32.mrb[0].mxu0
        %4365 = vdwg.mxu0
        %4366 = vst [vmem:[%s577] sm:$0xff] %v4360
        %4367 = vst [vmem:[%s577 + $0x8] sm:$0xff] %v4362
        %s4368 = sand.u32 %s361, 1
        %s4369 = scalar_lea.sflag [#allocation5], %s4368
        %s4370 = sand.u32 %s361, 1
        %s4371 = smul.addr %s4370, 16
        %s4372 = scalar_lea.vmem [#allocation15], %s4371
        // Predicated region
        $region109: #{tpu_custom_call.1} parent=79 // pred_check
          %p4373 = pneg %p371
        $region110: #{tpu_custom_call.1} parent=79 // pred_check_branch
          %4375 = sbr.rel (%p4373) target = $region112
        $region111: #{tpu_custom_call.1} parent=79 // pred_region
          %s4377 = ssub.s32 256, 256
          %4378 = vsyncadd %s4369, %s4377
          %s4379 = smul.addr %s33, 2
          %s4380 = smul.addr %s4379, 128
          %s4381 = scalar_lea.hbm %s15, %s4380
          %s4383 = sshll.u32 %s4372, 4
          %s4384 = int_to_ptr.vmem [resolvable:$true] %s4383
          %4386 = dma.vmem_to_hbm [thread:$0]  %s4384, 256, %s4381, %s4369
        $region112: #{tpu_custom_call.1} parent=79 // pred_fallthru
          _
      $region80: #{tpu_custom_call.1} parent=5 // pred_fallthru
        _
      %p4387 = scmp.le.s32.totalorder 2, %s28
      // Predicated region
      $region113: #{tpu_custom_call.1} parent=5 // pred_check
        %p4388 = pneg %p4387
      $region114: #{tpu_custom_call.1} parent=5 // pred_check_branch
        %4390 = sbr.rel (%p4388) target = $region116
      $region115: #{tpu_custom_call.1} parent=5 // pred_region
        %s4391 = ssub.s32 %s28, 2
        // Predicated region
        $region117: #{tpu_custom_call.1} parent=115 // pred_check
          %p4392 = pneg %p377
        $region118: #{tpu_custom_call.1} parent=115 // pred_check_branch
          %4394 = sbr.rel (%p4392) target = $region120
        $region119: #{tpu_custom_call.1} parent=115 // pred_region
          %s4395 = sand.u32 %s362, 1
          %s4396 = scalar_lea.sflag [#allocation5], %s4395
          %s4397 = sand.u32 %s362, 1
          %s4398 = smul.addr %s4397, 16
          %s4399 = scalar_lea.vmem [#allocation15], %s4398
          %4400 = dma.done %s4396, 256
        $region120: #{tpu_custom_call.1} parent=115 // pred_fallthru
          _
      $region116: #{tpu_custom_call.1} parent=5 // pred_fallthru
        _
    $region6: #{tpu_custom_call.1} parent=1 // loop_footer
      %s32 = sadd.s32 1, %s28
    $region7: #{tpu_custom_call.1} parent=1 // loop_footer_branch
      %27 = sbr.rel target = $region3
    $region8: #{tpu_custom_call.1} parent=1 // loop_exit
      _
    %4401 = vsyncpa [#allocation4], 1
    %s4402 = scalar_lea.sflag [#allocation4], 1
    %4403 = vsyncpa %s4402, 1
    %4404 = vsyncpa [#allocation7], 1
    %4405 = vsyncpa [#allocation10], 1
    %4406 = vsyncpa [#allocation13], 1
    %4407 = vsyncpa [#allocation5], 1
    %s4408 = scalar_lea.sflag [#allocation5], 1
    %4409 = vsyncpa %s4408, 1

</llo_original>
